<compile_context>
chip_gen: v6e
topology: v6e:2x2x1
jax: 0.10.0
libtpu: 0.0.40
codegen_flags: <defaults>
</compile_context>

<pallas_src>
import functools

import jax
import jax.numpy as jnp
from jax.experimental import pallas as pl
from jax.experimental.pallas import tpu as pltpu


# ----------------------------------------------------------------------------
# Shape helpers
# ----------------------------------------------------------------------------
def conv_out_hw(h, w):
    """Spatial sizes after the (k8/s4, k4/s2, k3/s1) valid conv stack."""
    h1, w1 = (h - 8) // 4 + 1, (w - 8) // 4 + 1
    h2, w2 = (h1 - 4) // 2 + 1, (w1 - 4) // 2 + 1
    h3, w3 = h2 - 2, w2 - 2
    return (h1, w1), (h2, w2), (h3, w3)


def _full_spec(shape):
    zeros = (0,) * len(shape)
    return pl.BlockSpec(shape, lambda i, _z=zeros: _z)


# ----------------------------------------------------------------------------
# Fused forward kernel (one batch tile per grid step, all weights VMEM-resident)
# ----------------------------------------------------------------------------
def _fused_kernel(xs_ref, w1_ref, b1_ref, w2_ref, b2_ref, w3_ref, b3_ref,
                  wl_ref, bl_ref, wsa1_ref, bsa1_ref, wsv2_ref, bsv2_ref,
                  wav2_ref, bav2_ref, q_ref, *, num_actions):
    f32, bf16 = jnp.float32, jnp.bfloat16
    hb, wb, bt, cs = xs_ref.shape          # cs = 16 * C_in (space-to-depth(4))
    ho1, wo1 = hb - 1, wb - 1
    ho2, wo2 = (ho1 - 4) // 2 + 1, (wo1 - 4) // 2 + 1
    ho3, wo3 = ho2 - 2, wo2 - 2
    # conv1 rows/cols actually consumed downstream (always even).
    ho1u, wo1u = 2 * (ho2 + 1), 2 * (wo2 + 1)
    c1, c2 = w1_ref.shape[-1], w2_ref.shape[-1]
    half = wsv2_ref.shape[-1]              # hidden size of each dueling branch

    def mxu(x, w):
        # bf16 MXU matmul, f32 accumulation.
        return jnp.dot(x, w, preferred_element_type=f32)

    xs = xs_ref[...]                       # bf16 (hb, wb, bt, cs)

    # ---- conv1 (8x8 / stride 4): on the space-to-depth(4) grid it is a
    # 2x2-window stride-1 conv.  Fold (oh, ow, b) into M and the 4 taps into K
    # -> ONE matmul (ho1u*wo1u*bt, 4*cs) x (4*cs, 32).
    m1 = ho1u * wo1u * bt
    lhs1 = jnp.concatenate(
        [xs[ai:ai + ho1u, aj:aj + wo1u].reshape(m1, cs)
         for ai in range(2) for aj in range(2)], axis=-1)
    a1 = jnp.maximum(mxu(lhs1, w1_ref[...]) + b1_ref[...], 0.0).astype(bf16)
    # Split spatial dims into (block, parity): conv2's stride-2 taps become
    # unit-stride slices / integer indexing on outer dims only.
    a1 = a1.reshape(ho1u // 2, 2, wo1u // 2, 2, bt, c1)

    # ---- conv2 (4x4 / stride 2): 16 taps folded into K
    # -> ONE matmul (ho2*wo2*bt, 16*c1) x (16*c1, 64).
    m2 = ho2 * wo2 * bt
    lhs2 = jnp.concatenate(
        [a1[ki // 2:ki // 2 + ho2, ki % 2,
            kj // 2:kj // 2 + wo2, kj % 2].reshape(m2, c1)
         for ki in range(4) for kj in range(4)], axis=-1)
    a2 = jnp.maximum(mxu(lhs2, w2_ref[...]) + b2_ref[...], 0.0).astype(bf16)
    a2 = a2.reshape(ho2, wo2, bt, c2)

    # ---- conv3 (3x3 / stride 1): 9 taps folded into K
    # -> ONE matmul (ho3*wo3*bt, 9*c2) x (9*c2, 64).
    m3 = ho3 * wo3 * bt
    lhs3 = jnp.concatenate(
        [a2[ki:ki + ho3, kj:kj + wo3].reshape(m3, c2)
         for ki in range(3) for kj in range(3)], axis=-1)
    a3 = jnp.maximum(mxu(lhs3, w3_ref[...]) + b3_ref[...], 0.0).astype(bf16)
    # a3 rows are ordered (oh3, ow3, b).

    # ---- trunk Linear: gather the per-position (bt, 64) row blocks along K and
    # do a single large-K matmul (wl rows pre-permuted to the same (h, w, c)
    # order), instead of accumulating ho3*wo3 K=64 dots.
    n_pos = ho3 * wo3
    if n_pos > 1:
        feat = jnp.concatenate([a3[p * bt:(p + 1) * bt] for p in range(n_pos)],
                               axis=-1)                     # (bt, n_pos*64)
    else:
        feat = a3                                           # (bt, 64)
    lin = jnp.maximum(mxu(feat, wl_ref[...]) + bl_ref[...], 0.0).astype(bf16)

    # ---- dueling head: fused (state | action) first layer -> one 512x512 dot.
    h = jnp.maximum(mxu(lin, wsa1_ref[...]) + bsa1_ref[...], 0.0)    # f32
    h_s, h_a = h[:, :half], h[:, half:].astype(bf16)
    # state value (output dim 1): VPU multiply + lane reduction, no N=1 matmul.
    sv = jnp.sum(h_s * wsv2_ref[...], axis=-1, keepdims=True) + bsv2_ref[...]
    # advantage: lane-dense (padded to 128 actions); padded columns are exactly
    # zero (zero weights & bias), so the lane sum equals the sum over actions.
    av = mxu(h_a, wav2_ref[...]) + bav2_ref[...]                     # (bt, 128)
    av_mean = jnp.sum(av, axis=-1, keepdims=True) * (1.0 / num_actions)
    q_ref[...] = (sv + (av - av_mean)).astype(q_ref.dtype)


# ----------------------------------------------------------------------------
# One-time weight preparation: torch layout -> kernel-ready (bf16, pre-permuted)
# ----------------------------------------------------------------------------
def prepare_params(p, state_hw):
    (_, _), (_, _), (h3s, w3s) = conv_out_hw(*state_hw)   # spatial sizes only
    bf16, f32 = jnp.bfloat16, jnp.float32
    C = p["w1"].shape[1]
    cs = 16 * C
    A = p["wav2"].shape[0]
    a_pad = max(128, ((A + 127) // 128) * 128)

    # conv1 (32, C, 8, 8): kh = 4*ai + rh, kw = 4*aj + rw
    #   -> rows ordered (ai, aj, rh, rw, c), matching the kernel's tap concat
    #      over (ai, aj) of space-to-depth(4) channels ordered (rh, rw, c).
    w1k = jnp.transpose(p["w1"].reshape(32, C, 2, 4, 2, 4),
                        (2, 4, 3, 5, 1, 0)).reshape(4 * cs, 32)
    # conv2 (64, 32, 4, 4) -> rows ordered (kh, kw, cin)
    w2k = jnp.transpose(p["w2"], (2, 3, 1, 0)).reshape(16 * 32, 64)
    # conv3 (64, 64, 3, 3) -> rows ordered (kh, kw, cin)
    w3k = jnp.transpose(p["w3"], (2, 3, 1, 0)).reshape(9 * 64, 64)
    # trunk Linear (512, 64*h3*w3); torch flatten order is (c, h, w)
    #   -> rows reordered to (h, w, c) to match the kernel's per-position slab.
    wlk = jnp.transpose(p["wl"].reshape(512, 64, h3s, w3s),
                        (2, 3, 1, 0)).reshape(h3s * w3s * 64, 512)
    # dueling first layers fused into one (512, 512) matmul: [state | action]
    wsa1 = jnp.concatenate([p["wsv1"].T, p["wav1"].T], axis=1)
    bsa1 = jnp.concatenate([p["bsv1"], p["bav1"]])
    # action head second layer, zero-padded to a lane-dense 128-wide output.
    wav2 = jnp.zeros((p["wav2"].shape[1], a_pad), f32).at[:, :A].set(p["wav2"].T)
    bav2 = jnp.zeros((1, a_pad), f32).at[0, :A].set(p["bav2"])

    return {
        "w1": w1k.astype(bf16), "b1": p["b1"].reshape(1, -1).astype(f32),
        "w2": w2k.astype(bf16), "b2": p["b2"].reshape(1, -1).astype(f32),
        "w3": w3k.astype(bf16), "b3": p["b3"].reshape(1, -1).astype(f32),
        "wl": wlk.astype(bf16), "bl": p["bl"].reshape(1, -1).astype(f32),
        "wsa1": wsa1.astype(bf16), "bsa1": bsa1.reshape(1, -1).astype(f32),
        "wsv2": p["wsv2"].reshape(1, -1).astype(f32),
        "bsv2": p["bsv2"].reshape(1, 1).astype(f32),
        "wav2": wav2.astype(bf16),
        "bav2": bav2.astype(f32),
    }


# ----------------------------------------------------------------------------
# Forward wrapper (one fused pallas_call, grid over batch tiles)
# ----------------------------------------------------------------------------
def duel_dqn_forward(x, kp, *, num_actions, batch_tile=64):
    B, C, H, W = x.shape
    # TODO(synk): pad H/W when not multiples of 4 (Atari 84x84 satisfies this).
    assert H % 4 == 0 and W % 4 == 0, "input spatial dims must be multiples of 4"
    (_, _), (_, _), (ho3, wo3) = conv_out_hw(H, W)
    assert ho3 >= 1 and wo3 >= 1, "input too small for the conv stack"
    bt = min(batch_tile, B)
    assert B % bt == 0 and (bt % 8 == 0 or bt == B), \
        "batch tile must divide B and be a multiple of 8 (or equal B)"
    a_pad = kp["wav2"].shape[1]
    assert num_actions <= a_pad

    # NCHW -> lossless space-to-depth(4), channels ordered (rh, rw, c), laid out
    # (hb, wb, B, 16C) so every in-kernel tap slice is an outer-dim slice.
    hb, wb = H // 4, W // 4
    xs = jnp.transpose(x, (0, 2, 3, 1)).reshape(B, hb, 4, wb, 4, C)
    xs = jnp.transpose(xs, (1, 3, 0, 2, 4, 5)).reshape(hb, wb, B, 16 * C)
    xs = xs.astype(jnp.bfloat16)

    weight_names = ("w1", "b1", "w2", "b2", "w3", "b3", "wl", "bl",
                    "wsa1", "bsa1", "wsv2", "bsv2", "wav2", "bav2")
    in_specs = [pl.BlockSpec((hb, wb, bt, 16 * C), lambda i: (0, 0, i, 0))]
    in_specs += [_full_spec(kp[n].shape) for n in weight_names]

    kernel = functools.partial(_fused_kernel, num_actions=num_actions)
    q = pl.pallas_call(
        kernel,
        out_shape=jax.ShapeDtypeStruct((B, a_pad), jnp.float32),
        grid=(B // bt,),
        in_specs=in_specs,
        out_specs=pl.BlockSpec((bt, a_pad), lambda i: (i, 0)),
        compiler_params=pltpu.CompilerParams(
            dimension_semantics=("parallel",),
            vmem_limit_bytes=48 * 1024 * 1024),
    )(xs, *[kp[n] for n in weight_names])
    return q[:, :num_actions]


# ----------------------------------------------------------------------------
# Pure-JAX reference (torch-layout params), for a numerical sanity check
# ----------------------------------------------------------------------------
def duel_dqn_ref(x, p):
    def conv(z, w, b, s):
        y = jax.lax.conv_general_dilated(
            z, w, (s, s), "VALID",
            dimension_numbers=("NCHW", "OIHW", "NCHW"))
        return jax.nn.relu(y + b[None, :, None, None])

    c = conv(x, p["w1"], p["b1"], 4)
    c = conv(c, p["w2"], p["b2"], 2)
    c = conv(c, p["w3"], p["b3"], 1)
    B = x.shape[0]
    conv_out = c.reshape(B, -1)
    lin = jax.nn.relu(conv_out @ p["wl"].T + p["bl"])
    h_s = jax.nn.relu(lin @ p["wsv1"].T + p["bsv1"])
    sv = h_s @ p["wsv2"].T + p["bsv2"]
    h_a = jax.nn.relu(lin @ p["wav1"].T + p["bav1"])
    av = h_a @ p["wav2"].T + p["bav2"]
    return sv + (av - jnp.mean(av, axis=1, keepdims=True))


# ----------------------------------------------------------------------------
# Deterministic PyTorch-shaped parameter init and driver
# ----------------------------------------------------------------------------
def init_params(key, in_channels, num_actions, state_hw):
    (_, _), (_, _), (h3, w3) = conv_out_hw(*state_hw)
    conv_out = 64 * h3 * w3
    ks = jax.random.split(key, 16)
    s = 0.1
    n = lambda k, shp: (s * jax.random.normal(k, shp)).astype(jnp.float32)
    return {
        "w1": n(ks[0], (32, in_channels, 8, 8)), "b1": n(ks[1], (32,)),
        "w2": n(ks[2], (64, 32, 4, 4)),          "b2": n(ks[3], (64,)),
        "w3": n(ks[4], (64, 64, 3, 3)),          "b3": n(ks[5], (64,)),
        "wl": n(ks[6], (512, conv_out)),         "bl": n(ks[7], (512,)),
        "wsv1": n(ks[8], (256, 512)),  "bsv1": n(ks[9], (256,)),
        "wsv2": n(ks[10], (1, 256)),   "bsv2": n(ks[11], (1,)),
        "wav1": n(ks[12], (256, 512)), "bav1": n(ks[13], (256,)),
        "wav2": n(ks[14], (num_actions, 256)),
        "bav2": n(ks[15], (num_actions,)),
    }


if __name__ == "__main__":
    # Smallest spatial size valid for the (k8/s4, k4/s2, k3/s1) conv stack.
    B, C, H, W = 32, 4, 36, 36
    num_actions = 6

    key_x, key_p = jax.random.split(jax.random.PRNGKey(0))
    x = jax.random.normal(key_x, (B, C, H, W), dtype=jnp.float32)
    params = init_params(key_p, C, num_actions, (H, W))
    kparams = prepare_params(params, (H, W))     # one-time, kernel-ready layout

    # batch_tile=16 -> grid of 2 parallel batch tiles (keeps both v7x TCs busy);
    # raise toward 64-128 for production batches.
    fwd = jax.jit(functools.partial(duel_dqn_forward,
                                    num_actions=num_actions, batch_tile=16))
    q = jax.block_until_ready(fwd(x, kparams))
    assert q.shape == (B, num_actions), q.shape

    # Sanity check against a pure-f32 reference of the same math (kernel runs
    # bf16 MXU / bf16 activations with f32 accumulation).
    q_ref = jax.block_until_ready(duel_dqn_ref(x, params))
    err = float(jnp.max(jnp.abs(q - q_ref)))
    assert jnp.allclose(q, q_ref, atol=1.5e-1, rtol=5e-2), f"max abs diff {err}"

    print("KERNEL_OK")
</pallas_src>

<mosaic_0001>
module attributes {stable_mosaic.version = 11 : i64} {
  func.func @_fused_kernel(%arg0: i32, %arg1: memref<9x9x16x64xbf16, #tpu.memory_space<vmem>>, %arg2: memref<256x32xbf16, #tpu.memory_space<vmem>>, %arg3: memref<1x32xf32, #tpu.memory_space<vmem>>, %arg4: memref<512x64xbf16, #tpu.memory_space<vmem>>, %arg5: memref<1x64xf32, #tpu.memory_space<vmem>>, %arg6: memref<576x64xbf16, #tpu.memory_space<vmem>>, %arg7: memref<1x64xf32, #tpu.memory_space<vmem>>, %arg8: memref<64x512xbf16, #tpu.memory_space<vmem>>, %arg9: memref<1x512xf32, #tpu.memory_space<vmem>>, %arg10: memref<512x512xbf16, #tpu.memory_space<vmem>>, %arg11: memref<1x512xf32, #tpu.memory_space<vmem>>, %arg12: memref<1x256xf32, #tpu.memory_space<vmem>>, %arg13: memref<1x1xf32, #tpu.memory_space<vmem>>, %arg14: memref<256x128xbf16, #tpu.memory_space<vmem>>, %arg15: memref<1x128xf32, #tpu.memory_space<vmem>>, %arg16: memref<16x128xf32, #tpu.memory_space<vmem>>) attributes {dimension_semantics = [#tpu.dimension_semantics<parallel>], iteration_bounds = array<i64: 2>, scalar_prefetch = 0 : i64, scratch_operands = 0 : i64, tpu.core_type = #tpu.core_type<tc>, window_params = [{transform_indices = @transform_0, window_bounds = array<i64: 9, 9, 16, 64>}, {pipeline_mode = #tpu.pipeline_mode<synchronous>, transform_indices = @transform_1, window_bounds = array<i64: 256, 32>}, {pipeline_mode = #tpu.pipeline_mode<synchronous>, transform_indices = @transform_2, window_bounds = array<i64: 1, 32>}, {pipeline_mode = #tpu.pipeline_mode<synchronous>, transform_indices = @transform_3, window_bounds = array<i64: 512, 64>}, {pipeline_mode = #tpu.pipeline_mode<synchronous>, transform_indices = @transform_4, window_bounds = array<i64: 1, 64>}, {pipeline_mode = #tpu.pipeline_mode<synchronous>, transform_indices = @transform_5, window_bounds = array<i64: 576, 64>}, {pipeline_mode = #tpu.pipeline_mode<synchronous>, transform_indices = @transform_6, window_bounds = array<i64: 1, 64>}, {pipeline_mode = #tpu.pipeline_mode<synchronous>, transform_indices = @transform_7, window_bounds = array<i64: 64, 512>}, {pipeline_mode = #tpu.pipeline_mode<synchronous>, transform_indices = @transform_8, window_bounds = array<i64: 1, 512>}, {pipeline_mode = #tpu.pipeline_mode<synchronous>, transform_indices = @transform_9, window_bounds = array<i64: 512, 512>}, {pipeline_mode = #tpu.pipeline_mode<synchronous>, transform_indices = @transform_10, window_bounds = array<i64: 1, 512>}, {pipeline_mode = #tpu.pipeline_mode<synchronous>, transform_indices = @transform_11, window_bounds = array<i64: 1, 256>}, {pipeline_mode = #tpu.pipeline_mode<synchronous>, transform_indices = @transform_12, window_bounds = array<i64: 1, 1>}, {pipeline_mode = #tpu.pipeline_mode<synchronous>, transform_indices = @transform_13, window_bounds = array<i64: 256, 128>}, {pipeline_mode = #tpu.pipeline_mode<synchronous>, transform_indices = @transform_14, window_bounds = array<i64: 1, 128>}, {transform_indices = @transform_15, window_bounds = array<i64: 16, 128>}]} {
    %c0 = arith.constant 0 : index
    %c0_0 = arith.constant 0 : index
    %c0_1 = arith.constant 0 : index
    %c0_2 = arith.constant 0 : index
    %0 = vector.load %arg1[%c0, %c0_0, %c0_1, %c0_2] : memref<9x9x16x64xbf16, #tpu.memory_space<vmem>>, vector<9x9x16x64xbf16>
    %1 = vector.extract_strided_slice %0 {offsets = [0, 0, 0, 0], sizes = [8, 8, 16, 64], strides = [1, 1, 1, 1]} : vector<9x9x16x64xbf16> to vector<8x8x16x64xbf16>
    %2 = vector.shape_cast %1 : vector<8x8x16x64xbf16> to vector<1024x64xbf16>
    %3 = vector.extract_strided_slice %0 {offsets = [0, 1, 0, 0], sizes = [8, 8, 16, 64], strides = [1, 1, 1, 1]} : vector<9x9x16x64xbf16> to vector<8x8x16x64xbf16>
    %4 = vector.shape_cast %3 : vector<8x8x16x64xbf16> to vector<1024x64xbf16>
    %5 = vector.extract_strided_slice %0 {offsets = [1, 0, 0, 0], sizes = [8, 8, 16, 64], strides = [1, 1, 1, 1]} : vector<9x9x16x64xbf16> to vector<8x8x16x64xbf16>
    %6 = vector.shape_cast %5 : vector<8x8x16x64xbf16> to vector<1024x64xbf16>
    %7 = vector.extract_strided_slice %0 {offsets = [1, 1, 0, 0], sizes = [8, 8, 16, 64], strides = [1, 1, 1, 1]} : vector<9x9x16x64xbf16> to vector<8x8x16x64xbf16>
    %8 = vector.shape_cast %7 : vector<8x8x16x64xbf16> to vector<1024x64xbf16>
    %9 = tpu.concatenate %2, %4, %6, %8 in 1 : vector<1024x64xbf16>, vector<1024x64xbf16>, vector<1024x64xbf16>, vector<1024x64xbf16> -> vector<1024x256xbf16>
    %c0_3 = arith.constant 0 : index
    %c0_4 = arith.constant 0 : index
    %10 = vector.load %arg2[%c0_3, %c0_4] : memref<256x32xbf16, #tpu.memory_space<vmem>>, vector<256x32xbf16>
    %cst = arith.constant dense<0.000000e+00> : vector<1024x32xf32>
    %11 = tpu.matmul %9, %10, %cst {dimension_numbers = #tpu.dot_dimension_numbers<[1], [0], [0], [1], [0, 0, 1, 1], [], []>} : vector<1024x256xbf16>, vector<256x32xbf16>, vector<1024x32xf32> -> vector<1024x32xf32>
    %c0_5 = arith.constant 0 : index
    %c0_6 = arith.constant 0 : index
    %12 = vector.load %arg3[%c0_5, %c0_6] : memref<1x32xf32, #tpu.memory_space<vmem>>, vector<1x32xf32>
    %13 = vector.broadcast %12 : vector<1x32xf32> to vector<1024x32xf32>
    %14 = arith.addf %11, %13 : vector<1024x32xf32>
    %cst_7 = arith.constant 0.000000e+00 : f32
    %15 = vector.broadcast %cst_7 : f32 to vector<1024x32xf32>
    %16 = arith.maximumf %14, %15 : vector<1024x32xf32>
    %17 = arith.truncf %16 : vector<1024x32xf32> to vector<1024x32xbf16>
    %18 = vector.shape_cast %17 : vector<1024x32xbf16> to vector<4x2x4x2x16x32xbf16>
    %19 = vector.extract_strided_slice %18 {offsets = [0, 0, 0, 0, 0, 0], sizes = [3, 1, 3, 1, 16, 32], strides = [1, 1, 1, 1, 1, 1]} : vector<4x2x4x2x16x32xbf16> to vector<3x1x3x1x16x32xbf16>
    %20 = vector.shape_cast %19 : vector<3x1x3x1x16x32xbf16> to vector<3x3x16x32xbf16>
    %21 = vector.shape_cast %20 : vector<3x3x16x32xbf16> to vector<144x32xbf16>
    %22 = vector.extract_strided_slice %18 {offsets = [0, 0, 0, 1, 0, 0], sizes = [3, 1, 3, 1, 16, 32], strides = [1, 1, 1, 1, 1, 1]} : vector<4x2x4x2x16x32xbf16> to vector<3x1x3x1x16x32xbf16>
    %23 = vector.shape_cast %22 : vector<3x1x3x1x16x32xbf16> to vector<3x3x16x32xbf16>
    %24 = vector.shape_cast %23 : vector<3x3x16x32xbf16> to vector<144x32xbf16>
    %25 = vector.extract_strided_slice %18 {offsets = [0, 0, 1, 0, 0, 0], sizes = [3, 1, 3, 1, 16, 32], strides = [1, 1, 1, 1, 1, 1]} : vector<4x2x4x2x16x32xbf16> to vector<3x1x3x1x16x32xbf16>
    %26 = vector.shape_cast %25 : vector<3x1x3x1x16x32xbf16> to vector<3x3x16x32xbf16>
    %27 = vector.shape_cast %26 : vector<3x3x16x32xbf16> to vector<144x32xbf16>
    %28 = vector.extract_strided_slice %18 {offsets = [0, 0, 1, 1, 0, 0], sizes = [3, 1, 3, 1, 16, 32], strides = [1, 1, 1, 1, 1, 1]} : vector<4x2x4x2x16x32xbf16> to vector<3x1x3x1x16x32xbf16>
    %29 = vector.shape_cast %28 : vector<3x1x3x1x16x32xbf16> to vector<3x3x16x32xbf16>
    %30 = vector.shape_cast %29 : vector<3x3x16x32xbf16> to vector<144x32xbf16>
    %31 = vector.extract_strided_slice %18 {offsets = [0, 1, 0, 0, 0, 0], sizes = [3, 1, 3, 1, 16, 32], strides = [1, 1, 1, 1, 1, 1]} : vector<4x2x4x2x16x32xbf16> to vector<3x1x3x1x16x32xbf16>
    %32 = vector.shape_cast %31 : vector<3x1x3x1x16x32xbf16> to vector<3x3x16x32xbf16>
    %33 = vector.shape_cast %32 : vector<3x3x16x32xbf16> to vector<144x32xbf16>
    %34 = vector.extract_strided_slice %18 {offsets = [0, 1, 0, 1, 0, 0], sizes = [3, 1, 3, 1, 16, 32], strides = [1, 1, 1, 1, 1, 1]} : vector<4x2x4x2x16x32xbf16> to vector<3x1x3x1x16x32xbf16>
    %35 = vector.shape_cast %34 : vector<3x1x3x1x16x32xbf16> to vector<3x3x16x32xbf16>
    %36 = vector.shape_cast %35 : vector<3x3x16x32xbf16> to vector<144x32xbf16>
    %37 = vector.extract_strided_slice %18 {offsets = [0, 1, 1, 0, 0, 0], sizes = [3, 1, 3, 1, 16, 32], strides = [1, 1, 1, 1, 1, 1]} : vector<4x2x4x2x16x32xbf16> to vector<3x1x3x1x16x32xbf16>
    %38 = vector.shape_cast %37 : vector<3x1x3x1x16x32xbf16> to vector<3x3x16x32xbf16>
    %39 = vector.shape_cast %38 : vector<3x3x16x32xbf16> to vector<144x32xbf16>
    %40 = vector.extract_strided_slice %18 {offsets = [0, 1, 1, 1, 0, 0], sizes = [3, 1, 3, 1, 16, 32], strides = [1, 1, 1, 1, 1, 1]} : vector<4x2x4x2x16x32xbf16> to vector<3x1x3x1x16x32xbf16>
    %41 = vector.shape_cast %40 : vector<3x1x3x1x16x32xbf16> to vector<3x3x16x32xbf16>
    %42 = vector.shape_cast %41 : vector<3x3x16x32xbf16> to vector<144x32xbf16>
    %43 = vector.extract_strided_slice %18 {offsets = [1, 0, 0, 0, 0, 0], sizes = [3, 1, 3, 1, 16, 32], strides = [1, 1, 1, 1, 1, 1]} : vector<4x2x4x2x16x32xbf16> to vector<3x1x3x1x16x32xbf16>
    %44 = vector.shape_cast %43 : vector<3x1x3x1x16x32xbf16> to vector<3x3x16x32xbf16>
    %45 = vector.shape_cast %44 : vector<3x3x16x32xbf16> to vector<144x32xbf16>
    %46 = vector.extract_strided_slice %18 {offsets = [1, 0, 0, 1, 0, 0], sizes = [3, 1, 3, 1, 16, 32], strides = [1, 1, 1, 1, 1, 1]} : vector<4x2x4x2x16x32xbf16> to vector<3x1x3x1x16x32xbf16>
    %47 = vector.shape_cast %46 : vector<3x1x3x1x16x32xbf16> to vector<3x3x16x32xbf16>
    %48 = vector.shape_cast %47 : vector<3x3x16x32xbf16> to vector<144x32xbf16>
    %49 = vector.extract_strided_slice %18 {offsets = [1, 0, 1, 0, 0, 0], sizes = [3, 1, 3, 1, 16, 32], strides = [1, 1, 1, 1, 1, 1]} : vector<4x2x4x2x16x32xbf16> to vector<3x1x3x1x16x32xbf16>
    %50 = vector.shape_cast %49 : vector<3x1x3x1x16x32xbf16> to vector<3x3x16x32xbf16>
    %51 = vector.shape_cast %50 : vector<3x3x16x32xbf16> to vector<144x32xbf16>
    %52 = vector.extract_strided_slice %18 {offsets = [1, 0, 1, 1, 0, 0], sizes = [3, 1, 3, 1, 16, 32], strides = [1, 1, 1, 1, 1, 1]} : vector<4x2x4x2x16x32xbf16> to vector<3x1x3x1x16x32xbf16>
    %53 = vector.shape_cast %52 : vector<3x1x3x1x16x32xbf16> to vector<3x3x16x32xbf16>
    %54 = vector.shape_cast %53 : vector<3x3x16x32xbf16> to vector<144x32xbf16>
    %55 = vector.extract_strided_slice %18 {offsets = [1, 1, 0, 0, 0, 0], sizes = [3, 1, 3, 1, 16, 32], strides = [1, 1, 1, 1, 1, 1]} : vector<4x2x4x2x16x32xbf16> to vector<3x1x3x1x16x32xbf16>
    %56 = vector.shape_cast %55 : vector<3x1x3x1x16x32xbf16> to vector<3x3x16x32xbf16>
    %57 = vector.shape_cast %56 : vector<3x3x16x32xbf16> to vector<144x32xbf16>
    %58 = vector.extract_strided_slice %18 {offsets = [1, 1, 0, 1, 0, 0], sizes = [3, 1, 3, 1, 16, 32], strides = [1, 1, 1, 1, 1, 1]} : vector<4x2x4x2x16x32xbf16> to vector<3x1x3x1x16x32xbf16>
    %59 = vector.shape_cast %58 : vector<3x1x3x1x16x32xbf16> to vector<3x3x16x32xbf16>
    %60 = vector.shape_cast %59 : vector<3x3x16x32xbf16> to vector<144x32xbf16>
    %61 = vector.extract_strided_slice %18 {offsets = [1, 1, 1, 0, 0, 0], sizes = [3, 1, 3, 1, 16, 32], strides = [1, 1, 1, 1, 1, 1]} : vector<4x2x4x2x16x32xbf16> to vector<3x1x3x1x16x32xbf16>
    %62 = vector.shape_cast %61 : vector<3x1x3x1x16x32xbf16> to vector<3x3x16x32xbf16>
    %63 = vector.shape_cast %62 : vector<3x3x16x32xbf16> to vector<144x32xbf16>
    %64 = vector.extract_strided_slice %18 {offsets = [1, 1, 1, 1, 0, 0], sizes = [3, 1, 3, 1, 16, 32], strides = [1, 1, 1, 1, 1, 1]} : vector<4x2x4x2x16x32xbf16> to vector<3x1x3x1x16x32xbf16>
    %65 = vector.shape_cast %64 : vector<3x1x3x1x16x32xbf16> to vector<3x3x16x32xbf16>
    %66 = vector.shape_cast %65 : vector<3x3x16x32xbf16> to vector<144x32xbf16>
    %67 = tpu.concatenate %21, %24, %27, %30, %33, %36, %39, %42, %45, %48, %51, %54, %57, %60, %63, %66 in 1 : vector<144x32xbf16>, vector<144x32xbf16>, vector<144x32xbf16>, vector<144x32xbf16>, vector<144x32xbf16>, vector<144x32xbf16>, vector<144x32xbf16>, vector<144x32xbf16>, vector<144x32xbf16>, vector<144x32xbf16>, vector<144x32xbf16>, vector<144x32xbf16>, vector<144x32xbf16>, vector<144x32xbf16>, vector<144x32xbf16>, vector<144x32xbf16> -> vector<144x512xbf16>
    %c0_8 = arith.constant 0 : index
    %c0_9 = arith.constant 0 : index
    %68 = vector.load %arg4[%c0_8, %c0_9] : memref<512x64xbf16, #tpu.memory_space<vmem>>, vector<512x64xbf16>
    %cst_10 = arith.constant dense<0.000000e+00> : vector<144x64xf32>
    %69 = tpu.matmul %67, %68, %cst_10 {dimension_numbers = #tpu.dot_dimension_numbers<[1], [0], [0], [1], [0, 0, 1, 1], [], []>} : vector<144x512xbf16>, vector<512x64xbf16>, vector<144x64xf32> -> vector<144x64xf32>
    %c0_11 = arith.constant 0 : index
    %c0_12 = arith.constant 0 : index
    %70 = vector.load %arg5[%c0_11, %c0_12] : memref<1x64xf32, #tpu.memory_space<vmem>>, vector<1x64xf32>
    %71 = vector.broadcast %70 : vector<1x64xf32> to vector<144x64xf32>
    %72 = arith.addf %69, %71 : vector<144x64xf32>
    %cst_13 = arith.constant 0.000000e+00 : f32
    %73 = vector.broadcast %cst_13 : f32 to vector<144x64xf32>
    %74 = arith.maximumf %72, %73 : vector<144x64xf32>
    %75 = arith.truncf %74 : vector<144x64xf32> to vector<144x64xbf16>
    %76 = vector.shape_cast %75 : vector<144x64xbf16> to vector<3x3x16x64xbf16>
    %77 = vector.extract_strided_slice %76 {offsets = [0, 0, 0, 0], sizes = [1, 1, 16, 64], strides = [1, 1, 1, 1]} : vector<3x3x16x64xbf16> to vector<1x1x16x64xbf16>
    %78 = vector.shape_cast %77 : vector<1x1x16x64xbf16> to vector<16x64xbf16>
    %79 = vector.extract_strided_slice %76 {offsets = [0, 1, 0, 0], sizes = [1, 1, 16, 64], strides = [1, 1, 1, 1]} : vector<3x3x16x64xbf16> to vector<1x1x16x64xbf16>
    %80 = vector.shape_cast %79 : vector<1x1x16x64xbf16> to vector<16x64xbf16>
    %81 = vector.extract_strided_slice %76 {offsets = [0, 2, 0, 0], sizes = [1, 1, 16, 64], strides = [1, 1, 1, 1]} : vector<3x3x16x64xbf16> to vector<1x1x16x64xbf16>
    %82 = vector.shape_cast %81 : vector<1x1x16x64xbf16> to vector<16x64xbf16>
    %83 = vector.extract_strided_slice %76 {offsets = [1, 0, 0, 0], sizes = [1, 1, 16, 64], strides = [1, 1, 1, 1]} : vector<3x3x16x64xbf16> to vector<1x1x16x64xbf16>
    %84 = vector.shape_cast %83 : vector<1x1x16x64xbf16> to vector<16x64xbf16>
    %85 = vector.extract_strided_slice %76 {offsets = [1, 1, 0, 0], sizes = [1, 1, 16, 64], strides = [1, 1, 1, 1]} : vector<3x3x16x64xbf16> to vector<1x1x16x64xbf16>
    %86 = vector.shape_cast %85 : vector<1x1x16x64xbf16> to vector<16x64xbf16>
    %87 = vector.extract_strided_slice %76 {offsets = [1, 2, 0, 0], sizes = [1, 1, 16, 64], strides = [1, 1, 1, 1]} : vector<3x3x16x64xbf16> to vector<1x1x16x64xbf16>
    %88 = vector.shape_cast %87 : vector<1x1x16x64xbf16> to vector<16x64xbf16>
    %89 = vector.extract_strided_slice %76 {offsets = [2, 0, 0, 0], sizes = [1, 1, 16, 64], strides = [1, 1, 1, 1]} : vector<3x3x16x64xbf16> to vector<1x1x16x64xbf16>
    %90 = vector.shape_cast %89 : vector<1x1x16x64xbf16> to vector<16x64xbf16>
    %91 = vector.extract_strided_slice %76 {offsets = [2, 1, 0, 0], sizes = [1, 1, 16, 64], strides = [1, 1, 1, 1]} : vector<3x3x16x64xbf16> to vector<1x1x16x64xbf16>
    %92 = vector.shape_cast %91 : vector<1x1x16x64xbf16> to vector<16x64xbf16>
    %93 = vector.extract_strided_slice %76 {offsets = [2, 2, 0, 0], sizes = [1, 1, 16, 64], strides = [1, 1, 1, 1]} : vector<3x3x16x64xbf16> to vector<1x1x16x64xbf16>
    %94 = vector.shape_cast %93 : vector<1x1x16x64xbf16> to vector<16x64xbf16>
    %95 = tpu.concatenate %78, %80, %82, %84, %86, %88, %90, %92, %94 in 1 : vector<16x64xbf16>, vector<16x64xbf16>, vector<16x64xbf16>, vector<16x64xbf16>, vector<16x64xbf16>, vector<16x64xbf16>, vector<16x64xbf16>, vector<16x64xbf16>, vector<16x64xbf16> -> vector<16x576xbf16>
    %c0_14 = arith.constant 0 : index
    %c0_15 = arith.constant 0 : index
    %96 = vector.load %arg6[%c0_14, %c0_15] : memref<576x64xbf16, #tpu.memory_space<vmem>>, vector<576x64xbf16>
    %cst_16 = arith.constant dense<0.000000e+00> : vector<16x64xf32>
    %97 = tpu.matmul %95, %96, %cst_16 {dimension_numbers = #tpu.dot_dimension_numbers<[1], [0], [0], [1], [0, 0, 1, 1], [], []>} : vector<16x576xbf16>, vector<576x64xbf16>, vector<16x64xf32> -> vector<16x64xf32>
    %c0_17 = arith.constant 0 : index
    %c0_18 = arith.constant 0 : index
    %98 = vector.load %arg7[%c0_17, %c0_18] : memref<1x64xf32, #tpu.memory_space<vmem>>, vector<1x64xf32>
    %99 = vector.broadcast %98 : vector<1x64xf32> to vector<16x64xf32>
    %100 = arith.addf %97, %99 : vector<16x64xf32>
    %cst_19 = arith.constant 0.000000e+00 : f32
    %101 = vector.broadcast %cst_19 : f32 to vector<16x64xf32>
    %102 = arith.maximumf %100, %101 : vector<16x64xf32>
    %103 = arith.truncf %102 : vector<16x64xf32> to vector<16x64xbf16>
    %c0_20 = arith.constant 0 : index
    %c0_21 = arith.constant 0 : index
    %104 = vector.load %arg8[%c0_20, %c0_21] : memref<64x512xbf16, #tpu.memory_space<vmem>>, vector<64x512xbf16>
    %cst_22 = arith.constant dense<0.000000e+00> : vector<16x512xf32>
    %105 = tpu.matmul %103, %104, %cst_22 {dimension_numbers = #tpu.dot_dimension_numbers<[1], [0], [0], [1], [0, 0, 1, 1], [], []>} : vector<16x64xbf16>, vector<64x512xbf16>, vector<16x512xf32> -> vector<16x512xf32>
    %c0_23 = arith.constant 0 : index
    %c0_24 = arith.constant 0 : index
    %106 = vector.load %arg9[%c0_23, %c0_24] : memref<1x512xf32, #tpu.memory_space<vmem>>, vector<1x512xf32>
    %107 = vector.broadcast %106 : vector<1x512xf32> to vector<16x512xf32>
    %108 = arith.addf %105, %107 : vector<16x512xf32>
    %cst_25 = arith.constant 0.000000e+00 : f32
    %109 = vector.broadcast %cst_25 : f32 to vector<16x512xf32>
    %110 = arith.maximumf %108, %109 : vector<16x512xf32>
    %111 = arith.truncf %110 : vector<16x512xf32> to vector<16x512xbf16>
    %c0_26 = arith.constant 0 : index
    %c0_27 = arith.constant 0 : index
    %112 = vector.load %arg10[%c0_26, %c0_27] : memref<512x512xbf16, #tpu.memory_space<vmem>>, vector<512x512xbf16>
    %cst_28 = arith.constant dense<0.000000e+00> : vector<16x512xf32>
    %113 = tpu.matmul %111, %112, %cst_28 {dimension_numbers = #tpu.dot_dimension_numbers<[1], [0], [0], [1], [0, 0, 1, 1], [], []>} : vector<16x512xbf16>, vector<512x512xbf16>, vector<16x512xf32> -> vector<16x512xf32>
    %c0_29 = arith.constant 0 : index
    %c0_30 = arith.constant 0 : index
    %114 = vector.load %arg11[%c0_29, %c0_30] : memref<1x512xf32, #tpu.memory_space<vmem>>, vector<1x512xf32>
    %115 = vector.broadcast %114 : vector<1x512xf32> to vector<16x512xf32>
    %116 = arith.addf %113, %115 : vector<16x512xf32>
    %cst_31 = arith.constant 0.000000e+00 : f32
    %117 = vector.broadcast %cst_31 : f32 to vector<16x512xf32>
    %118 = arith.maximumf %116, %117 : vector<16x512xf32>
    %119 = vector.extract_strided_slice %118 {offsets = [0, 0], sizes = [16, 256], strides = [1, 1]} : vector<16x512xf32> to vector<16x256xf32>
    %120 = vector.extract_strided_slice %118 {offsets = [0, 256], sizes = [16, 256], strides = [1, 1]} : vector<16x512xf32> to vector<16x256xf32>
    %121 = arith.truncf %120 : vector<16x256xf32> to vector<16x256xbf16>
    %c0_32 = arith.constant 0 : index
    %c0_33 = arith.constant 0 : index
    %122 = vector.load %arg12[%c0_32, %c0_33] : memref<1x256xf32, #tpu.memory_space<vmem>>, vector<1x256xf32>
    %123 = vector.broadcast %122 : vector<1x256xf32> to vector<16x256xf32>
    %124 = arith.mulf %119, %123 : vector<16x256xf32>
    %cst_34 = arith.constant dense<0.000000e+00> : vector<16xf32>
    %125 = vector.multi_reduction <add>, %124, %cst_34 [1] : vector<16x256xf32> to vector<16xf32>
    %126 = vector.shape_cast %125 : vector<16xf32> to vector<16x1xf32>
    %c0_35 = arith.constant 0 : index
    %c0_36 = arith.constant 0 : index
    %127 = vector.load %arg13[%c0_35, %c0_36] : memref<1x1xf32, #tpu.memory_space<vmem>>, vector<1x1xf32>
    %128 = vector.broadcast %127 : vector<1x1xf32> to vector<16x1xf32>
    %129 = arith.addf %126, %128 : vector<16x1xf32>
    %c0_37 = arith.constant 0 : index
    %c0_38 = arith.constant 0 : index
    %130 = vector.load %arg14[%c0_37, %c0_38] : memref<256x128xbf16, #tpu.memory_space<vmem>>, vector<256x128xbf16>
    %cst_39 = arith.constant dense<0.000000e+00> : vector<16x128xf32>
    %131 = tpu.matmul %121, %130, %cst_39 {dimension_numbers = #tpu.dot_dimension_numbers<[1], [0], [0], [1], [0, 0, 1, 1], [], []>} : vector<16x256xbf16>, vector<256x128xbf16>, vector<16x128xf32> -> vector<16x128xf32>
    %c0_40 = arith.constant 0 : index
    %c0_41 = arith.constant 0 : index
    %132 = vector.load %arg15[%c0_40, %c0_41] : memref<1x128xf32, #tpu.memory_space<vmem>>, vector<1x128xf32>
    %133 = vector.broadcast %132 : vector<1x128xf32> to vector<16x128xf32>
    %134 = arith.addf %131, %133 : vector<16x128xf32>
    %cst_42 = arith.constant dense<0.000000e+00> : vector<16xf32>
    %135 = vector.multi_reduction <add>, %134, %cst_42 [1] : vector<16x128xf32> to vector<16xf32>
    %136 = vector.shape_cast %135 : vector<16xf32> to vector<16x1xf32>
    %cst_43 = arith.constant 0.166666672 : f32
    %137 = vector.broadcast %cst_43 : f32 to vector<16x1xf32>
    %138 = arith.mulf %136, %137 : vector<16x1xf32>
    %139 = vector.broadcast %138 : vector<16x1xf32> to vector<16x128xf32>
    %140 = arith.subf %134, %139 : vector<16x128xf32>
    %141 = vector.broadcast %129 : vector<16x1xf32> to vector<16x128xf32>
    %142 = arith.addf %141, %140 : vector<16x128xf32>
    %c0_44 = arith.constant 0 : index
    %c0_45 = arith.constant 0 : index
    %143 = vector.load %arg16[%c0_44, %c0_45] : memref<16x128xf32, #tpu.memory_space<vmem>>, vector<16x128xf32>
    tpu.vector_store %arg16[%c0_44, %c0_45], %142 {strides = array<i32>} : memref<16x128xf32, #tpu.memory_space<vmem>>, vector<16x128xf32>,
    return
  }
  func.func @transform_0(%arg0: i32) -> (i32, i32, i32, i32) {
    %c0_i32 = arith.constant 0 : i32
    %c0_i32_0 = arith.constant 0 : i32
    %c0_i32_1 = arith.constant 0 : i32
    %c0_i32_2 = arith.constant 0 : i32
    return %c0_i32, %c0_i32_0, %arg0, %c0_i32_1 : i32, i32, i32, i32
  }
  func.func @transform_1(%arg0: i32) -> (i32, i32) {
    %c0_i32 = arith.constant 0 : i32
    %c0_i32_0 = arith.constant 0 : i32
    %c0_i32_1 = arith.constant 0 : i32
    return %c0_i32, %c0_i32_0 : i32, i32
  }
  func.func @transform_2(%arg0: i32) -> (i32, i32) {
    %c0_i32 = arith.constant 0 : i32
    %c0_i32_0 = arith.constant 0 : i32
    %c0_i32_1 = arith.constant 0 : i32
    return %c0_i32, %c0_i32_0 : i32, i32
  }
  func.func @transform_3(%arg0: i32) -> (i32, i32) {
    %c0_i32 = arith.constant 0 : i32
    %c0_i32_0 = arith.constant 0 : i32
    %c0_i32_1 = arith.constant 0 : i32
    return %c0_i32, %c0_i32_0 : i32, i32
  }
  func.func @transform_4(%arg0: i32) -> (i32, i32) {
    %c0_i32 = arith.constant 0 : i32
    %c0_i32_0 = arith.constant 0 : i32
    %c0_i32_1 = arith.constant 0 : i32
    return %c0_i32, %c0_i32_0 : i32, i32
  }
  func.func @transform_5(%arg0: i32) -> (i32, i32) {
    %c0_i32 = arith.constant 0 : i32
    %c0_i32_0 = arith.constant 0 : i32
    %c0_i32_1 = arith.constant 0 : i32
    return %c0_i32, %c0_i32_0 : i32, i32
  }
  func.func @transform_6(%arg0: i32) -> (i32, i32) {
    %c0_i32 = arith.constant 0 : i32
    %c0_i32_0 = arith.constant 0 : i32
    %c0_i32_1 = arith.constant 0 : i32
    return %c0_i32, %c0_i32_0 : i32, i32
  }
  func.func @transform_7(%arg0: i32) -> (i32, i32) {
    %c0_i32 = arith.constant 0 : i32
    %c0_i32_0 = arith.constant 0 : i32
    %c0_i32_1 = arith.constant 0 : i32
    return %c0_i32, %c0_i32_0 : i32, i32
  }
  func.func @transform_8(%arg0: i32) -> (i32, i32) {
    %c0_i32 = arith.constant 0 : i32
    %c0_i32_0 = arith.constant 0 : i32
    %c0_i32_1 = arith.constant 0 : i32
    return %c0_i32, %c0_i32_0 : i32, i32
  }
  func.func @transform_9(%arg0: i32) -> (i32, i32) {
    %c0_i32 = arith.constant 0 : i32
    %c0_i32_0 = arith.constant 0 : i32
    %c0_i32_1 = arith.constant 0 : i32
    return %c0_i32, %c0_i32_0 : i32, i32
  }
  func.func @transform_10(%arg0: i32) -> (i32, i32) {
    %c0_i32 = arith.constant 0 : i32
    %c0_i32_0 = arith.constant 0 : i32
    %c0_i32_1 = arith.constant 0 : i32
    return %c0_i32, %c0_i32_0 : i32, i32
  }
  func.func @transform_11(%arg0: i32) -> (i32, i32) {
    %c0_i32 = arith.constant 0 : i32
    %c0_i32_0 = arith.constant 0 : i32
    %c0_i32_1 = arith.constant 0 : i32
    return %c0_i32, %c0_i32_0 : i32, i32
  }
  func.func @transform_12(%arg0: i32) -> (i32, i32) {
    %c0_i32 = arith.constant 0 : i32
    %c0_i32_0 = arith.constant 0 : i32
    %c0_i32_1 = arith.constant 0 : i32
    return %c0_i32, %c0_i32_0 : i32, i32
  }
  func.func @transform_13(%arg0: i32) -> (i32, i32) {
    %c0_i32 = arith.constant 0 : i32
    %c0_i32_0 = arith.constant 0 : i32
    %c0_i32_1 = arith.constant 0 : i32
    return %c0_i32, %c0_i32_0 : i32, i32
  }
  func.func @transform_14(%arg0: i32) -> (i32, i32) {
    %c0_i32 = arith.constant 0 : i32
    %c0_i32_0 = arith.constant 0 : i32
    %c0_i32_1 = arith.constant 0 : i32
    return %c0_i32, %c0_i32_0 : i32, i32
  }
  func.func @transform_15(%arg0: i32) -> (i32, i32) {
    %c0_i32 = arith.constant 0 : i32
    %c0_i32_0 = arith.constant 0 : i32
    return %arg0, %c0_i32 : i32, i32
  }
}

</mosaic_0001>

<llo_original>
// kernel: duel_dqn_forward.1
$region0: #{duel_dqn_forward.1}
  #allocation0 [shape = 'u32[]', space=smem, size = 0x4, offset = 0x4, fixed_abs, tag = 'smem constant byte address 0x4 - core index']
  #allocation1 [shape = 'u32[144,128]{1,0:T(1,128)}', space=vmem, size = 0x12000, scoped, tag = 'internal scratch']
  #allocation2 [shape = 'f32[1,1]{1,0:T(1,128)S(1)}', space=vmem, size = 0x200, scoped, tag = 'scoped memory for duel_dqn_forward.1']
  %s0 = inlined_call_operand.vmem [shape: bf16[9,9,32,64], index: 0, kind: input, shape index: {}]
  %s1 = inlined_call_operand.vmem [shape: bf16[256,32], index: 1, kind: input, shape index: {}]
  %s2 = inlined_call_operand.vmem [shape: f32[1,32], index: 2, kind: input, shape index: {}]
  %s3 = inlined_call_operand.vmem [shape: bf16[512,64], index: 3, kind: input, shape index: {}]
  %s4 = inlined_call_operand.vmem [shape: f32[1,64], index: 4, kind: input, shape index: {}]
  %s5 = inlined_call_operand.vmem [shape: bf16[576,64], index: 5, kind: input, shape index: {}]
  %s6 = inlined_call_operand.vmem [shape: f32[1,64], index: 6, kind: input, shape index: {}]
  %s7 = inlined_call_operand.vmem [shape: bf16[64,512], index: 7, kind: input, shape index: {}]
  %s8 = inlined_call_operand.vmem [shape: f32[1,512], index: 8, kind: input, shape index: {}]
  %s9 = inlined_call_operand.vmem [shape: bf16[512,512], index: 9, kind: input, shape index: {}]
  %s10 = inlined_call_operand.vmem [shape: f32[1,512], index: 10, kind: input, shape index: {}]
  %s11 = inlined_call_operand.vmem [shape: f32[1,256], index: 11, kind: input, shape index: {}]
  %s12 = inlined_call_operand.<no memory space> [shape: f32[1,1], index: 12, kind: input, shape index: {}]
  %s13 = inlined_call_operand.vmem [shape: bf16[256,128], index: 13, kind: input, shape index: {}]
  %s14 = inlined_call_operand.vmem [shape: f32[1,128], index: 14, kind: input, shape index: {}]
  %s15 = inlined_call_operand.vmem [shape: f32[32,128], index: 15, kind: output, shape index: {}]
  %s16 = sld [smem:[#allocation0]]
  $region134: #{duel_dqn_forward.1} parent=0
    _
  %s18 = ssub.s32 1, %s16
  %s19 = scalar_select 0, %s18, %s16
  %v20 = vstv %s12
  %21 = vst [vmem:[#allocation2] sm:$0x1] %v20
  $region1: #{duel_dqn_forward.1} parent=0
    #allocation3 [shape = 'u8[663552]{0}', space=vmem, size = 0xa2000, scoped, tag = 'input window, operand 0']
    loop: start=0, step=1, limit=4
    $region2: #{duel_dqn_forward.1} parent=1 // loop_pre_header
      _
    $region3: #{duel_dqn_forward.1} parent=1 // loop_header
      %s23 = sphi 0, %s27
      %p24 = scmp.ge.s32.totalorder %s23, 4
      %s33 = sphi 0, %s35
      %s36 = sphi 0, %s33
      %s37 = sphi 0, %s36
      %s53 = sphi 0, %s37
      %s57 = sphi 0, %s57
      %s59 = sphi 0, %s57
      %s60 = sphi 0, %s59
      %s74 = sphi 0, %s60
      %s78 = sphi 0, %s78
      %s80 = sphi 0, %s78
      %s81 = sphi 0, %s80
      %s95 = sphi 0, %s81
      %s99 = sphi 0, %s99
      %s101 = sphi 0, %s99
      %s102 = sphi 0, %s101
      %s116 = sphi 0, %s102
      %s120 = sphi 0, %s120
      %s122 = sphi 0, %s120
      %s123 = sphi 0, %s122
      %s137 = sphi 0, %s123
      %s141 = sphi 0, %s141
      %s143 = sphi 0, %s141
      %s144 = sphi 0, %s143
      %s158 = sphi 0, %s144
      %s162 = sphi 0, %s162
      %s164 = sphi 0, %s162
      %s165 = sphi 0, %s164
      %s179 = sphi 0, %s165
      %s183 = sphi 0, %s183
      %s185 = sphi 0, %s183
      %s186 = sphi 0, %s185
      %s200 = sphi 0, %s186
      %s204 = sphi 0, %s204
      %s206 = sphi 0, %s204
      %s207 = sphi 0, %s206
      %s221 = sphi 0, %s207
      %s225 = sphi 0, %s225
      %s227 = sphi 0, %s225
      %s228 = sphi 0, %s227
      %s242 = sphi 0, %s228
      %s246 = sphi 0, %s246
      %s248 = sphi 0, %s246
      %s249 = sphi 0, %s248
      %s263 = sphi 0, %s249
      %s267 = sphi 0, %s267
      %s269 = sphi 0, %s267
      %s270 = sphi 0, %s269
      %s284 = sphi 0, %s270
      %s288 = sphi 0, %s288
      %s290 = sphi 0, %s288
      %s291 = sphi 0, %s290
      %s305 = sphi 0, %s291
      %s309 = sphi 0, %s309
      %s311 = sphi 0, %s309
      %s312 = sphi 0, %s311
      %s326 = sphi 0, %s312
      %s330 = sphi 0, %s330
      %s332 = sphi 0, %s330
      %s333 = sphi 0, %s332
      %s347 = sphi 0, %s333
      %s353 = sphi 0, %s355
      %s356 = sphi 0, %s353
      %s357 = sphi 0, %s356
      %s373 = sphi 0, %s357
    $region4: #{duel_dqn_forward.1} parent=1 // loop_header_branch
      %26 = sbr.rel (%p24) target = $region8
    $region5: #{duel_dqn_forward.1} parent=1 // loop_body
      %s28 = ssub.s32 %s23, 1
      %s29 = ssub.s32 %s23, 2
      %s30 = sadd.s32 %s23, 1
      %s31 = ssub.s32 %s23, %s30
      %p32 = scmp.eq.s32.totalorder %s31, 0
      %s34 = sadd.s32 %s33, 1
      %s35 = scalar_select %p32, %s33, %s34
      %p38 = pneg %p32
      %p39 = scmp.eq.s32.totalorder %s23, 1
      %p40 = por %p38, %p39
      %p41 = scmp.ne.s32.totalorder %s33, %s36
      %p42 = scmp.eq.s32.totalorder %s23, 0
      %p43 = por %p41, %p42
      %p44 = scmp.ne.s32.totalorder %s33, %s36
      %p45 = scmp.eq.s32.totalorder %s28, 1
      %p46 = por %p44, %p45
      %p47 = scmp.ne.s32.totalorder %s36, %s37
      %p48 = scmp.eq.s32.totalorder %s28, 0
      %p49 = por %p47, %p48
      %p50 = scmp.ne.s32.totalorder %s36, %s37
      %p51 = scmp.eq.s32.totalorder %s29, 1
      %p52 = por %p50, %p51
      %p54 = scmp.ne.s32.totalorder %s37, %s53
      %p55 = scmp.eq.s32.totalorder %s29, 0
      %p56 = por %p54, %p55
      %s58 = sadd.s32 %s57, 1
      %p61 = scmp.eq.s32.totalorder %s23, 1
      %p62 = scmp.ne.s32.totalorder %s57, %s59
      %p63 = scmp.eq.s32.totalorder %s23, 0
      %p64 = por %p62, %p63
      %p65 = scmp.ne.s32.totalorder %s57, %s59
      %p66 = scmp.eq.s32.totalorder %s28, 1
      %p67 = por %p65, %p66
      %p68 = scmp.ne.s32.totalorder %s59, %s60
      %p69 = scmp.eq.s32.totalorder %s28, 0
      %p70 = por %p68, %p69
      %p71 = scmp.ne.s32.totalorder %s59, %s60
      %p72 = scmp.eq.s32.totalorder %s29, 1
      %p73 = por %p71, %p72
      %p75 = scmp.ne.s32.totalorder %s60, %s74
      %p76 = scmp.eq.s32.totalorder %s29, 0
      %p77 = por %p75, %p76
      %s79 = sadd.s32 %s78, 1
      %p82 = scmp.eq.s32.totalorder %s23, 1
      %p83 = scmp.ne.s32.totalorder %s78, %s80
      %p84 = scmp.eq.s32.totalorder %s23, 0
      %p85 = por %p83, %p84
      %p86 = scmp.ne.s32.totalorder %s78, %s80
      %p87 = scmp.eq.s32.totalorder %s28, 1
      %p88 = por %p86, %p87
      %p89 = scmp.ne.s32.totalorder %s80, %s81
      %p90 = scmp.eq.s32.totalorder %s28, 0
      %p91 = por %p89, %p90
      %p92 = scmp.ne.s32.totalorder %s80, %s81
      %p93 = scmp.eq.s32.totalorder %s29, 1
      %p94 = por %p92, %p93
      %p96 = scmp.ne.s32.totalorder %s81, %s95
      %p97 = scmp.eq.s32.totalorder %s29, 0
      %p98 = por %p96, %p97
      %s100 = sadd.s32 %s99, 1
      %p103 = scmp.eq.s32.totalorder %s23, 1
      %p104 = scmp.ne.s32.totalorder %s99, %s101
      %p105 = scmp.eq.s32.totalorder %s23, 0
      %p106 = por %p104, %p105
      %p107 = scmp.ne.s32.totalorder %s99, %s101
      %p108 = scmp.eq.s32.totalorder %s28, 1
      %p109 = por %p107, %p108
      %p110 = scmp.ne.s32.totalorder %s101, %s102
      %p111 = scmp.eq.s32.totalorder %s28, 0
      %p112 = por %p110, %p111
      %p113 = scmp.ne.s32.totalorder %s101, %s102
      %p114 = scmp.eq.s32.totalorder %s29, 1
      %p115 = por %p113, %p114
      %p117 = scmp.ne.s32.totalorder %s102, %s116
      %p118 = scmp.eq.s32.totalorder %s29, 0
      %p119 = por %p117, %p118
      %s121 = sadd.s32 %s120, 1
      %p124 = scmp.eq.s32.totalorder %s23, 1
      %p125 = scmp.ne.s32.totalorder %s120, %s122
      %p126 = scmp.eq.s32.totalorder %s23, 0
      %p127 = por %p125, %p126
      %p128 = scmp.ne.s32.totalorder %s120, %s122
      %p129 = scmp.eq.s32.totalorder %s28, 1
      %p130 = por %p128, %p129
      %p131 = scmp.ne.s32.totalorder %s122, %s123
      %p132 = scmp.eq.s32.totalorder %s28, 0
      %p133 = por %p131, %p132
      %p134 = scmp.ne.s32.totalorder %s122, %s123
      %p135 = scmp.eq.s32.totalorder %s29, 1
      %p136 = por %p134, %p135
      %p138 = scmp.ne.s32.totalorder %s123, %s137
      %p139 = scmp.eq.s32.totalorder %s29, 0
      %p140 = por %p138, %p139
      %s142 = sadd.s32 %s141, 1
      %p145 = scmp.eq.s32.totalorder %s23, 1
      %p146 = scmp.ne.s32.totalorder %s141, %s143
      %p147 = scmp.eq.s32.totalorder %s23, 0
      %p148 = por %p146, %p147
      %p149 = scmp.ne.s32.totalorder %s141, %s143
      %p150 = scmp.eq.s32.totalorder %s28, 1
      %p151 = por %p149, %p150
      %p152 = scmp.ne.s32.totalorder %s143, %s144
      %p153 = scmp.eq.s32.totalorder %s28, 0
      %p154 = por %p152, %p153
      %p155 = scmp.ne.s32.totalorder %s143, %s144
      %p156 = scmp.eq.s32.totalorder %s29, 1
      %p157 = por %p155, %p156
      %p159 = scmp.ne.s32.totalorder %s144, %s158
      %p160 = scmp.eq.s32.totalorder %s29, 0
      %p161 = por %p159, %p160
      %s163 = sadd.s32 %s162, 1
      %p166 = scmp.eq.s32.totalorder %s23, 1
      %p167 = scmp.ne.s32.totalorder %s162, %s164
      %p168 = scmp.eq.s32.totalorder %s23, 0
      %p169 = por %p167, %p168
      %p170 = scmp.ne.s32.totalorder %s162, %s164
      %p171 = scmp.eq.s32.totalorder %s28, 1
      %p172 = por %p170, %p171
      %p173 = scmp.ne.s32.totalorder %s164, %s165
      %p174 = scmp.eq.s32.totalorder %s28, 0
      %p175 = por %p173, %p174
      %p176 = scmp.ne.s32.totalorder %s164, %s165
      %p177 = scmp.eq.s32.totalorder %s29, 1
      %p178 = por %p176, %p177
      %p180 = scmp.ne.s32.totalorder %s165, %s179
      %p181 = scmp.eq.s32.totalorder %s29, 0
      %p182 = por %p180, %p181
      %s184 = sadd.s32 %s183, 1
      %p187 = scmp.eq.s32.totalorder %s23, 1
      %p188 = scmp.ne.s32.totalorder %s183, %s185
      %p189 = scmp.eq.s32.totalorder %s23, 0
      %p190 = por %p188, %p189
      %p191 = scmp.ne.s32.totalorder %s183, %s185
      %p192 = scmp.eq.s32.totalorder %s28, 1
      %p193 = por %p191, %p192
      %p194 = scmp.ne.s32.totalorder %s185, %s186
      %p195 = scmp.eq.s32.totalorder %s28, 0
      %p196 = por %p194, %p195
      %p197 = scmp.ne.s32.totalorder %s185, %s186
      %p198 = scmp.eq.s32.totalorder %s29, 1
      %p199 = por %p197, %p198
      %p201 = scmp.ne.s32.totalorder %s186, %s200
      %p202 = scmp.eq.s32.totalorder %s29, 0
      %p203 = por %p201, %p202
      %s205 = sadd.s32 %s204, 1
      %p208 = scmp.eq.s32.totalorder %s23, 1
      %p209 = scmp.ne.s32.totalorder %s204, %s206
      %p210 = scmp.eq.s32.totalorder %s23, 0
      %p211 = por %p209, %p210
      %p212 = scmp.ne.s32.totalorder %s204, %s206
      %p213 = scmp.eq.s32.totalorder %s28, 1
      %p214 = por %p212, %p213
      %p215 = scmp.ne.s32.totalorder %s206, %s207
      %p216 = scmp.eq.s32.totalorder %s28, 0
      %p217 = por %p215, %p216
      %p218 = scmp.ne.s32.totalorder %s206, %s207
      %p219 = scmp.eq.s32.totalorder %s29, 1
      %p220 = por %p218, %p219
      %p222 = scmp.ne.s32.totalorder %s207, %s221
      %p223 = scmp.eq.s32.totalorder %s29, 0
      %p224 = por %p222, %p223
      %s226 = sadd.s32 %s225, 1
      %p229 = scmp.eq.s32.totalorder %s23, 1
      %p230 = scmp.ne.s32.totalorder %s225, %s227
      %p231 = scmp.eq.s32.totalorder %s23, 0
      %p232 = por %p230, %p231
      %p233 = scmp.ne.s32.totalorder %s225, %s227
      %p234 = scmp.eq.s32.totalorder %s28, 1
      %p235 = por %p233, %p234
      %p236 = scmp.ne.s32.totalorder %s227, %s228
      %p237 = scmp.eq.s32.totalorder %s28, 0
      %p238 = por %p236, %p237
      %p239 = scmp.ne.s32.totalorder %s227, %s228
      %p240 = scmp.eq.s32.totalorder %s29, 1
      %p241 = por %p239, %p240
      %p243 = scmp.ne.s32.totalorder %s228, %s242
      %p244 = scmp.eq.s32.totalorder %s29, 0
      %p245 = por %p243, %p244
      %s247 = sadd.s32 %s246, 1
      %p250 = scmp.eq.s32.totalorder %s23, 1
      %p251 = scmp.ne.s32.totalorder %s246, %s248
      %p252 = scmp.eq.s32.totalorder %s23, 0
      %p253 = por %p251, %p252
      %p254 = scmp.ne.s32.totalorder %s246, %s248
      %p255 = scmp.eq.s32.totalorder %s28, 1
      %p256 = por %p254, %p255
      %p257 = scmp.ne.s32.totalorder %s248, %s249
      %p258 = scmp.eq.s32.totalorder %s28, 0
      %p259 = por %p257, %p258
      %p260 = scmp.ne.s32.totalorder %s248, %s249
      %p261 = scmp.eq.s32.totalorder %s29, 1
      %p262 = por %p260, %p261
      %p264 = scmp.ne.s32.totalorder %s249, %s263
      %p265 = scmp.eq.s32.totalorder %s29, 0
      %p266 = por %p264, %p265
      %s268 = sadd.s32 %s267, 1
      %p271 = scmp.eq.s32.totalorder %s23, 1
      %p272 = scmp.ne.s32.totalorder %s267, %s269
      %p273 = scmp.eq.s32.totalorder %s23, 0
      %p274 = por %p272, %p273
      %p275 = scmp.ne.s32.totalorder %s267, %s269
      %p276 = scmp.eq.s32.totalorder %s28, 1
      %p277 = por %p275, %p276
      %p278 = scmp.ne.s32.totalorder %s269, %s270
      %p279 = scmp.eq.s32.totalorder %s28, 0
      %p280 = por %p278, %p279
      %p281 = scmp.ne.s32.totalorder %s269, %s270
      %p282 = scmp.eq.s32.totalorder %s29, 1
      %p283 = por %p281, %p282
      %p285 = scmp.ne.s32.totalorder %s270, %s284
      %p286 = scmp.eq.s32.totalorder %s29, 0
      %p287 = por %p285, %p286
      %s289 = sadd.s32 %s288, 1
      %p292 = scmp.eq.s32.totalorder %s23, 1
      %p293 = scmp.ne.s32.totalorder %s288, %s290
      %p294 = scmp.eq.s32.totalorder %s23, 0
      %p295 = por %p293, %p294
      %p296 = scmp.ne.s32.totalorder %s288, %s290
      %p297 = scmp.eq.s32.totalorder %s28, 1
      %p298 = por %p296, %p297
      %p299 = scmp.ne.s32.totalorder %s290, %s291
      %p300 = scmp.eq.s32.totalorder %s28, 0
      %p301 = por %p299, %p300
      %p302 = scmp.ne.s32.totalorder %s290, %s291
      %p303 = scmp.eq.s32.totalorder %s29, 1
      %p304 = por %p302, %p303
      %p306 = scmp.ne.s32.totalorder %s291, %s305
      %p307 = scmp.eq.s32.totalorder %s29, 0
      %p308 = por %p306, %p307
      %s310 = sadd.s32 %s309, 1
      %p313 = scmp.eq.s32.totalorder %s23, 1
      %p314 = scmp.ne.s32.totalorder %s309, %s311
      %p315 = scmp.eq.s32.totalorder %s23, 0
      %p316 = por %p314, %p315
      %p317 = scmp.ne.s32.totalorder %s309, %s311
      %p318 = scmp.eq.s32.totalorder %s28, 1
      %p319 = por %p317, %p318
      %p320 = scmp.ne.s32.totalorder %s311, %s312
      %p321 = scmp.eq.s32.totalorder %s28, 0
      %p322 = por %p320, %p321
      %p323 = scmp.ne.s32.totalorder %s311, %s312
      %p324 = scmp.eq.s32.totalorder %s29, 1
      %p325 = por %p323, %p324
      %p327 = scmp.ne.s32.totalorder %s312, %s326
      %p328 = scmp.eq.s32.totalorder %s29, 0
      %p329 = por %p327, %p328
      %s331 = sadd.s32 %s330, 1
      %p334 = scmp.eq.s32.totalorder %s23, 1
      %p335 = scmp.ne.s32.totalorder %s330, %s332
      %p336 = scmp.eq.s32.totalorder %s23, 0
      %p337 = por %p335, %p336
      %p338 = scmp.ne.s32.totalorder %s330, %s332
      %p339 = scmp.eq.s32.totalorder %s28, 1
      %p340 = por %p338, %p339
      %p341 = scmp.ne.s32.totalorder %s332, %s333
      %p342 = scmp.eq.s32.totalorder %s28, 0
      %p343 = por %p341, %p342
      %p344 = scmp.ne.s32.totalorder %s332, %s333
      %p345 = scmp.eq.s32.totalorder %s29, 1
      %p346 = por %p344, %p345
      %p348 = scmp.ne.s32.totalorder %s333, %s347
      %p349 = scmp.eq.s32.totalorder %s29, 0
      %p350 = por %p348, %p349
      %s351 = ssub.s32 %s23, %s30
      %p352 = scmp.eq.s32.totalorder %s351, 0
      %s354 = sadd.s32 %s353, 1
      %s355 = scalar_select %p352, %s353, %s354
      %p358 = pneg %p352
      %p359 = scmp.eq.s32.totalorder %s23, 1
      %p360 = por %p358, %p359
      %p361 = scmp.ne.s32.totalorder %s353, %s356
      %p362 = scmp.eq.s32.totalorder %s23, 0
      %p363 = por %p361, %p362
      %p364 = scmp.ne.s32.totalorder %s353, %s356
      %p365 = scmp.eq.s32.totalorder %s28, 1
      %p366 = por %p364, %p365
      %p367 = scmp.ne.s32.totalorder %s356, %s357
      %p368 = scmp.eq.s32.totalorder %s28, 0
      %p369 = por %p367, %p368
      %p370 = scmp.ne.s32.totalorder %s356, %s357
      %p371 = scmp.eq.s32.totalorder %s29, 1
      %p372 = por %p370, %p371
      %p374 = scmp.ne.s32.totalorder %s357, %s373
      %p375 = scmp.eq.s32.totalorder %s29, 0
      %p376 = por %p374, %p375
      %p377 = scmp.le.s32.totalorder 1, %s23
      %p378 = scmp.lt.s32.totalorder %s23, 3
      %p379 = pnand %p377, %p378
      %p380 = pneg %p379
      // Predicated region
      $region9: #{duel_dqn_forward.1} parent=5 // pred_check
        _
      $region10: #{duel_dqn_forward.1} parent=5 // pred_check_branch
        %382 = sbr.rel (%p379) target = $region12
      $region11: #{duel_dqn_forward.1} parent=5 // pred_region
        %s383 = ssub.s32 %s23, 1
        // Predicated region
        $region13: #{duel_dqn_forward.1} parent=11 // pred_check
          %p384 = pneg %p70
        $region14: #{duel_dqn_forward.1} parent=11 // pred_check_branch
          %386 = sbr.rel (%p384) target = $region16
        $region15: #{duel_dqn_forward.1} parent=11 // pred_region
          _
        $region16: #{duel_dqn_forward.1} parent=11 // pred_fallthru
          _
        // Predicated region
        $region17: #{duel_dqn_forward.1} parent=11 // pred_check
          %p387 = pneg %p91
        $region18: #{duel_dqn_forward.1} parent=11 // pred_check_branch
          %389 = sbr.rel (%p387) target = $region20
        $region19: #{duel_dqn_forward.1} parent=11 // pred_region
          _
        $region20: #{duel_dqn_forward.1} parent=11 // pred_fallthru
          _
        // Predicated region
        $region21: #{duel_dqn_forward.1} parent=11 // pred_check
          %p390 = pneg %p112
        $region22: #{duel_dqn_forward.1} parent=11 // pred_check_branch
          %392 = sbr.rel (%p390) target = $region24
        $region23: #{duel_dqn_forward.1} parent=11 // pred_region
          _
        $region24: #{duel_dqn_forward.1} parent=11 // pred_fallthru
          _
        // Predicated region
        $region25: #{duel_dqn_forward.1} parent=11 // pred_check
          %p393 = pneg %p133
        $region26: #{duel_dqn_forward.1} parent=11 // pred_check_branch
          %395 = sbr.rel (%p393) target = $region28
        $region27: #{duel_dqn_forward.1} parent=11 // pred_region
          _
        $region28: #{duel_dqn_forward.1} parent=11 // pred_fallthru
          _
        // Predicated region
        $region29: #{duel_dqn_forward.1} parent=11 // pred_check
          %p396 = pneg %p154
        $region30: #{duel_dqn_forward.1} parent=11 // pred_check_branch
          %398 = sbr.rel (%p396) target = $region32
        $region31: #{duel_dqn_forward.1} parent=11 // pred_region
          _
        $region32: #{duel_dqn_forward.1} parent=11 // pred_fallthru
          _
        // Predicated region
        $region33: #{duel_dqn_forward.1} parent=11 // pred_check
          %p399 = pneg %p175
        $region34: #{duel_dqn_forward.1} parent=11 // pred_check_branch
          %401 = sbr.rel (%p399) target = $region36
        $region35: #{duel_dqn_forward.1} parent=11 // pred_region
          _
        $region36: #{duel_dqn_forward.1} parent=11 // pred_fallthru
          _
        // Predicated region
        $region37: #{duel_dqn_forward.1} parent=11 // pred_check
          %p402 = pneg %p196
        $region38: #{duel_dqn_forward.1} parent=11 // pred_check_branch
          %404 = sbr.rel (%p402) target = $region40
        $region39: #{duel_dqn_forward.1} parent=11 // pred_region
          _
        $region40: #{duel_dqn_forward.1} parent=11 // pred_fallthru
          _
        // Predicated region
        $region41: #{duel_dqn_forward.1} parent=11 // pred_check
          %p405 = pneg %p217
        $region42: #{duel_dqn_forward.1} parent=11 // pred_check_branch
          %407 = sbr.rel (%p405) target = $region44
        $region43: #{duel_dqn_forward.1} parent=11 // pred_region
          _
        $region44: #{duel_dqn_forward.1} parent=11 // pred_fallthru
          _
        // Predicated region
        $region45: #{duel_dqn_forward.1} parent=11 // pred_check
          %p408 = pneg %p238
        $region46: #{duel_dqn_forward.1} parent=11 // pred_check_branch
          %410 = sbr.rel (%p408) target = $region48
        $region47: #{duel_dqn_forward.1} parent=11 // pred_region
          _
        $region48: #{duel_dqn_forward.1} parent=11 // pred_fallthru
          _
        // Predicated region
        $region49: #{duel_dqn_forward.1} parent=11 // pred_check
          %p411 = pneg %p259
        $region50: #{duel_dqn_forward.1} parent=11 // pred_check_branch
          %413 = sbr.rel (%p411) target = $region52
        $region51: #{duel_dqn_forward.1} parent=11 // pred_region
          _
        $region52: #{duel_dqn_forward.1} parent=11 // pred_fallthru
          _
        // Predicated region
        $region53: #{duel_dqn_forward.1} parent=11 // pred_check
          %p414 = pneg %p280
        $region54: #{duel_dqn_forward.1} parent=11 // pred_check_branch
          %416 = sbr.rel (%p414) target = $region56
        $region55: #{duel_dqn_forward.1} parent=11 // pred_region
          _
        $region56: #{duel_dqn_forward.1} parent=11 // pred_fallthru
          _
        // Predicated region
        $region57: #{duel_dqn_forward.1} parent=11 // pred_check
          %p417 = pneg %p301
        $region58: #{duel_dqn_forward.1} parent=11 // pred_check_branch
          %419 = sbr.rel (%p417) target = $region60
        $region59: #{duel_dqn_forward.1} parent=11 // pred_region
          _
        $region60: #{duel_dqn_forward.1} parent=11 // pred_fallthru
          _
        // Predicated region
        $region61: #{duel_dqn_forward.1} parent=11 // pred_check
          %p420 = pneg %p322
        $region62: #{duel_dqn_forward.1} parent=11 // pred_check_branch
          %422 = sbr.rel (%p420) target = $region64
        $region63: #{duel_dqn_forward.1} parent=11 // pred_region
          _
        $region64: #{duel_dqn_forward.1} parent=11 // pred_fallthru
          _
        // Predicated region
        $region65: #{duel_dqn_forward.1} parent=11 // pred_check
          %p423 = pneg %p343
        $region66: #{duel_dqn_forward.1} parent=11 // pred_check_branch
          %425 = sbr.rel (%p423) target = $region68
        $region67: #{duel_dqn_forward.1} parent=11 // pred_region
          _
        $region68: #{duel_dqn_forward.1} parent=11 // pred_fallthru
          _
      $region12: #{duel_dqn_forward.1} parent=5 // pred_fallthru
        _
      %p426 = scmp.lt.s32.totalorder %s23, 2
      // Predicated region
      $region69: #{duel_dqn_forward.1} parent=5 // pred_check
        %p427 = pneg %p426
      $region70: #{duel_dqn_forward.1} parent=5 // pred_check_branch
        %429 = sbr.rel (%p427) target = $region72
      $region71: #{duel_dqn_forward.1} parent=5 // pred_region
        // Predicated region
        $region73: #{duel_dqn_forward.1} parent=71 // pred_check
          %p430 = pneg %p43
        $region74: #{duel_dqn_forward.1} parent=71 // pred_check_branch
          %432 = sbr.rel (%p430) target = $region76
        $region75: #{duel_dqn_forward.1} parent=71 // pred_region
          %s433 = sand.u32 %s33, 1
          %s434 = sand.u32 %s33, 1
          %s435 = smul.addr %s434, 648
          %s436 = scalar_lea.vmem [#allocation3], %s435
          %s437 = smul.u32 2, %s23
          %s438 = smul.addr %s437, 4
          %s439 = scalar_lea.vmem %s0, %s438
          // Predicated region
          $region77: #{duel_dqn_forward.1} parent=75 // pred_check
            _
          $region78: #{duel_dqn_forward.1} parent=75 // pred_check_branch
            %441 = sbr.rel (0) target = $region80
          $region79: #{duel_dqn_forward.1} parent=75 // pred_region
            // Predicated region
            $region81: #{duel_dqn_forward.1} parent=79 // pred_check
              _
            $region82: #{duel_dqn_forward.1} parent=79 // pred_check_branch
              %443 = sbr.rel target = $region84
            $region83: #{duel_dqn_forward.1} parent=79 // pred_region
              // Predicated region
              $region96: #{duel_dqn_forward.1} parent=83 // pred_check
                _
              $region97: #{duel_dqn_forward.1} parent=83 // pred_check_branch
                %781 = sbr.rel (0) target = $region99
              $region98: #{duel_dqn_forward.1} parent=83 // pred_region
                loop: start=0, step=1, limit=1
                $region100: #{duel_dqn_forward.1} parent=98 // loop_pre_header
                  _
                $region101: #{duel_dqn_forward.1} parent=98 // loop_header
                  %s783 = sphi 0, %s787
                  %p784 = scmp.ge.s32.totalorder %s783, 1
                  %s788 = sphi %s439, %s439
                  %s789 = sphi %s436, %s436
                $region102: #{duel_dqn_forward.1} parent=98 // loop_header_branch
                  %786 = sbr.rel (%p784) target = $region106
                $region103: #{duel_dqn_forward.1} parent=98 // loop_body
                  _
                $region104: #{duel_dqn_forward.1} parent=98 // loop_footer
                  %s787 = sadd.s32 1, %s783
                $region105: #{duel_dqn_forward.1} parent=98 // loop_footer_branch
                  %782 = sbr.rel target = $region101
                $region106: #{duel_dqn_forward.1} parent=98 // loop_exit
                  _
                %s791 = ssub.s32 16, 1
                loop: start=0, step=1, limit=1
                $region107: #{duel_dqn_forward.1} parent=98 // loop_pre_header
                  _
                $region108: #{duel_dqn_forward.1} parent=98 // loop_header
                  %s793 = sphi 0, %s797
                  %p794 = scmp.ge.s32.totalorder %s793, 1
                  %s798 = sphi %s439, %s439
                  %s799 = sphi %s436, %s436
                $region109: #{duel_dqn_forward.1} parent=98 // loop_header_branch
                  %796 = sbr.rel (%p794) target = $region113
                $region110: #{duel_dqn_forward.1} parent=98 // loop_body
                  %v800 = vld [vmem:[%s798] sm:%s791]
                  %801 = vst [vmem:[%s799] sm:%s791] %v800
                  %v802 = vld [vmem:[%s798 + $0x4] sm:%s791]
                  %803 = vst [vmem:[%s799 + $0x4] sm:%s791] %v802
                  %v804 = vld [vmem:[%s798 + $0x10] sm:%s791]
                  %805 = vst [vmem:[%s799 + $0x8] sm:%s791] %v804
                  %v806 = vld [vmem:[%s798 + $0x14] sm:%s791]
                  %807 = vst [vmem:[%s799 + $0xc] sm:%s791] %v806
                  %v808 = vld [vmem:[%s798 + $0x20] sm:%s791]
                  %809 = vst [vmem:[%s799 + $0x10] sm:%s791] %v808
                  %v810 = vld [vmem:[%s798 + $0x24] sm:%s791]
                  %811 = vst [vmem:[%s799 + $0x14] sm:%s791] %v810
                  %v812 = vld [vmem:[%s798 + $0x30] sm:%s791]
                  %813 = vst [vmem:[%s799 + $0x18] sm:%s791] %v812
                  %v814 = vld [vmem:[%s798 + $0x34] sm:%s791]
                  %815 = vst [vmem:[%s799 + $0x1c] sm:%s791] %v814
                  %v816 = vld [vmem:[%s798 + $0x40] sm:%s791]
                  %817 = vst [vmem:[%s799 + $0x20] sm:%s791] %v816
                  %v818 = vld [vmem:[%s798 + $0x44] sm:%s791]
                  %819 = vst [vmem:[%s799 + $0x24] sm:%s791] %v818
                  %v820 = vld [vmem:[%s798 + $0x50] sm:%s791]
                  %821 = vst [vmem:[%s799 + $0x28] sm:%s791] %v820
                  %v822 = vld [vmem:[%s798 + $0x54] sm:%s791]
                  %823 = vst [vmem:[%s799 + $0x2c] sm:%s791] %v822
                  %v824 = vld [vmem:[%s798 + $0x60] sm:%s791]
                  %825 = vst [vmem:[%s799 + $0x30] sm:%s791] %v824
                  %v826 = vld [vmem:[%s798 + $0x64] sm:%s791]
                  %827 = vst [vmem:[%s799 + $0x34] sm:%s791] %v826
                  %v828 = vld [vmem:[%s798 + $0x70] sm:%s791]
                  %829 = vst [vmem:[%s799 + $0x38] sm:%s791] %v828
                  %v830 = vld [vmem:[%s798 + $0x74] sm:%s791]
                  %831 = vst [vmem:[%s799 + $0x3c] sm:%s791] %v830
                  %v832 = vld [vmem:[%s798 + $0x80] sm:%s791]
                  %833 = vst [vmem:[%s799 + $0x40] sm:%s791] %v832
                  %v834 = vld [vmem:[%s798 + $0x84] sm:%s791]
                  %835 = vst [vmem:[%s799 + $0x44] sm:%s791] %v834
                  %v836 = vld [vmem:[%s798 + $0x90] sm:%s791]
                  %837 = vst [vmem:[%s799 + $0x48] sm:%s791] %v836
                  %v838 = vld [vmem:[%s798 + $0x94] sm:%s791]
                  %839 = vst [vmem:[%s799 + $0x4c] sm:%s791] %v838
                  %v840 = vld [vmem:[%s798 + $0xa0] sm:%s791]
                  %841 = vst [vmem:[%s799 + $0x50] sm:%s791] %v840
                  %v842 = vld [vmem:[%s798 + $0xa4] sm:%s791]
                  %843 = vst [vmem:[%s799 + $0x54] sm:%s791] %v842
                  %v844 = vld [vmem:[%s798 + $0xb0] sm:%s791]
                  %845 = vst [vmem:[%s799 + $0x58] sm:%s791] %v844
                  %v846 = vld [vmem:[%s798 + $0xb4] sm:%s791]
                  %847 = vst [vmem:[%s799 + $0x5c] sm:%s791] %v846
                  %v848 = vld [vmem:[%s798 + $0xc0] sm:%s791]
                  %849 = vst [vmem:[%s799 + $0x60] sm:%s791] %v848
                  %v850 = vld [vmem:[%s798 + $0xc4] sm:%s791]
                  %851 = vst [vmem:[%s799 + $0x64] sm:%s791] %v850
                  %v852 = vld [vmem:[%s798 + $0xd0] sm:%s791]
                  %853 = vst [vmem:[%s799 + $0x68] sm:%s791] %v852
                  %v854 = vld [vmem:[%s798 + $0xd4] sm:%s791]
                  %855 = vst [vmem:[%s799 + $0x6c] sm:%s791] %v854
                  %v856 = vld [vmem:[%s798 + $0xe0] sm:%s791]
                  %857 = vst [vmem:[%s799 + $0x70] sm:%s791] %v856
                  %v858 = vld [vmem:[%s798 + $0xe4] sm:%s791]
                  %859 = vst [vmem:[%s799 + $0x74] sm:%s791] %v858
                  %v860 = vld [vmem:[%s798 + $0xf0] sm:%s791]
                  %861 = vst [vmem:[%s799 + $0x78] sm:%s791] %v860
                  %v862 = vld [vmem:[%s798 + $0xf4] sm:%s791]
                  %863 = vst [vmem:[%s799 + $0x7c] sm:%s791] %v862
                  %v864 = vld [vmem:[%s798 + $0x100] sm:%s791]
                  %865 = vst [vmem:[%s799 + $0x80] sm:%s791] %v864
                  %v866 = vld [vmem:[%s798 + $0x104] sm:%s791]
                  %867 = vst [vmem:[%s799 + $0x84] sm:%s791] %v866
                  %v868 = vld [vmem:[%s798 + $0x110] sm:%s791]
                  %869 = vst [vmem:[%s799 + $0x88] sm:%s791] %v868
                  %v870 = vld [vmem:[%s798 + $0x114] sm:%s791]
                  %871 = vst [vmem:[%s799 + $0x8c] sm:%s791] %v870
                  %v872 = vld [vmem:[%s798 + $0x120] sm:%s791]
                  %873 = vst [vmem:[%s799 + $0x90] sm:%s791] %v872
                  %v874 = vld [vmem:[%s798 + $0x124] sm:%s791]
                  %875 = vst [vmem:[%s799 + $0x94] sm:%s791] %v874
                  %v876 = vld [vmem:[%s798 + $0x130] sm:%s791]
                  %877 = vst [vmem:[%s799 + $0x98] sm:%s791] %v876
                  %v878 = vld [vmem:[%s798 + $0x134] sm:%s791]
                  %879 = vst [vmem:[%s799 + $0x9c] sm:%s791] %v878
                  %v880 = vld [vmem:[%s798 + $0x140] sm:%s791]
                  %881 = vst [vmem:[%s799 + $0xa0] sm:%s791] %v880
                  %v882 = vld [vmem:[%s798 + $0x144] sm:%s791]
                  %883 = vst [vmem:[%s799 + $0xa4] sm:%s791] %v882
                  %v884 = vld [vmem:[%s798 + $0x150] sm:%s791]
                  %885 = vst [vmem:[%s799 + $0xa8] sm:%s791] %v884
                  %v886 = vld [vmem:[%s798 + $0x154] sm:%s791]
                  %887 = vst [vmem:[%s799 + $0xac] sm:%s791] %v886
                  %v888 = vld [vmem:[%s798 + $0x160] sm:%s791]
                  %889 = vst [vmem:[%s799 + $0xb0] sm:%s791] %v888
                  %v890 = vld [vmem:[%s798 + $0x164] sm:%s791]
                  %891 = vst [vmem:[%s799 + $0xb4] sm:%s791] %v890
                  %v892 = vld [vmem:[%s798 + $0x170] sm:%s791]
                  %893 = vst [vmem:[%s799 + $0xb8] sm:%s791] %v892
                  %v894 = vld [vmem:[%s798 + $0x174] sm:%s791]
                  %895 = vst [vmem:[%s799 + $0xbc] sm:%s791] %v894
                  %v896 = vld [vmem:[%s798 + $0x180] sm:%s791]
                  %897 = vst [vmem:[%s799 + $0xc0] sm:%s791] %v896
                  %v898 = vld [vmem:[%s798 + $0x184] sm:%s791]
                  %899 = vst [vmem:[%s799 + $0xc4] sm:%s791] %v898
                  %v900 = vld [vmem:[%s798 + $0x190] sm:%s791]
                  %901 = vst [vmem:[%s799 + $0xc8] sm:%s791] %v900
                  %v902 = vld [vmem:[%s798 + $0x194] sm:%s791]
                  %903 = vst [vmem:[%s799 + $0xcc] sm:%s791] %v902
                  %v904 = vld [vmem:[%s798 + $0x1a0] sm:%s791]
                  %905 = vst [vmem:[%s799 + $0xd0] sm:%s791] %v904
                  %v906 = vld [vmem:[%s798 + $0x1a4] sm:%s791]
                  %907 = vst [vmem:[%s799 + $0xd4] sm:%s791] %v906
                  %v908 = vld [vmem:[%s798 + $0x1b0] sm:%s791]
                  %909 = vst [vmem:[%s799 + $0xd8] sm:%s791] %v908
                  %v910 = vld [vmem:[%s798 + $0x1b4] sm:%s791]
                  %911 = vst [vmem:[%s799 + $0xdc] sm:%s791] %v910
                  %v912 = vld [vmem:[%s798 + $0x1c0] sm:%s791]
                  %913 = vst [vmem:[%s799 + $0xe0] sm:%s791] %v912
                  %v914 = vld [vmem:[%s798 + $0x1c4] sm:%s791]
                  %915 = vst [vmem:[%s799 + $0xe4] sm:%s791] %v914
                  %v916 = vld [vmem:[%s798 + $0x1d0] sm:%s791]
                  %917 = vst [vmem:[%s799 + $0xe8] sm:%s791] %v916
                  %v918 = vld [vmem:[%s798 + $0x1d4] sm:%s791]
                  %919 = vst [vmem:[%s799 + $0xec] sm:%s791] %v918
                  %v920 = vld [vmem:[%s798 + $0x1e0] sm:%s791]
                  %921 = vst [vmem:[%s799 + $0xf0] sm:%s791] %v920
                  %v922 = vld [vmem:[%s798 + $0x1e4] sm:%s791]
                  %923 = vst [vmem:[%s799 + $0xf4] sm:%s791] %v922
                  %v924 = vld [vmem:[%s798 + $0x1f0] sm:%s791]
                  %925 = vst [vmem:[%s799 + $0xf8] sm:%s791] %v924
                  %v926 = vld [vmem:[%s798 + $0x1f4] sm:%s791]
                  %927 = vst [vmem:[%s799 + $0xfc] sm:%s791] %v926
                  %v928 = vld [vmem:[%s798 + $0x200] sm:%s791]
                  %929 = vst [vmem:[%s799 + $0x100] sm:%s791] %v928
                  %v930 = vld [vmem:[%s798 + $0x204] sm:%s791]
                  %931 = vst [vmem:[%s799 + $0x104] sm:%s791] %v930
                  %v932 = vld [vmem:[%s798 + $0x210] sm:%s791]
                  %933 = vst [vmem:[%s799 + $0x108] sm:%s791] %v932
                  %v934 = vld [vmem:[%s798 + $0x214] sm:%s791]
                  %935 = vst [vmem:[%s799 + $0x10c] sm:%s791] %v934
                  %v936 = vld [vmem:[%s798 + $0x220] sm:%s791]
                  %937 = vst [vmem:[%s799 + $0x110] sm:%s791] %v936
                  %v938 = vld [vmem:[%s798 + $0x224] sm:%s791]
                  %939 = vst [vmem:[%s799 + $0x114] sm:%s791] %v938
                  %v940 = vld [vmem:[%s798 + $0x230] sm:%s791]
                  %941 = vst [vmem:[%s799 + $0x118] sm:%s791] %v940
                  %v942 = vld [vmem:[%s798 + $0x234] sm:%s791]
                  %943 = vst [vmem:[%s799 + $0x11c] sm:%s791] %v942
                  %v944 = vld [vmem:[%s798 + $0x240] sm:%s791]
                  %945 = vst [vmem:[%s799 + $0x120] sm:%s791] %v944
                  %v946 = vld [vmem:[%s798 + $0x244] sm:%s791]
                  %947 = vst [vmem:[%s799 + $0x124] sm:%s791] %v946
                  %v948 = vld [vmem:[%s798 + $0x250] sm:%s791]
                  %949 = vst [vmem:[%s799 + $0x128] sm:%s791] %v948
                  %v950 = vld [vmem:[%s798 + $0x254] sm:%s791]
                  %951 = vst [vmem:[%s799 + $0x12c] sm:%s791] %v950
                  %v952 = vld [vmem:[%s798 + $0x260] sm:%s791]
                  %953 = vst [vmem:[%s799 + $0x130] sm:%s791] %v952
                  %v954 = vld [vmem:[%s798 + $0x264] sm:%s791]
                  %955 = vst [vmem:[%s799 + $0x134] sm:%s791] %v954
                  %v956 = vld [vmem:[%s798 + $0x270] sm:%s791]
                  %957 = vst [vmem:[%s799 + $0x138] sm:%s791] %v956
                  %v958 = vld [vmem:[%s798 + $0x274] sm:%s791]
                  %959 = vst [vmem:[%s799 + $0x13c] sm:%s791] %v958
                  %v960 = vld [vmem:[%s798 + $0x280] sm:%s791]
                  %961 = vst [vmem:[%s799 + $0x140] sm:%s791] %v960
                  %v962 = vld [vmem:[%s798 + $0x284] sm:%s791]
                  %963 = vst [vmem:[%s799 + $0x144] sm:%s791] %v962
                  %v964 = vld [vmem:[%s798 + $0x290] sm:%s791]
                  %965 = vst [vmem:[%s799 + $0x148] sm:%s791] %v964
                  %v966 = vld [vmem:[%s798 + $0x294] sm:%s791]
                  %967 = vst [vmem:[%s799 + $0x14c] sm:%s791] %v966
                  %v968 = vld [vmem:[%s798 + $0x2a0] sm:%s791]
                  %969 = vst [vmem:[%s799 + $0x150] sm:%s791] %v968
                  %v970 = vld [vmem:[%s798 + $0x2a4] sm:%s791]
                  %971 = vst [vmem:[%s799 + $0x154] sm:%s791] %v970
                  %v972 = vld [vmem:[%s798 + $0x2b0] sm:%s791]
                  %973 = vst [vmem:[%s799 + $0x158] sm:%s791] %v972
                  %v974 = vld [vmem:[%s798 + $0x2b4] sm:%s791]
                  %975 = vst [vmem:[%s799 + $0x15c] sm:%s791] %v974
                  %v976 = vld [vmem:[%s798 + $0x2c0] sm:%s791]
                  %977 = vst [vmem:[%s799 + $0x160] sm:%s791] %v976
                  %v978 = vld [vmem:[%s798 + $0x2c4] sm:%s791]
                  %979 = vst [vmem:[%s799 + $0x164] sm:%s791] %v978
                  %v980 = vld [vmem:[%s798 + $0x2d0] sm:%s791]
                  %981 = vst [vmem:[%s799 + $0x168] sm:%s791] %v980
                  %v982 = vld [vmem:[%s798 + $0x2d4] sm:%s791]
                  %983 = vst [vmem:[%s799 + $0x16c] sm:%s791] %v982
                  %v984 = vld [vmem:[%s798 + $0x2e0] sm:%s791]
                  %985 = vst [vmem:[%s799 + $0x170] sm:%s791] %v984
                  %v986 = vld [vmem:[%s798 + $0x2e4] sm:%s791]
                  %987 = vst [vmem:[%s799 + $0x174] sm:%s791] %v986
                  %v988 = vld [vmem:[%s798 + $0x2f0] sm:%s791]
                  %989 = vst [vmem:[%s799 + $0x178] sm:%s791] %v988
                  %v990 = vld [vmem:[%s798 + $0x2f4] sm:%s791]
                  %991 = vst [vmem:[%s799 + $0x17c] sm:%s791] %v990
                  %v992 = vld [vmem:[%s798 + $0x300] sm:%s791]
                  %993 = vst [vmem:[%s799 + $0x180] sm:%s791] %v992
                  %v994 = vld [vmem:[%s798 + $0x304] sm:%s791]
                  %995 = vst [vmem:[%s799 + $0x184] sm:%s791] %v994
                  %v996 = vld [vmem:[%s798 + $0x310] sm:%s791]
                  %997 = vst [vmem:[%s799 + $0x188] sm:%s791] %v996
                  %v998 = vld [vmem:[%s798 + $0x314] sm:%s791]
                  %999 = vst [vmem:[%s799 + $0x18c] sm:%s791] %v998
                  %v1000 = vld [vmem:[%s798 + $0x320] sm:%s791]
                  %1001 = vst [vmem:[%s799 + $0x190] sm:%s791] %v1000
                  %v1002 = vld [vmem:[%s798 + $0x324] sm:%s791]
                  %1003 = vst [vmem:[%s799 + $0x194] sm:%s791] %v1002
                  %v1004 = vld [vmem:[%s798 + $0x330] sm:%s791]
                  %1005 = vst [vmem:[%s799 + $0x198] sm:%s791] %v1004
                  %v1006 = vld [vmem:[%s798 + $0x334] sm:%s791]
                  %1007 = vst [vmem:[%s799 + $0x19c] sm:%s791] %v1006
                  %v1008 = vld [vmem:[%s798 + $0x340] sm:%s791]
                  %1009 = vst [vmem:[%s799 + $0x1a0] sm:%s791] %v1008
                  %v1010 = vld [vmem:[%s798 + $0x344] sm:%s791]
                  %1011 = vst [vmem:[%s799 + $0x1a4] sm:%s791] %v1010
                  %v1012 = vld [vmem:[%s798 + $0x350] sm:%s791]
                  %1013 = vst [vmem:[%s799 + $0x1a8] sm:%s791] %v1012
                  %v1014 = vld [vmem:[%s798 + $0x354] sm:%s791]
                  %1015 = vst [vmem:[%s799 + $0x1ac] sm:%s791] %v1014
                  %v1016 = vld [vmem:[%s798 + $0x360] sm:%s791]
                  %1017 = vst [vmem:[%s799 + $0x1b0] sm:%s791] %v1016
                  %v1018 = vld [vmem:[%s798 + $0x364] sm:%s791]
                  %1019 = vst [vmem:[%s799 + $0x1b4] sm:%s791] %v1018
                  %v1020 = vld [vmem:[%s798 + $0x370] sm:%s791]
                  %1021 = vst [vmem:[%s799 + $0x1b8] sm:%s791] %v1020
                  %v1022 = vld [vmem:[%s798 + $0x374] sm:%s791]
                  %1023 = vst [vmem:[%s799 + $0x1bc] sm:%s791] %v1022
                  %v1024 = vld [vmem:[%s798 + $0x380] sm:%s791]
                  %1025 = vst [vmem:[%s799 + $0x1c0] sm:%s791] %v1024
                  %v1026 = vld [vmem:[%s798 + $0x384] sm:%s791]
                  %1027 = vst [vmem:[%s799 + $0x1c4] sm:%s791] %v1026
                  %v1028 = vld [vmem:[%s798 + $0x390] sm:%s791]
                  %1029 = vst [vmem:[%s799 + $0x1c8] sm:%s791] %v1028
                  %v1030 = vld [vmem:[%s798 + $0x394] sm:%s791]
                  %1031 = vst [vmem:[%s799 + $0x1cc] sm:%s791] %v1030
                  %v1032 = vld [vmem:[%s798 + $0x3a0] sm:%s791]
                  %1033 = vst [vmem:[%s799 + $0x1d0] sm:%s791] %v1032
                  %v1034 = vld [vmem:[%s798 + $0x3a4] sm:%s791]
                  %1035 = vst [vmem:[%s799 + $0x1d4] sm:%s791] %v1034
                  %v1036 = vld [vmem:[%s798 + $0x3b0] sm:%s791]
                  %1037 = vst [vmem:[%s799 + $0x1d8] sm:%s791] %v1036
                  %v1038 = vld [vmem:[%s798 + $0x3b4] sm:%s791]
                  %1039 = vst [vmem:[%s799 + $0x1dc] sm:%s791] %v1038
                  %v1040 = vld [vmem:[%s798 + $0x3c0] sm:%s791]
                  %1041 = vst [vmem:[%s799 + $0x1e0] sm:%s791] %v1040
                  %v1042 = vld [vmem:[%s798 + $0x3c4] sm:%s791]
                  %1043 = vst [vmem:[%s799 + $0x1e4] sm:%s791] %v1042
                  %v1044 = vld [vmem:[%s798 + $0x3d0] sm:%s791]
                  %1045 = vst [vmem:[%s799 + $0x1e8] sm:%s791] %v1044
                  %v1046 = vld [vmem:[%s798 + $0x3d4] sm:%s791]
                  %1047 = vst [vmem:[%s799 + $0x1ec] sm:%s791] %v1046
                  %v1048 = vld [vmem:[%s798 + $0x3e0] sm:%s791]
                  %1049 = vst [vmem:[%s799 + $0x1f0] sm:%s791] %v1048
                  %v1050 = vld [vmem:[%s798 + $0x3e4] sm:%s791]
                  %1051 = vst [vmem:[%s799 + $0x1f4] sm:%s791] %v1050
                  %v1052 = vld [vmem:[%s798 + $0x3f0] sm:%s791]
                  %1053 = vst [vmem:[%s799 + $0x1f8] sm:%s791] %v1052
                  %v1054 = vld [vmem:[%s798 + $0x3f4] sm:%s791]
                  %1055 = vst [vmem:[%s799 + $0x1fc] sm:%s791] %v1054
                  %v1056 = vld [vmem:[%s798 + $0x400] sm:%s791]
                  %1057 = vst [vmem:[%s799 + $0x200] sm:%s791] %v1056
                  %v1058 = vld [vmem:[%s798 + $0x404] sm:%s791]
                  %1059 = vst [vmem:[%s799 + $0x204] sm:%s791] %v1058
                  %v1060 = vld [vmem:[%s798 + $0x410] sm:%s791]
                  %1061 = vst [vmem:[%s799 + $0x208] sm:%s791] %v1060
                  %v1062 = vld [vmem:[%s798 + $0x414] sm:%s791]
                  %1063 = vst [vmem:[%s799 + $0x20c] sm:%s791] %v1062
                  %v1064 = vld [vmem:[%s798 + $0x420] sm:%s791]
                  %1065 = vst [vmem:[%s799 + $0x210] sm:%s791] %v1064
                  %v1066 = vld [vmem:[%s798 + $0x424] sm:%s791]
                  %1067 = vst [vmem:[%s799 + $0x214] sm:%s791] %v1066
                  %v1068 = vld [vmem:[%s798 + $0x430] sm:%s791]
                  %1069 = vst [vmem:[%s799 + $0x218] sm:%s791] %v1068
                  %v1070 = vld [vmem:[%s798 + $0x434] sm:%s791]
                  %1071 = vst [vmem:[%s799 + $0x21c] sm:%s791] %v1070
                  %v1072 = vld [vmem:[%s798 + $0x440] sm:%s791]
                  %1073 = vst [vmem:[%s799 + $0x220] sm:%s791] %v1072
                  %v1074 = vld [vmem:[%s798 + $0x444] sm:%s791]
                  %1075 = vst [vmem:[%s799 + $0x224] sm:%s791] %v1074
                  %v1076 = vld [vmem:[%s798 + $0x450] sm:%s791]
                  %1077 = vst [vmem:[%s799 + $0x228] sm:%s791] %v1076
                  %v1078 = vld [vmem:[%s798 + $0x454] sm:%s791]
                  %1079 = vst [vmem:[%s799 + $0x22c] sm:%s791] %v1078
                  %v1080 = vld [vmem:[%s798 + $0x460] sm:%s791]
                  %1081 = vst [vmem:[%s799 + $0x230] sm:%s791] %v1080
                  %v1082 = vld [vmem:[%s798 + $0x464] sm:%s791]
                  %1083 = vst [vmem:[%s799 + $0x234] sm:%s791] %v1082
                  %v1084 = vld [vmem:[%s798 + $0x470] sm:%s791]
                  %1085 = vst [vmem:[%s799 + $0x238] sm:%s791] %v1084
                  %v1086 = vld [vmem:[%s798 + $0x474] sm:%s791]
                  %1087 = vst [vmem:[%s799 + $0x23c] sm:%s791] %v1086
                  %v1088 = vld [vmem:[%s798 + $0x480] sm:%s791]
                  %1089 = vst [vmem:[%s799 + $0x240] sm:%s791] %v1088
                  %v1090 = vld [vmem:[%s798 + $0x484] sm:%s791]
                  %1091 = vst [vmem:[%s799 + $0x244] sm:%s791] %v1090
                  %v1092 = vld [vmem:[%s798 + $0x490] sm:%s791]
                  %1093 = vst [vmem:[%s799 + $0x248] sm:%s791] %v1092
                  %v1094 = vld [vmem:[%s798 + $0x494] sm:%s791]
                  %1095 = vst [vmem:[%s799 + $0x24c] sm:%s791] %v1094
                  %v1096 = vld [vmem:[%s798 + $0x4a0] sm:%s791]
                  %1097 = vst [vmem:[%s799 + $0x250] sm:%s791] %v1096
                  %v1098 = vld [vmem:[%s798 + $0x4a4] sm:%s791]
                  %1099 = vst [vmem:[%s799 + $0x254] sm:%s791] %v1098
                  %v1100 = vld [vmem:[%s798 + $0x4b0] sm:%s791]
                  %1101 = vst [vmem:[%s799 + $0x258] sm:%s791] %v1100
                  %v1102 = vld [vmem:[%s798 + $0x4b4] sm:%s791]
                  %1103 = vst [vmem:[%s799 + $0x25c] sm:%s791] %v1102
                  %v1104 = vld [vmem:[%s798 + $0x4c0] sm:%s791]
                  %1105 = vst [vmem:[%s799 + $0x260] sm:%s791] %v1104
                  %v1106 = vld [vmem:[%s798 + $0x4c4] sm:%s791]
                  %1107 = vst [vmem:[%s799 + $0x264] sm:%s791] %v1106
                  %v1108 = vld [vmem:[%s798 + $0x4d0] sm:%s791]
                  %1109 = vst [vmem:[%s799 + $0x268] sm:%s791] %v1108
                  %v1110 = vld [vmem:[%s798 + $0x4d4] sm:%s791]
                  %1111 = vst [vmem:[%s799 + $0x26c] sm:%s791] %v1110
                  %v1112 = vld [vmem:[%s798 + $0x4e0] sm:%s791]
                  %1113 = vst [vmem:[%s799 + $0x270] sm:%s791] %v1112
                  %v1114 = vld [vmem:[%s798 + $0x4e4] sm:%s791]
                  %1115 = vst [vmem:[%s799 + $0x274] sm:%s791] %v1114
                  %v1116 = vld [vmem:[%s798 + $0x4f0] sm:%s791]
                  %1117 = vst [vmem:[%s799 + $0x278] sm:%s791] %v1116
                  %v1118 = vld [vmem:[%s798 + $0x4f4] sm:%s791]
                  %1119 = vst [vmem:[%s799 + $0x27c] sm:%s791] %v1118
                  %v1120 = vld [vmem:[%s798 + $0x500] sm:%s791]
                  %1121 = vst [vmem:[%s799 + $0x280] sm:%s791] %v1120
                  %v1122 = vld [vmem:[%s798 + $0x504] sm:%s791]
                  %1123 = vst [vmem:[%s799 + $0x284] sm:%s791] %v1122
                $region111: #{duel_dqn_forward.1} parent=98 // loop_footer
                  %s797 = sadd.s32 1, %s793
                $region112: #{duel_dqn_forward.1} parent=98 // loop_footer_branch
                  %792 = sbr.rel target = $region108
                $region113: #{duel_dqn_forward.1} parent=98 // loop_exit
                  _
              $region99: #{duel_dqn_forward.1} parent=83 // pred_fallthru
                _
            $region84: #{duel_dqn_forward.1} parent=79 // pred_fallthru
              _
            // Predicated region
            $region85: #{duel_dqn_forward.1} parent=79 // pred_check
              _
            $region86: #{duel_dqn_forward.1} parent=79 // pred_check_branch
              %445 = sbr.rel (0) target = $region88
            $region87: #{duel_dqn_forward.1} parent=79 // pred_region
              %s447 = ssub.s32 16, 1
              loop: start=0, step=1, limit=1
              $region89: #{duel_dqn_forward.1} parent=87 // loop_pre_header
                _
              $region90: #{duel_dqn_forward.1} parent=87 // loop_header
                %s449 = sphi 0, %s453
                %p450 = scmp.ge.s32.totalorder %s449, 1
                %s454 = sphi %s439, %s439
                %s455 = sphi %s436, %s436
              $region91: #{duel_dqn_forward.1} parent=87 // loop_header_branch
                %452 = sbr.rel (%p450) target = $region95
              $region92: #{duel_dqn_forward.1} parent=87 // loop_body
                %v456 = vld [vmem:[%s454] sm:%s447]
                %457 = vst [vmem:[%s455] sm:%s447] %v456
                %v458 = vld [vmem:[%s454 + $0x4] sm:%s447]
                %459 = vst [vmem:[%s455 + $0x4] sm:%s447] %v458
                %v460 = vld [vmem:[%s454 + $0x10] sm:%s447]
                %461 = vst [vmem:[%s455 + $0x8] sm:%s447] %v460
                %v462 = vld [vmem:[%s454 + $0x14] sm:%s447]
                %463 = vst [vmem:[%s455 + $0xc] sm:%s447] %v462
                %v464 = vld [vmem:[%s454 + $0x20] sm:%s447]
                %465 = vst [vmem:[%s455 + $0x10] sm:%s447] %v464
                %v466 = vld [vmem:[%s454 + $0x24] sm:%s447]
                %467 = vst [vmem:[%s455 + $0x14] sm:%s447] %v466
                %v468 = vld [vmem:[%s454 + $0x30] sm:%s447]
                %469 = vst [vmem:[%s455 + $0x18] sm:%s447] %v468
                %v470 = vld [vmem:[%s454 + $0x34] sm:%s447]
                %471 = vst [vmem:[%s455 + $0x1c] sm:%s447] %v470
                %v472 = vld [vmem:[%s454 + $0x40] sm:%s447]
                %473 = vst [vmem:[%s455 + $0x20] sm:%s447] %v472
                %v474 = vld [vmem:[%s454 + $0x44] sm:%s447]
                %475 = vst [vmem:[%s455 + $0x24] sm:%s447] %v474
                %v476 = vld [vmem:[%s454 + $0x50] sm:%s447]
                %477 = vst [vmem:[%s455 + $0x28] sm:%s447] %v476
                %v478 = vld [vmem:[%s454 + $0x54] sm:%s447]
                %479 = vst [vmem:[%s455 + $0x2c] sm:%s447] %v478
                %v480 = vld [vmem:[%s454 + $0x60] sm:%s447]
                %481 = vst [vmem:[%s455 + $0x30] sm:%s447] %v480
                %v482 = vld [vmem:[%s454 + $0x64] sm:%s447]
                %483 = vst [vmem:[%s455 + $0x34] sm:%s447] %v482
                %v484 = vld [vmem:[%s454 + $0x70] sm:%s447]
                %485 = vst [vmem:[%s455 + $0x38] sm:%s447] %v484
                %v486 = vld [vmem:[%s454 + $0x74] sm:%s447]
                %487 = vst [vmem:[%s455 + $0x3c] sm:%s447] %v486
                %v488 = vld [vmem:[%s454 + $0x80] sm:%s447]
                %489 = vst [vmem:[%s455 + $0x40] sm:%s447] %v488
                %v490 = vld [vmem:[%s454 + $0x84] sm:%s447]
                %491 = vst [vmem:[%s455 + $0x44] sm:%s447] %v490
                %v492 = vld [vmem:[%s454 + $0x90] sm:%s447]
                %493 = vst [vmem:[%s455 + $0x48] sm:%s447] %v492
                %v494 = vld [vmem:[%s454 + $0x94] sm:%s447]
                %495 = vst [vmem:[%s455 + $0x4c] sm:%s447] %v494
                %v496 = vld [vmem:[%s454 + $0xa0] sm:%s447]
                %497 = vst [vmem:[%s455 + $0x50] sm:%s447] %v496
                %v498 = vld [vmem:[%s454 + $0xa4] sm:%s447]
                %499 = vst [vmem:[%s455 + $0x54] sm:%s447] %v498
                %v500 = vld [vmem:[%s454 + $0xb0] sm:%s447]
                %501 = vst [vmem:[%s455 + $0x58] sm:%s447] %v500
                %v502 = vld [vmem:[%s454 + $0xb4] sm:%s447]
                %503 = vst [vmem:[%s455 + $0x5c] sm:%s447] %v502
                %v504 = vld [vmem:[%s454 + $0xc0] sm:%s447]
                %505 = vst [vmem:[%s455 + $0x60] sm:%s447] %v504
                %v506 = vld [vmem:[%s454 + $0xc4] sm:%s447]
                %507 = vst [vmem:[%s455 + $0x64] sm:%s447] %v506
                %v508 = vld [vmem:[%s454 + $0xd0] sm:%s447]
                %509 = vst [vmem:[%s455 + $0x68] sm:%s447] %v508
                %v510 = vld [vmem:[%s454 + $0xd4] sm:%s447]
                %511 = vst [vmem:[%s455 + $0x6c] sm:%s447] %v510
                %v512 = vld [vmem:[%s454 + $0xe0] sm:%s447]
                %513 = vst [vmem:[%s455 + $0x70] sm:%s447] %v512
                %v514 = vld [vmem:[%s454 + $0xe4] sm:%s447]
                %515 = vst [vmem:[%s455 + $0x74] sm:%s447] %v514
                %v516 = vld [vmem:[%s454 + $0xf0] sm:%s447]
                %517 = vst [vmem:[%s455 + $0x78] sm:%s447] %v516
                %v518 = vld [vmem:[%s454 + $0xf4] sm:%s447]
                %519 = vst [vmem:[%s455 + $0x7c] sm:%s447] %v518
                %v520 = vld [vmem:[%s454 + $0x100] sm:%s447]
                %521 = vst [vmem:[%s455 + $0x80] sm:%s447] %v520
                %v522 = vld [vmem:[%s454 + $0x104] sm:%s447]
                %523 = vst [vmem:[%s455 + $0x84] sm:%s447] %v522
                %v524 = vld [vmem:[%s454 + $0x110] sm:%s447]
                %525 = vst [vmem:[%s455 + $0x88] sm:%s447] %v524
                %v526 = vld [vmem:[%s454 + $0x114] sm:%s447]
                %527 = vst [vmem:[%s455 + $0x8c] sm:%s447] %v526
                %v528 = vld [vmem:[%s454 + $0x120] sm:%s447]
                %529 = vst [vmem:[%s455 + $0x90] sm:%s447] %v528
                %v530 = vld [vmem:[%s454 + $0x124] sm:%s447]
                %531 = vst [vmem:[%s455 + $0x94] sm:%s447] %v530
                %v532 = vld [vmem:[%s454 + $0x130] sm:%s447]
                %533 = vst [vmem:[%s455 + $0x98] sm:%s447] %v532
                %v534 = vld [vmem:[%s454 + $0x134] sm:%s447]
                %535 = vst [vmem:[%s455 + $0x9c] sm:%s447] %v534
                %v536 = vld [vmem:[%s454 + $0x140] sm:%s447]
                %537 = vst [vmem:[%s455 + $0xa0] sm:%s447] %v536
                %v538 = vld [vmem:[%s454 + $0x144] sm:%s447]
                %539 = vst [vmem:[%s455 + $0xa4] sm:%s447] %v538
                %v540 = vld [vmem:[%s454 + $0x150] sm:%s447]
                %541 = vst [vmem:[%s455 + $0xa8] sm:%s447] %v540
                %v542 = vld [vmem:[%s454 + $0x154] sm:%s447]
                %543 = vst [vmem:[%s455 + $0xac] sm:%s447] %v542
                %v544 = vld [vmem:[%s454 + $0x160] sm:%s447]
                %545 = vst [vmem:[%s455 + $0xb0] sm:%s447] %v544
                %v546 = vld [vmem:[%s454 + $0x164] sm:%s447]
                %547 = vst [vmem:[%s455 + $0xb4] sm:%s447] %v546
                %v548 = vld [vmem:[%s454 + $0x170] sm:%s447]
                %549 = vst [vmem:[%s455 + $0xb8] sm:%s447] %v548
                %v550 = vld [vmem:[%s454 + $0x174] sm:%s447]
                %551 = vst [vmem:[%s455 + $0xbc] sm:%s447] %v550
                %v552 = vld [vmem:[%s454 + $0x180] sm:%s447]
                %553 = vst [vmem:[%s455 + $0xc0] sm:%s447] %v552
                %v554 = vld [vmem:[%s454 + $0x184] sm:%s447]
                %555 = vst [vmem:[%s455 + $0xc4] sm:%s447] %v554
                %v556 = vld [vmem:[%s454 + $0x190] sm:%s447]
                %557 = vst [vmem:[%s455 + $0xc8] sm:%s447] %v556
                %v558 = vld [vmem:[%s454 + $0x194] sm:%s447]
                %559 = vst [vmem:[%s455 + $0xcc] sm:%s447] %v558
                %v560 = vld [vmem:[%s454 + $0x1a0] sm:%s447]
                %561 = vst [vmem:[%s455 + $0xd0] sm:%s447] %v560
                %v562 = vld [vmem:[%s454 + $0x1a4] sm:%s447]
                %563 = vst [vmem:[%s455 + $0xd4] sm:%s447] %v562
                %v564 = vld [vmem:[%s454 + $0x1b0] sm:%s447]
                %565 = vst [vmem:[%s455 + $0xd8] sm:%s447] %v564
                %v566 = vld [vmem:[%s454 + $0x1b4] sm:%s447]
                %567 = vst [vmem:[%s455 + $0xdc] sm:%s447] %v566
                %v568 = vld [vmem:[%s454 + $0x1c0] sm:%s447]
                %569 = vst [vmem:[%s455 + $0xe0] sm:%s447] %v568
                %v570 = vld [vmem:[%s454 + $0x1c4] sm:%s447]
                %571 = vst [vmem:[%s455 + $0xe4] sm:%s447] %v570
                %v572 = vld [vmem:[%s454 + $0x1d0] sm:%s447]
                %573 = vst [vmem:[%s455 + $0xe8] sm:%s447] %v572
                %v574 = vld [vmem:[%s454 + $0x1d4] sm:%s447]
                %575 = vst [vmem:[%s455 + $0xec] sm:%s447] %v574
                %v576 = vld [vmem:[%s454 + $0x1e0] sm:%s447]
                %577 = vst [vmem:[%s455 + $0xf0] sm:%s447] %v576
                %v578 = vld [vmem:[%s454 + $0x1e4] sm:%s447]
                %579 = vst [vmem:[%s455 + $0xf4] sm:%s447] %v578
                %v580 = vld [vmem:[%s454 + $0x1f0] sm:%s447]
                %581 = vst [vmem:[%s455 + $0xf8] sm:%s447] %v580
                %v582 = vld [vmem:[%s454 + $0x1f4] sm:%s447]
                %583 = vst [vmem:[%s455 + $0xfc] sm:%s447] %v582
                %v584 = vld [vmem:[%s454 + $0x200] sm:%s447]
                %585 = vst [vmem:[%s455 + $0x100] sm:%s447] %v584
                %v586 = vld [vmem:[%s454 + $0x204] sm:%s447]
                %587 = vst [vmem:[%s455 + $0x104] sm:%s447] %v586
                %v588 = vld [vmem:[%s454 + $0x210] sm:%s447]
                %589 = vst [vmem:[%s455 + $0x108] sm:%s447] %v588
                %v590 = vld [vmem:[%s454 + $0x214] sm:%s447]
                %591 = vst [vmem:[%s455 + $0x10c] sm:%s447] %v590
                %v592 = vld [vmem:[%s454 + $0x220] sm:%s447]
                %593 = vst [vmem:[%s455 + $0x110] sm:%s447] %v592
                %v594 = vld [vmem:[%s454 + $0x224] sm:%s447]
                %595 = vst [vmem:[%s455 + $0x114] sm:%s447] %v594
                %v596 = vld [vmem:[%s454 + $0x230] sm:%s447]
                %597 = vst [vmem:[%s455 + $0x118] sm:%s447] %v596
                %v598 = vld [vmem:[%s454 + $0x234] sm:%s447]
                %599 = vst [vmem:[%s455 + $0x11c] sm:%s447] %v598
                %v600 = vld [vmem:[%s454 + $0x240] sm:%s447]
                %601 = vst [vmem:[%s455 + $0x120] sm:%s447] %v600
                %v602 = vld [vmem:[%s454 + $0x244] sm:%s447]
                %603 = vst [vmem:[%s455 + $0x124] sm:%s447] %v602
                %v604 = vld [vmem:[%s454 + $0x250] sm:%s447]
                %605 = vst [vmem:[%s455 + $0x128] sm:%s447] %v604
                %v606 = vld [vmem:[%s454 + $0x254] sm:%s447]
                %607 = vst [vmem:[%s455 + $0x12c] sm:%s447] %v606
                %v608 = vld [vmem:[%s454 + $0x260] sm:%s447]
                %609 = vst [vmem:[%s455 + $0x130] sm:%s447] %v608
                %v610 = vld [vmem:[%s454 + $0x264] sm:%s447]
                %611 = vst [vmem:[%s455 + $0x134] sm:%s447] %v610
                %v612 = vld [vmem:[%s454 + $0x270] sm:%s447]
                %613 = vst [vmem:[%s455 + $0x138] sm:%s447] %v612
                %v614 = vld [vmem:[%s454 + $0x274] sm:%s447]
                %615 = vst [vmem:[%s455 + $0x13c] sm:%s447] %v614
                %v616 = vld [vmem:[%s454 + $0x280] sm:%s447]
                %617 = vst [vmem:[%s455 + $0x140] sm:%s447] %v616
                %v618 = vld [vmem:[%s454 + $0x284] sm:%s447]
                %619 = vst [vmem:[%s455 + $0x144] sm:%s447] %v618
                %v620 = vld [vmem:[%s454 + $0x290] sm:%s447]
                %621 = vst [vmem:[%s455 + $0x148] sm:%s447] %v620
                %v622 = vld [vmem:[%s454 + $0x294] sm:%s447]
                %623 = vst [vmem:[%s455 + $0x14c] sm:%s447] %v622
                %v624 = vld [vmem:[%s454 + $0x2a0] sm:%s447]
                %625 = vst [vmem:[%s455 + $0x150] sm:%s447] %v624
                %v626 = vld [vmem:[%s454 + $0x2a4] sm:%s447]
                %627 = vst [vmem:[%s455 + $0x154] sm:%s447] %v626
                %v628 = vld [vmem:[%s454 + $0x2b0] sm:%s447]
                %629 = vst [vmem:[%s455 + $0x158] sm:%s447] %v628
                %v630 = vld [vmem:[%s454 + $0x2b4] sm:%s447]
                %631 = vst [vmem:[%s455 + $0x15c] sm:%s447] %v630
                %v632 = vld [vmem:[%s454 + $0x2c0] sm:%s447]
                %633 = vst [vmem:[%s455 + $0x160] sm:%s447] %v632
                %v634 = vld [vmem:[%s454 + $0x2c4] sm:%s447]
                %635 = vst [vmem:[%s455 + $0x164] sm:%s447] %v634
                %v636 = vld [vmem:[%s454 + $0x2d0] sm:%s447]
                %637 = vst [vmem:[%s455 + $0x168] sm:%s447] %v636
                %v638 = vld [vmem:[%s454 + $0x2d4] sm:%s447]
                %639 = vst [vmem:[%s455 + $0x16c] sm:%s447] %v638
                %v640 = vld [vmem:[%s454 + $0x2e0] sm:%s447]
                %641 = vst [vmem:[%s455 + $0x170] sm:%s447] %v640
                %v642 = vld [vmem:[%s454 + $0x2e4] sm:%s447]
                %643 = vst [vmem:[%s455 + $0x174] sm:%s447] %v642
                %v644 = vld [vmem:[%s454 + $0x2f0] sm:%s447]
                %645 = vst [vmem:[%s455 + $0x178] sm:%s447] %v644
                %v646 = vld [vmem:[%s454 + $0x2f4] sm:%s447]
                %647 = vst [vmem:[%s455 + $0x17c] sm:%s447] %v646
                %v648 = vld [vmem:[%s454 + $0x300] sm:%s447]
                %649 = vst [vmem:[%s455 + $0x180] sm:%s447] %v648
                %v650 = vld [vmem:[%s454 + $0x304] sm:%s447]
                %651 = vst [vmem:[%s455 + $0x184] sm:%s447] %v650
                %v652 = vld [vmem:[%s454 + $0x310] sm:%s447]
                %653 = vst [vmem:[%s455 + $0x188] sm:%s447] %v652
                %v654 = vld [vmem:[%s454 + $0x314] sm:%s447]
                %655 = vst [vmem:[%s455 + $0x18c] sm:%s447] %v654
                %v656 = vld [vmem:[%s454 + $0x320] sm:%s447]
                %657 = vst [vmem:[%s455 + $0x190] sm:%s447] %v656
                %v658 = vld [vmem:[%s454 + $0x324] sm:%s447]
                %659 = vst [vmem:[%s455 + $0x194] sm:%s447] %v658
                %v660 = vld [vmem:[%s454 + $0x330] sm:%s447]
                %661 = vst [vmem:[%s455 + $0x198] sm:%s447] %v660
                %v662 = vld [vmem:[%s454 + $0x334] sm:%s447]
                %663 = vst [vmem:[%s455 + $0x19c] sm:%s447] %v662
                %v664 = vld [vmem:[%s454 + $0x340] sm:%s447]
                %665 = vst [vmem:[%s455 + $0x1a0] sm:%s447] %v664
                %v666 = vld [vmem:[%s454 + $0x344] sm:%s447]
                %667 = vst [vmem:[%s455 + $0x1a4] sm:%s447] %v666
                %v668 = vld [vmem:[%s454 + $0x350] sm:%s447]
                %669 = vst [vmem:[%s455 + $0x1a8] sm:%s447] %v668
                %v670 = vld [vmem:[%s454 + $0x354] sm:%s447]
                %671 = vst [vmem:[%s455 + $0x1ac] sm:%s447] %v670
                %v672 = vld [vmem:[%s454 + $0x360] sm:%s447]
                %673 = vst [vmem:[%s455 + $0x1b0] sm:%s447] %v672
                %v674 = vld [vmem:[%s454 + $0x364] sm:%s447]
                %675 = vst [vmem:[%s455 + $0x1b4] sm:%s447] %v674
                %v676 = vld [vmem:[%s454 + $0x370] sm:%s447]
                %677 = vst [vmem:[%s455 + $0x1b8] sm:%s447] %v676
                %v678 = vld [vmem:[%s454 + $0x374] sm:%s447]
                %679 = vst [vmem:[%s455 + $0x1bc] sm:%s447] %v678
                %v680 = vld [vmem:[%s454 + $0x380] sm:%s447]
                %681 = vst [vmem:[%s455 + $0x1c0] sm:%s447] %v680
                %v682 = vld [vmem:[%s454 + $0x384] sm:%s447]
                %683 = vst [vmem:[%s455 + $0x1c4] sm:%s447] %v682
                %v684 = vld [vmem:[%s454 + $0x390] sm:%s447]
                %685 = vst [vmem:[%s455 + $0x1c8] sm:%s447] %v684
                %v686 = vld [vmem:[%s454 + $0x394] sm:%s447]
                %687 = vst [vmem:[%s455 + $0x1cc] sm:%s447] %v686
                %v688 = vld [vmem:[%s454 + $0x3a0] sm:%s447]
                %689 = vst [vmem:[%s455 + $0x1d0] sm:%s447] %v688
                %v690 = vld [vmem:[%s454 + $0x3a4] sm:%s447]
                %691 = vst [vmem:[%s455 + $0x1d4] sm:%s447] %v690
                %v692 = vld [vmem:[%s454 + $0x3b0] sm:%s447]
                %693 = vst [vmem:[%s455 + $0x1d8] sm:%s447] %v692
                %v694 = vld [vmem:[%s454 + $0x3b4] sm:%s447]
                %695 = vst [vmem:[%s455 + $0x1dc] sm:%s447] %v694
                %v696 = vld [vmem:[%s454 + $0x3c0] sm:%s447]
                %697 = vst [vmem:[%s455 + $0x1e0] sm:%s447] %v696
                %v698 = vld [vmem:[%s454 + $0x3c4] sm:%s447]
                %699 = vst [vmem:[%s455 + $0x1e4] sm:%s447] %v698
                %v700 = vld [vmem:[%s454 + $0x3d0] sm:%s447]
                %701 = vst [vmem:[%s455 + $0x1e8] sm:%s447] %v700
                %v702 = vld [vmem:[%s454 + $0x3d4] sm:%s447]
                %703 = vst [vmem:[%s455 + $0x1ec] sm:%s447] %v702
                %v704 = vld [vmem:[%s454 + $0x3e0] sm:%s447]
                %705 = vst [vmem:[%s455 + $0x1f0] sm:%s447] %v704
                %v706 = vld [vmem:[%s454 + $0x3e4] sm:%s447]
                %707 = vst [vmem:[%s455 + $0x1f4] sm:%s447] %v706
                %v708 = vld [vmem:[%s454 + $0x3f0] sm:%s447]
                %709 = vst [vmem:[%s455 + $0x1f8] sm:%s447] %v708
                %v710 = vld [vmem:[%s454 + $0x3f4] sm:%s447]
                %711 = vst [vmem:[%s455 + $0x1fc] sm:%s447] %v710
                %v712 = vld [vmem:[%s454 + $0x400] sm:%s447]
                %713 = vst [vmem:[%s455 + $0x200] sm:%s447] %v712
                %v714 = vld [vmem:[%s454 + $0x404] sm:%s447]
                %715 = vst [vmem:[%s455 + $0x204] sm:%s447] %v714
                %v716 = vld [vmem:[%s454 + $0x410] sm:%s447]
                %717 = vst [vmem:[%s455 + $0x208] sm:%s447] %v716
                %v718 = vld [vmem:[%s454 + $0x414] sm:%s447]
                %719 = vst [vmem:[%s455 + $0x20c] sm:%s447] %v718
                %v720 = vld [vmem:[%s454 + $0x420] sm:%s447]
                %721 = vst [vmem:[%s455 + $0x210] sm:%s447] %v720
                %v722 = vld [vmem:[%s454 + $0x424] sm:%s447]
                %723 = vst [vmem:[%s455 + $0x214] sm:%s447] %v722
                %v724 = vld [vmem:[%s454 + $0x430] sm:%s447]
                %725 = vst [vmem:[%s455 + $0x218] sm:%s447] %v724
                %v726 = vld [vmem:[%s454 + $0x434] sm:%s447]
                %727 = vst [vmem:[%s455 + $0x21c] sm:%s447] %v726
                %v728 = vld [vmem:[%s454 + $0x440] sm:%s447]
                %729 = vst [vmem:[%s455 + $0x220] sm:%s447] %v728
                %v730 = vld [vmem:[%s454 + $0x444] sm:%s447]
                %731 = vst [vmem:[%s455 + $0x224] sm:%s447] %v730
                %v732 = vld [vmem:[%s454 + $0x450] sm:%s447]
                %733 = vst [vmem:[%s455 + $0x228] sm:%s447] %v732
                %v734 = vld [vmem:[%s454 + $0x454] sm:%s447]
                %735 = vst [vmem:[%s455 + $0x22c] sm:%s447] %v734
                %v736 = vld [vmem:[%s454 + $0x460] sm:%s447]
                %737 = vst [vmem:[%s455 + $0x230] sm:%s447] %v736
                %v738 = vld [vmem:[%s454 + $0x464] sm:%s447]
                %739 = vst [vmem:[%s455 + $0x234] sm:%s447] %v738
                %v740 = vld [vmem:[%s454 + $0x470] sm:%s447]
                %741 = vst [vmem:[%s455 + $0x238] sm:%s447] %v740
                %v742 = vld [vmem:[%s454 + $0x474] sm:%s447]
                %743 = vst [vmem:[%s455 + $0x23c] sm:%s447] %v742
                %v744 = vld [vmem:[%s454 + $0x480] sm:%s447]
                %745 = vst [vmem:[%s455 + $0x240] sm:%s447] %v744
                %v746 = vld [vmem:[%s454 + $0x484] sm:%s447]
                %747 = vst [vmem:[%s455 + $0x244] sm:%s447] %v746
                %v748 = vld [vmem:[%s454 + $0x490] sm:%s447]
                %749 = vst [vmem:[%s455 + $0x248] sm:%s447] %v748
                %v750 = vld [vmem:[%s454 + $0x494] sm:%s447]
                %751 = vst [vmem:[%s455 + $0x24c] sm:%s447] %v750
                %v752 = vld [vmem:[%s454 + $0x4a0] sm:%s447]
                %753 = vst [vmem:[%s455 + $0x250] sm:%s447] %v752
                %v754 = vld [vmem:[%s454 + $0x4a4] sm:%s447]
                %755 = vst [vmem:[%s455 + $0x254] sm:%s447] %v754
                %v756 = vld [vmem:[%s454 + $0x4b0] sm:%s447]
                %757 = vst [vmem:[%s455 + $0x258] sm:%s447] %v756
                %v758 = vld [vmem:[%s454 + $0x4b4] sm:%s447]
                %759 = vst [vmem:[%s455 + $0x25c] sm:%s447] %v758
                %v760 = vld [vmem:[%s454 + $0x4c0] sm:%s447]
                %761 = vst [vmem:[%s455 + $0x260] sm:%s447] %v760
                %v762 = vld [vmem:[%s454 + $0x4c4] sm:%s447]
                %763 = vst [vmem:[%s455 + $0x264] sm:%s447] %v762
                %v764 = vld [vmem:[%s454 + $0x4d0] sm:%s447]
                %765 = vst [vmem:[%s455 + $0x268] sm:%s447] %v764
                %v766 = vld [vmem:[%s454 + $0x4d4] sm:%s447]
                %767 = vst [vmem:[%s455 + $0x26c] sm:%s447] %v766
                %v768 = vld [vmem:[%s454 + $0x4e0] sm:%s447]
                %769 = vst [vmem:[%s455 + $0x270] sm:%s447] %v768
                %v770 = vld [vmem:[%s454 + $0x4e4] sm:%s447]
                %771 = vst [vmem:[%s455 + $0x274] sm:%s447] %v770
                %v772 = vld [vmem:[%s454 + $0x4f0] sm:%s447]
                %773 = vst [vmem:[%s455 + $0x278] sm:%s447] %v772
                %v774 = vld [vmem:[%s454 + $0x4f4] sm:%s447]
                %775 = vst [vmem:[%s455 + $0x27c] sm:%s447] %v774
                %v776 = vld [vmem:[%s454 + $0x500] sm:%s447]
                %777 = vst [vmem:[%s455 + $0x280] sm:%s447] %v776
                %v778 = vld [vmem:[%s454 + $0x504] sm:%s447]
                %779 = vst [vmem:[%s455 + $0x284] sm:%s447] %v778
              $region93: #{duel_dqn_forward.1} parent=87 // loop_footer
                %s453 = sadd.s32 1, %s449
              $region94: #{duel_dqn_forward.1} parent=87 // loop_footer_branch
                %448 = sbr.rel target = $region90
              $region95: #{duel_dqn_forward.1} parent=87 // loop_exit
                _
            $region88: #{duel_dqn_forward.1} parent=79 // pred_fallthru
              _
          $region80: #{duel_dqn_forward.1} parent=75 // pred_fallthru
            _
          %1124 = vnop
        $region76: #{duel_dqn_forward.1} parent=71 // pred_fallthru
          _
      $region72: #{duel_dqn_forward.1} parent=5 // pred_fallthru
        _
      %p1125 = scmp.le.s32.totalorder 1, %s23
      %p1126 = scmp.lt.s32.totalorder %s23, 3
      %p1127 = pnand %p1125, %p1126
      %p1128 = pneg %p1127
      // Predicated region
      $region114: #{duel_dqn_forward.1} parent=5 // pred_check
        _
      $region115: #{duel_dqn_forward.1} parent=5 // pred_check_branch
        %1130 = sbr.rel (%p1127) target = $region117
      $region116: #{duel_dqn_forward.1} parent=5 // pred_region
        %s1131 = ssub.s32 %s23, 1
        %s1132 = sand.u32 %s36, 1
        %s1133 = sand.u32 %s36, 1
        %s1134 = smul.addr %s1133, 648
        %s1135 = scalar_lea.vmem [#allocation3], %s1134
        // Predicated region
        $region118: #{duel_dqn_forward.1} parent=116 // pred_check
          %p1136 = pneg %p49
        $region119: #{duel_dqn_forward.1} parent=116 // pred_check_branch
          %1138 = sbr.rel (%p1136) target = $region121
        $region120: #{duel_dqn_forward.1} parent=116 // pred_region
          _
        $region121: #{duel_dqn_forward.1} parent=116 // pred_fallthru
          _
        %s1139 = sand.u32 %s36, 1
        %s1140 = sand.u32 %s36, 1
        %s1141 = smul.addr %s1140, 648
        %s1142 = scalar_lea.vmem [#allocation3], %s1141
        %p1143 = pneg %p49
        %p1144 = pneg %p46
        %p1145 = pneg %p70
        %p1146 = pneg %p67
        %p1147 = pneg %p91
        %p1148 = pneg %p88
        %p1149 = pneg %p112
        %p1150 = pneg %p109
        %p1151 = pneg %p133
        %p1152 = pneg %p130
        %p1153 = pneg %p154
        %p1154 = pneg %p151
        %p1155 = pneg %p175
        %p1156 = pneg %p172
        %p1157 = pneg %p196
        %p1158 = pneg %p193
        %p1159 = pneg %p217
        %p1160 = pneg %p214
        %p1161 = pneg %p238
        %p1162 = pneg %p235
        %p1163 = pneg %p259
        %p1164 = pneg %p256
        %p1165 = pneg %p280
        %p1166 = pneg %p277
        %p1167 = pneg %p301
        %p1168 = pneg %p298
        %p1169 = pneg %p322
        %p1170 = pneg %p319
        %p1171 = pneg %p343
        %p1172 = pneg %p340
        %p1173 = pneg %p369
        %p1174 = pneg %p366
        %s1175 = smul.u32 2, %s28
        %p1176 = scmp.lt.s32.totalorder %s1175, 3
        %s1177 = scalar_select %p1176, %s1175, 3
        %s1178 = smul.addr %s1177, 8
        %s1179 = scalar_lea.vmem %s15, %s1178
        %s1180 = smul.u32 2, %s28
        %s1181 = smul.u32 2, %s28
        %p1182 = scmp.lt.s32.totalorder %s1181, 3
        %s1183 = scalar_select %p1182, %s1181, 3
        %s1184 = smul.addr %s1183, 8
        %s1185 = scalar_lea.vmem %s15, %s1184
        %s1186 = smul.u32 2, %s28
        %v1188 = vld [vmem:[%s1135] sm:$0xf]
        %v1189 = vld [vmem:[%s1135 + $0x4] sm:$0xf]
        %v1190 = vld [vmem:[%s1135 + $0x8] sm:$0xf]
        %v1191 = vld [vmem:[%s1135 + $0xc] sm:$0xf]
        %v1192 = vld [vmem:[%s1135 + $0x10] sm:$0xf]
        %v1193 = vld [vmem:[%s1135 + $0x14] sm:$0xf]
        %v1194 = vld [vmem:[%s1135 + $0x18] sm:$0xf]
        %v1195 = vld [vmem:[%s1135 + $0x1c] sm:$0xf]
        %v1196 = vld [vmem:[%s1135 + $0x20] sm:$0xf]
        %v1197 = vld [vmem:[%s1135 + $0x24] sm:$0xf]
        %v1198 = vld [vmem:[%s1135 + $0x28] sm:$0xf]
        %v1199 = vld [vmem:[%s1135 + $0x2c] sm:$0xf]
        %v1200 = vld [vmem:[%s1135 + $0x30] sm:$0xf]
        %v1201 = vld [vmem:[%s1135 + $0x34] sm:$0xf]
        %v1202 = vld [vmem:[%s1135 + $0x38] sm:$0xf]
        %v1203 = vld [vmem:[%s1135 + $0x3c] sm:$0xf]
        %v1204 = vld [vmem:[%s1135 + $0x40] sm:$0xf]
        %v1205 = vld [vmem:[%s1135 + $0x44] sm:$0xf]
        %v1206 = vld [vmem:[%s1135 + $0x48] sm:$0xf]
        %v1207 = vld [vmem:[%s1135 + $0x4c] sm:$0xf]
        %v1208 = vld [vmem:[%s1135 + $0x50] sm:$0xf]
        %v1209 = vld [vmem:[%s1135 + $0x54] sm:$0xf]
        %v1210 = vld [vmem:[%s1135 + $0x58] sm:$0xf]
        %v1211 = vld [vmem:[%s1135 + $0x5c] sm:$0xf]
        %v1212 = vld [vmem:[%s1135 + $0x60] sm:$0xf]
        %v1213 = vld [vmem:[%s1135 + $0x64] sm:$0xf]
        %v1214 = vld [vmem:[%s1135 + $0x68] sm:$0xf]
        %v1215 = vld [vmem:[%s1135 + $0x6c] sm:$0xf]
        %v1216 = vld [vmem:[%s1135 + $0x70] sm:$0xf]
        %v1217 = vld [vmem:[%s1135 + $0x74] sm:$0xf]
        %v1218 = vld [vmem:[%s1135 + $0x78] sm:$0xf]
        %v1219 = vld [vmem:[%s1135 + $0x7c] sm:$0xf]
        %v1220 = vld [vmem:[%s1135 + $0x80] sm:$0xf]
        %v1221 = vld [vmem:[%s1135 + $0x84] sm:$0xf]
        %v1222 = vld [vmem:[%s1135 + $0x88] sm:$0xf]
        %v1223 = vld [vmem:[%s1135 + $0x8c] sm:$0xf]
        %v1224 = vld [vmem:[%s1135 + $0x90] sm:$0xf]
        %v1225 = vld [vmem:[%s1135 + $0x94] sm:$0xf]
        %v1226 = vld [vmem:[%s1135 + $0x98] sm:$0xf]
        %v1227 = vld [vmem:[%s1135 + $0x9c] sm:$0xf]
        %v1228 = vld [vmem:[%s1135 + $0xa0] sm:$0xf]
        %v1229 = vld [vmem:[%s1135 + $0xa4] sm:$0xf]
        %v1230 = vld [vmem:[%s1135 + $0xa8] sm:$0xf]
        %v1231 = vld [vmem:[%s1135 + $0xac] sm:$0xf]
        %v1232 = vld [vmem:[%s1135 + $0xb0] sm:$0xf]
        %v1233 = vld [vmem:[%s1135 + $0xb4] sm:$0xf]
        %v1234 = vld [vmem:[%s1135 + $0xb8] sm:$0xf]
        %v1235 = vld [vmem:[%s1135 + $0xbc] sm:$0xf]
        %v1236 = vld [vmem:[%s1135 + $0xc0] sm:$0xf]
        %v1237 = vld [vmem:[%s1135 + $0xc4] sm:$0xf]
        %v1238 = vld [vmem:[%s1135 + $0xc8] sm:$0xf]
        %v1239 = vld [vmem:[%s1135 + $0xcc] sm:$0xf]
        %v1240 = vld [vmem:[%s1135 + $0xd0] sm:$0xf]
        %v1241 = vld [vmem:[%s1135 + $0xd4] sm:$0xf]
        %v1242 = vld [vmem:[%s1135 + $0xd8] sm:$0xf]
        %v1243 = vld [vmem:[%s1135 + $0xdc] sm:$0xf]
        %v1244 = vld [vmem:[%s1135 + $0xe0] sm:$0xf]
        %v1245 = vld [vmem:[%s1135 + $0xe4] sm:$0xf]
        %v1246 = vld [vmem:[%s1135 + $0xe8] sm:$0xf]
        %v1247 = vld [vmem:[%s1135 + $0xec] sm:$0xf]
        %v1248 = vld [vmem:[%s1135 + $0xf0] sm:$0xf]
        %v1249 = vld [vmem:[%s1135 + $0xf4] sm:$0xf]
        %v1250 = vld [vmem:[%s1135 + $0xf8] sm:$0xf]
        %v1251 = vld [vmem:[%s1135 + $0xfc] sm:$0xf]
        %v1252 = vld [vmem:[%s1135 + $0x100] sm:$0xf]
        %v1253 = vld [vmem:[%s1135 + $0x104] sm:$0xf]
        %v1254 = vld [vmem:[%s1135 + $0x108] sm:$0xf]
        %v1255 = vld [vmem:[%s1135 + $0x10c] sm:$0xf]
        %v1256 = vld [vmem:[%s1135 + $0x110] sm:$0xf]
        %v1257 = vld [vmem:[%s1135 + $0x114] sm:$0xf]
        %v1258 = vld [vmem:[%s1135 + $0x118] sm:$0xf]
        %v1259 = vld [vmem:[%s1135 + $0x11c] sm:$0xf]
        %v1260 = vld [vmem:[%s1135 + $0x120] sm:$0xf]
        %v1261 = vld [vmem:[%s1135 + $0x124] sm:$0xf]
        %v1262 = vld [vmem:[%s1135 + $0x128] sm:$0xf]
        %v1263 = vld [vmem:[%s1135 + $0x12c] sm:$0xf]
        %v1264 = vld [vmem:[%s1135 + $0x130] sm:$0xf]
        %v1265 = vld [vmem:[%s1135 + $0x134] sm:$0xf]
        %v1266 = vld [vmem:[%s1135 + $0x138] sm:$0xf]
        %v1267 = vld [vmem:[%s1135 + $0x13c] sm:$0xf]
        %v1268 = vld [vmem:[%s1135 + $0x140] sm:$0xf]
        %v1269 = vld [vmem:[%s1135 + $0x144] sm:$0xf]
        %v1270 = vld [vmem:[%s1135 + $0x148] sm:$0xf]
        %v1271 = vld [vmem:[%s1135 + $0x14c] sm:$0xf]
        %v1272 = vld [vmem:[%s1135 + $0x150] sm:$0xf]
        %v1273 = vld [vmem:[%s1135 + $0x154] sm:$0xf]
        %v1274 = vld [vmem:[%s1135 + $0x158] sm:$0xf]
        %v1275 = vld [vmem:[%s1135 + $0x15c] sm:$0xf]
        %v1276 = vld [vmem:[%s1135 + $0x160] sm:$0xf]
        %v1277 = vld [vmem:[%s1135 + $0x164] sm:$0xf]
        %v1278 = vld [vmem:[%s1135 + $0x168] sm:$0xf]
        %v1279 = vld [vmem:[%s1135 + $0x16c] sm:$0xf]
        %v1280 = vld [vmem:[%s1135 + $0x170] sm:$0xf]
        %v1281 = vld [vmem:[%s1135 + $0x174] sm:$0xf]
        %v1282 = vld [vmem:[%s1135 + $0x178] sm:$0xf]
        %v1283 = vld [vmem:[%s1135 + $0x17c] sm:$0xf]
        %v1284 = vld [vmem:[%s1135 + $0x180] sm:$0xf]
        %v1285 = vld [vmem:[%s1135 + $0x184] sm:$0xf]
        %v1286 = vld [vmem:[%s1135 + $0x188] sm:$0xf]
        %v1287 = vld [vmem:[%s1135 + $0x18c] sm:$0xf]
        %v1288 = vld [vmem:[%s1135 + $0x190] sm:$0xf]
        %v1289 = vld [vmem:[%s1135 + $0x194] sm:$0xf]
        %v1290 = vld [vmem:[%s1135 + $0x198] sm:$0xf]
        %v1291 = vld [vmem:[%s1135 + $0x19c] sm:$0xf]
        %v1292 = vld [vmem:[%s1135 + $0x1a0] sm:$0xf]
        %v1293 = vld [vmem:[%s1135 + $0x1a4] sm:$0xf]
        %v1294 = vld [vmem:[%s1135 + $0x1a8] sm:$0xf]
        %v1295 = vld [vmem:[%s1135 + $0x1ac] sm:$0xf]
        %v1296 = vld [vmem:[%s1135 + $0x1b0] sm:$0xf]
        %v1297 = vld [vmem:[%s1135 + $0x1b4] sm:$0xf]
        %v1298 = vld [vmem:[%s1135 + $0x1b8] sm:$0xf]
        %v1299 = vld [vmem:[%s1135 + $0x1bc] sm:$0xf]
        %v1300 = vld [vmem:[%s1135 + $0x1c0] sm:$0xf]
        %v1301 = vld [vmem:[%s1135 + $0x1c4] sm:$0xf]
        %v1302 = vld [vmem:[%s1135 + $0x1c8] sm:$0xf]
        %v1303 = vld [vmem:[%s1135 + $0x1cc] sm:$0xf]
        %v1304 = vld [vmem:[%s1135 + $0x1d0] sm:$0xf]
        %v1305 = vld [vmem:[%s1135 + $0x1d4] sm:$0xf]
        %v1306 = vld [vmem:[%s1135 + $0x1d8] sm:$0xf]
        %v1307 = vld [vmem:[%s1135 + $0x1dc] sm:$0xf]
        %v1308 = vld [vmem:[%s1135 + $0x1e0] sm:$0xf]
        %v1309 = vld [vmem:[%s1135 + $0x1e4] sm:$0xf]
        %v1310 = vld [vmem:[%s1135 + $0x1e8] sm:$0xf]
        %v1311 = vld [vmem:[%s1135 + $0x1ec] sm:$0xf]
        %v1312 = vld [vmem:[%s1135 + $0x1f0] sm:$0xf]
        %v1313 = vld [vmem:[%s1135 + $0x1f4] sm:$0xf]
        %v1314 = vld [vmem:[%s1135 + $0x1f8] sm:$0xf]
        %v1315 = vld [vmem:[%s1135 + $0x1fc] sm:$0xf]
        %v1316 = vld [vmem:[%s1135 + $0x200] sm:$0xf]
        %v1317 = vld [vmem:[%s1135 + $0x204] sm:$0xf]
        %v1318 = vld [vmem:[%s1135 + $0x208] sm:$0xf]
        %v1319 = vld [vmem:[%s1135 + $0x20c] sm:$0xf]
        %v1320 = vld [vmem:[%s1135 + $0x210] sm:$0xf]
        %v1321 = vld [vmem:[%s1135 + $0x214] sm:$0xf]
        %v1322 = vld [vmem:[%s1135 + $0x218] sm:$0xf]
        %v1323 = vld [vmem:[%s1135 + $0x21c] sm:$0xf]
        %v1324 = vld [vmem:[%s1135 + $0x220] sm:$0xf]
        %v1325 = vld [vmem:[%s1135 + $0x224] sm:$0xf]
        %v1326 = vld [vmem:[%s1135 + $0x228] sm:$0xf]
        %v1327 = vld [vmem:[%s1135 + $0x22c] sm:$0xf]
        %v1328 = vld [vmem:[%s1135 + $0x230] sm:$0xf]
        %v1329 = vld [vmem:[%s1135 + $0x234] sm:$0xf]
        %v1330 = vld [vmem:[%s1135 + $0x238] sm:$0xf]
        %v1331 = vld [vmem:[%s1135 + $0x23c] sm:$0xf]
        %v1332 = vld [vmem:[%s1135 + $0x240] sm:$0xf]
        %v1333 = vld [vmem:[%s1135 + $0x244] sm:$0xf]
        %v1334 = vld [vmem:[%s1135 + $0x248] sm:$0xf]
        %v1335 = vld [vmem:[%s1135 + $0x24c] sm:$0xf]
        %v1336 = vld [vmem:[%s1135 + $0x250] sm:$0xf]
        %v1337 = vld [vmem:[%s1135 + $0x254] sm:$0xf]
        %v1338 = vld [vmem:[%s1135 + $0x258] sm:$0xf]
        %v1339 = vld [vmem:[%s1135 + $0x25c] sm:$0xf]
        %v1340 = vld [vmem:[%s1135 + $0x260] sm:$0xf]
        %v1341 = vld [vmem:[%s1135 + $0x264] sm:$0xf]
        %v1342 = vld [vmem:[%s1135 + $0x268] sm:$0xf]
        %v1343 = vld [vmem:[%s1135 + $0x26c] sm:$0xf]
        %v1344 = vld [vmem:[%s1135 + $0x270] sm:$0xf]
        %v1345 = vld [vmem:[%s1135 + $0x274] sm:$0xf]
        %v1346 = vld [vmem:[%s1135 + $0x278] sm:$0xf]
        %v1347 = vld [vmem:[%s1135 + $0x27c] sm:$0xf]
        %v1348 = vld [vmem:[%s1135 + $0x280] sm:$0xf]
        %v1349 = vld [vmem:[%s1135 + $0x284] sm:$0xf]
        %v1478 = vunpack.c.l.b16 %v1188
        %v1479 = vunpack.c.l.b16 %v1189
        %v1480 = vunpack.c.l.b16 %v1190
        %v1481 = vunpack.c.l.b16 %v1191
        %v1482 = vunpack.c.l.b16 %v1192
        %v1483 = vunpack.c.l.b16 %v1193
        %v1484 = vunpack.c.l.b16 %v1194
        %v1485 = vunpack.c.l.b16 %v1195
        %v1486 = vunpack.c.l.b16 %v1196
        %v1487 = vunpack.c.l.b16 %v1197
        %v1488 = vunpack.c.l.b16 %v1198
        %v1489 = vunpack.c.l.b16 %v1199
        %v1490 = vunpack.c.l.b16 %v1200
        %v1491 = vunpack.c.l.b16 %v1201
        %v1492 = vunpack.c.l.b16 %v1202
        %v1493 = vunpack.c.l.b16 %v1203
        %v1494 = vunpack.c.l.b16 %v1206
        %v1495 = vunpack.c.l.b16 %v1207
        %v1496 = vunpack.c.l.b16 %v1208
        %v1497 = vunpack.c.l.b16 %v1209
        %v1498 = vunpack.c.l.b16 %v1210
        %v1499 = vunpack.c.l.b16 %v1211
        %v1500 = vunpack.c.l.b16 %v1212
        %v1501 = vunpack.c.l.b16 %v1213
        %v1502 = vunpack.c.l.b16 %v1214
        %v1503 = vunpack.c.l.b16 %v1215
        %v1504 = vunpack.c.l.b16 %v1216
        %v1505 = vunpack.c.l.b16 %v1217
        %v1506 = vunpack.c.l.b16 %v1218
        %v1507 = vunpack.c.l.b16 %v1219
        %v1508 = vunpack.c.l.b16 %v1220
        %v1509 = vunpack.c.l.b16 %v1221
        %v1510 = vunpack.c.l.b16 %v1224
        %v1511 = vunpack.c.l.b16 %v1225
        %v1512 = vunpack.c.l.b16 %v1226
        %v1513 = vunpack.c.l.b16 %v1227
        %v1514 = vunpack.c.l.b16 %v1228
        %v1515 = vunpack.c.l.b16 %v1229
        %v1516 = vunpack.c.l.b16 %v1230
        %v1517 = vunpack.c.l.b16 %v1231
        %v1518 = vunpack.c.l.b16 %v1232
        %v1519 = vunpack.c.l.b16 %v1233
        %v1520 = vunpack.c.l.b16 %v1234
        %v1521 = vunpack.c.l.b16 %v1235
        %v1522 = vunpack.c.l.b16 %v1236
        %v1523 = vunpack.c.l.b16 %v1237
        %v1524 = vunpack.c.l.b16 %v1238
        %v1525 = vunpack.c.l.b16 %v1239
        %v1526 = vunpack.c.l.b16 %v1242
        %v1527 = vunpack.c.l.b16 %v1243
        %v1528 = vunpack.c.l.b16 %v1244
        %v1529 = vunpack.c.l.b16 %v1245
        %v1530 = vunpack.c.l.b16 %v1246
        %v1531 = vunpack.c.l.b16 %v1247
        %v1532 = vunpack.c.l.b16 %v1248
        %v1533 = vunpack.c.l.b16 %v1249
        %v1534 = vunpack.c.l.b16 %v1250
        %v1535 = vunpack.c.l.b16 %v1251
        %v1536 = vunpack.c.l.b16 %v1252
        %v1537 = vunpack.c.l.b16 %v1253
        %v1538 = vunpack.c.l.b16 %v1254
        %v1539 = vunpack.c.l.b16 %v1255
        %v1540 = vunpack.c.l.b16 %v1256
        %v1541 = vunpack.c.l.b16 %v1257
        %v1542 = vunpack.c.l.b16 %v1260
        %v1543 = vunpack.c.l.b16 %v1261
        %v1544 = vunpack.c.l.b16 %v1262
        %v1545 = vunpack.c.l.b16 %v1263
        %v1546 = vunpack.c.l.b16 %v1264
        %v1547 = vunpack.c.l.b16 %v1265
        %v1548 = vunpack.c.l.b16 %v1266
        %v1549 = vunpack.c.l.b16 %v1267
        %v1550 = vunpack.c.l.b16 %v1268
        %v1551 = vunpack.c.l.b16 %v1269
        %v1552 = vunpack.c.l.b16 %v1270
        %v1553 = vunpack.c.l.b16 %v1271
        %v1554 = vunpack.c.l.b16 %v1272
        %v1555 = vunpack.c.l.b16 %v1273
        %v1556 = vunpack.c.l.b16 %v1274
        %v1557 = vunpack.c.l.b16 %v1275
        %v1558 = vunpack.c.l.b16 %v1278
        %v1559 = vunpack.c.l.b16 %v1279
        %v1560 = vunpack.c.l.b16 %v1280
        %v1561 = vunpack.c.l.b16 %v1281
        %v1562 = vunpack.c.l.b16 %v1282
        %v1563 = vunpack.c.l.b16 %v1283
        %v1564 = vunpack.c.l.b16 %v1284
        %v1565 = vunpack.c.l.b16 %v1285
        %v1566 = vunpack.c.l.b16 %v1286
        %v1567 = vunpack.c.l.b16 %v1287
        %v1568 = vunpack.c.l.b16 %v1288
        %v1569 = vunpack.c.l.b16 %v1289
        %v1570 = vunpack.c.l.b16 %v1290
        %v1571 = vunpack.c.l.b16 %v1291
        %v1572 = vunpack.c.l.b16 %v1292
        %v1573 = vunpack.c.l.b16 %v1293
        %v1574 = vunpack.c.l.b16 %v1296
        %v1575 = vunpack.c.l.b16 %v1297
        %v1576 = vunpack.c.l.b16 %v1298
        %v1577 = vunpack.c.l.b16 %v1299
        %v1578 = vunpack.c.l.b16 %v1300
        %v1579 = vunpack.c.l.b16 %v1301
        %v1580 = vunpack.c.l.b16 %v1302
        %v1581 = vunpack.c.l.b16 %v1303
        %v1582 = vunpack.c.l.b16 %v1304
        %v1583 = vunpack.c.l.b16 %v1305
        %v1584 = vunpack.c.l.b16 %v1306
        %v1585 = vunpack.c.l.b16 %v1307
        %v1586 = vunpack.c.l.b16 %v1308
        %v1587 = vunpack.c.l.b16 %v1309
        %v1588 = vunpack.c.l.b16 %v1310
        %v1589 = vunpack.c.l.b16 %v1311
        %v1590 = vunpack.c.l.b16 %v1314
        %v1591 = vunpack.c.l.b16 %v1315
        %v1592 = vunpack.c.l.b16 %v1316
        %v1593 = vunpack.c.l.b16 %v1317
        %v1594 = vunpack.c.l.b16 %v1318
        %v1595 = vunpack.c.l.b16 %v1319
        %v1596 = vunpack.c.l.b16 %v1320
        %v1597 = vunpack.c.l.b16 %v1321
        %v1598 = vunpack.c.l.b16 %v1322
        %v1599 = vunpack.c.l.b16 %v1323
        %v1600 = vunpack.c.l.b16 %v1324
        %v1601 = vunpack.c.l.b16 %v1325
        %v1602 = vunpack.c.l.b16 %v1326
        %v1603 = vunpack.c.l.b16 %v1327
        %v1604 = vunpack.c.l.b16 %v1328
        %v1605 = vunpack.c.l.b16 %v1329
        %v1606 = vpack.c.b16 %v1479, %v1478
        %v1607 = vpack.c.b16 %v1481, %v1480
        %v1608 = vpack.c.b16 %v1483, %v1482
        %v1609 = vpack.c.b16 %v1485, %v1484
        %v1610 = vpack.c.b16 %v1487, %v1486
        %v1611 = vpack.c.b16 %v1489, %v1488
        %v1612 = vpack.c.b16 %v1491, %v1490
        %v1613 = vpack.c.b16 %v1493, %v1492
        %v1614 = vpack.c.b16 %v1495, %v1494
        %v1615 = vpack.c.b16 %v1497, %v1496
        %v1616 = vpack.c.b16 %v1499, %v1498
        %v1617 = vpack.c.b16 %v1501, %v1500
        %v1618 = vpack.c.b16 %v1503, %v1502
        %v1619 = vpack.c.b16 %v1505, %v1504
        %v1620 = vpack.c.b16 %v1507, %v1506
        %v1621 = vpack.c.b16 %v1509, %v1508
        %v1622 = vpack.c.b16 %v1511, %v1510
        %v1623 = vpack.c.b16 %v1513, %v1512
        %v1624 = vpack.c.b16 %v1515, %v1514
        %v1625 = vpack.c.b16 %v1517, %v1516
        %v1626 = vpack.c.b16 %v1519, %v1518
        %v1627 = vpack.c.b16 %v1521, %v1520
        %v1628 = vpack.c.b16 %v1523, %v1522
        %v1629 = vpack.c.b16 %v1525, %v1524
        %v1630 = vpack.c.b16 %v1527, %v1526
        %v1631 = vpack.c.b16 %v1529, %v1528
        %v1632 = vpack.c.b16 %v1531, %v1530
        %v1633 = vpack.c.b16 %v1533, %v1532
        %v1634 = vpack.c.b16 %v1535, %v1534
        %v1635 = vpack.c.b16 %v1537, %v1536
        %v1636 = vpack.c.b16 %v1539, %v1538
        %v1637 = vpack.c.b16 %v1541, %v1540
        %v1638 = vpack.c.b16 %v1543, %v1542
        %v1639 = vpack.c.b16 %v1545, %v1544
        %v1640 = vpack.c.b16 %v1547, %v1546
        %v1641 = vpack.c.b16 %v1549, %v1548
        %v1642 = vpack.c.b16 %v1551, %v1550
        %v1643 = vpack.c.b16 %v1553, %v1552
        %v1644 = vpack.c.b16 %v1555, %v1554
        %v1645 = vpack.c.b16 %v1557, %v1556
        %v1646 = vpack.c.b16 %v1559, %v1558
        %v1647 = vpack.c.b16 %v1561, %v1560
        %v1648 = vpack.c.b16 %v1563, %v1562
        %v1649 = vpack.c.b16 %v1565, %v1564
        %v1650 = vpack.c.b16 %v1567, %v1566
        %v1651 = vpack.c.b16 %v1569, %v1568
        %v1652 = vpack.c.b16 %v1571, %v1570
        %v1653 = vpack.c.b16 %v1573, %v1572
        %v1654 = vpack.c.b16 %v1575, %v1574
        %v1655 = vpack.c.b16 %v1577, %v1576
        %v1656 = vpack.c.b16 %v1579, %v1578
        %v1657 = vpack.c.b16 %v1581, %v1580
        %v1658 = vpack.c.b16 %v1583, %v1582
        %v1659 = vpack.c.b16 %v1585, %v1584
        %v1660 = vpack.c.b16 %v1587, %v1586
        %v1661 = vpack.c.b16 %v1589, %v1588
        %v1662 = vpack.c.b16 %v1591, %v1590
        %v1663 = vpack.c.b16 %v1593, %v1592
        %v1664 = vpack.c.b16 %v1595, %v1594
        %v1665 = vpack.c.b16 %v1597, %v1596
        %v1666 = vpack.c.b16 %v1599, %v1598
        %v1667 = vpack.c.b16 %v1601, %v1600
        %v1668 = vpack.c.b16 %v1603, %v1602
        %v1669 = vpack.c.b16 %v1605, %v1604
        %v1686 = vunpack.c.l.b16 %v1204
        %v1687 = vunpack.c.l.b16 %v1205
        %v1688 = vunpack.c.l.b16 %v1222
        %v1689 = vunpack.c.l.b16 %v1223
        %v1690 = vunpack.c.l.b16 %v1240
        %v1691 = vunpack.c.l.b16 %v1241
        %v1692 = vunpack.c.l.b16 %v1258
        %v1693 = vunpack.c.l.b16 %v1259
        %v1694 = vunpack.c.l.b16 %v1276
        %v1695 = vunpack.c.l.b16 %v1277
        %v1696 = vunpack.c.l.b16 %v1294
        %v1697 = vunpack.c.l.b16 %v1295
        %v1698 = vunpack.c.l.b16 %v1312
        %v1699 = vunpack.c.l.b16 %v1313
        %v1700 = vunpack.c.l.b16 %v1330
        %v1701 = vunpack.c.l.b16 %v1331
        %v1702 = vpack.c.b16 %v1687, %v1686
        %v1703 = vpack.c.b16 %v1689, %v1688
        %v1704 = vpack.c.b16 %v1691, %v1690
        %v1705 = vpack.c.b16 %v1693, %v1692
        %v1706 = vpack.c.b16 %v1695, %v1694
        %v1707 = vpack.c.b16 %v1697, %v1696
        %v1708 = vpack.c.b16 %v1699, %v1698
        %v1709 = vpack.c.b16 %v1701, %v1700
        %1710 = vrot.lane.b32.xlu0 %v1607, 64
        %v1711 = vpop.permute.xlu0 %1710
        %1712 = vrot.lane.b32.xlu0 %v1608, 64
        %v1713 = vpop.permute.xlu0 %1712
        %1714 = vrot.lane.b32.xlu0 %v1609, 64
        %v1715 = vpop.permute.xlu0 %1714
        %1716 = vrot.lane.b32.xlu0 %v1610, 64
        %v1717 = vpop.permute.xlu0 %1716
        %1718 = vrot.lane.b32.xlu0 %v1611, 64
        %v1719 = vpop.permute.xlu0 %1718
        %1720 = vrot.lane.b32.xlu0 %v1612, 64
        %v1721 = vpop.permute.xlu0 %1720
        %1722 = vrot.lane.b32.xlu0 %v1613, 64
        %v1723 = vpop.permute.xlu0 %1722
        %1724 = vrot.lane.b32.xlu0 %v1702, 64
        %v1725 = vpop.permute.xlu0 %1724
        %1726 = vrot.lane.b32.xlu0 %v1615, 64
        %v1727 = vpop.permute.xlu0 %1726
        %1728 = vrot.lane.b32.xlu0 %v1616, 64
        %v1729 = vpop.permute.xlu0 %1728
        %1730 = vrot.lane.b32.xlu0 %v1617, 64
        %v1731 = vpop.permute.xlu0 %1730
        %1732 = vrot.lane.b32.xlu0 %v1618, 64
        %v1733 = vpop.permute.xlu0 %1732
        %1734 = vrot.lane.b32.xlu0 %v1619, 64
        %v1735 = vpop.permute.xlu0 %1734
        %1736 = vrot.lane.b32.xlu0 %v1620, 64
        %v1737 = vpop.permute.xlu0 %1736
        %1738 = vrot.lane.b32.xlu0 %v1621, 64
        %v1739 = vpop.permute.xlu0 %1738
        %1740 = vrot.lane.b32.xlu0 %v1703, 64
        %v1741 = vpop.permute.xlu0 %1740
        %1742 = vrot.lane.b32.xlu0 %v1623, 64
        %v1743 = vpop.permute.xlu0 %1742
        %1744 = vrot.lane.b32.xlu0 %v1624, 64
        %v1745 = vpop.permute.xlu0 %1744
        %1746 = vrot.lane.b32.xlu0 %v1625, 64
        %v1747 = vpop.permute.xlu0 %1746
        %1748 = vrot.lane.b32.xlu0 %v1626, 64
        %v1749 = vpop.permute.xlu0 %1748
        %1750 = vrot.lane.b32.xlu0 %v1627, 64
        %v1751 = vpop.permute.xlu0 %1750
        %1752 = vrot.lane.b32.xlu0 %v1628, 64
        %v1753 = vpop.permute.xlu0 %1752
        %1754 = vrot.lane.b32.xlu0 %v1629, 64
        %v1755 = vpop.permute.xlu0 %1754
        %1756 = vrot.lane.b32.xlu0 %v1704, 64
        %v1757 = vpop.permute.xlu0 %1756
        %1758 = vrot.lane.b32.xlu0 %v1631, 64
        %v1759 = vpop.permute.xlu0 %1758
        %1760 = vrot.lane.b32.xlu0 %v1632, 64
        %v1761 = vpop.permute.xlu0 %1760
        %1762 = vrot.lane.b32.xlu0 %v1633, 64
        %v1763 = vpop.permute.xlu0 %1762
        %1764 = vrot.lane.b32.xlu0 %v1634, 64
        %v1765 = vpop.permute.xlu0 %1764
        %1766 = vrot.lane.b32.xlu0 %v1635, 64
        %v1767 = vpop.permute.xlu0 %1766
        %1768 = vrot.lane.b32.xlu0 %v1636, 64
        %v1769 = vpop.permute.xlu0 %1768
        %1770 = vrot.lane.b32.xlu0 %v1637, 64
        %v1771 = vpop.permute.xlu0 %1770
        %1772 = vrot.lane.b32.xlu0 %v1705, 64
        %v1773 = vpop.permute.xlu0 %1772
        %1774 = vrot.lane.b32.xlu0 %v1639, 64
        %v1775 = vpop.permute.xlu0 %1774
        %1776 = vrot.lane.b32.xlu0 %v1640, 64
        %v1777 = vpop.permute.xlu0 %1776
        %1778 = vrot.lane.b32.xlu0 %v1641, 64
        %v1779 = vpop.permute.xlu0 %1778
        %1780 = vrot.lane.b32.xlu0 %v1642, 64
        %v1781 = vpop.permute.xlu0 %1780
        %1782 = vrot.lane.b32.xlu0 %v1643, 64
        %v1783 = vpop.permute.xlu0 %1782
        %1784 = vrot.lane.b32.xlu0 %v1644, 64
        %v1785 = vpop.permute.xlu0 %1784
        %1786 = vrot.lane.b32.xlu0 %v1645, 64
        %v1787 = vpop.permute.xlu0 %1786
        %1788 = vrot.lane.b32.xlu0 %v1706, 64
        %v1789 = vpop.permute.xlu0 %1788
        %1790 = vrot.lane.b32.xlu0 %v1647, 64
        %v1791 = vpop.permute.xlu0 %1790
        %1792 = vrot.lane.b32.xlu0 %v1648, 64
        %v1793 = vpop.permute.xlu0 %1792
        %1794 = vrot.lane.b32.xlu0 %v1649, 64
        %v1795 = vpop.permute.xlu0 %1794
        %1796 = vrot.lane.b32.xlu0 %v1650, 64
        %v1797 = vpop.permute.xlu0 %1796
        %1798 = vrot.lane.b32.xlu0 %v1651, 64
        %v1799 = vpop.permute.xlu0 %1798
        %1800 = vrot.lane.b32.xlu0 %v1652, 64
        %v1801 = vpop.permute.xlu0 %1800
        %1802 = vrot.lane.b32.xlu0 %v1653, 64
        %v1803 = vpop.permute.xlu0 %1802
        %1804 = vrot.lane.b32.xlu0 %v1707, 64
        %v1805 = vpop.permute.xlu0 %1804
        %1806 = vrot.lane.b32.xlu0 %v1655, 64
        %v1807 = vpop.permute.xlu0 %1806
        %1808 = vrot.lane.b32.xlu0 %v1656, 64
        %v1809 = vpop.permute.xlu0 %1808
        %1810 = vrot.lane.b32.xlu0 %v1657, 64
        %v1811 = vpop.permute.xlu0 %1810
        %1812 = vrot.lane.b32.xlu0 %v1658, 64
        %v1813 = vpop.permute.xlu0 %1812
        %1814 = vrot.lane.b32.xlu0 %v1659, 64
        %v1815 = vpop.permute.xlu0 %1814
        %1816 = vrot.lane.b32.xlu0 %v1660, 64
        %v1817 = vpop.permute.xlu0 %1816
        %1818 = vrot.lane.b32.xlu0 %v1661, 64
        %v1819 = vpop.permute.xlu0 %1818
        %1820 = vrot.lane.b32.xlu0 %v1708, 64
        %v1821 = vpop.permute.xlu0 %1820
        %1822 = vrot.lane.b32.xlu0 %v1663, 64
        %v1823 = vpop.permute.xlu0 %1822
        %1824 = vrot.lane.b32.xlu0 %v1664, 64
        %v1825 = vpop.permute.xlu0 %1824
        %1826 = vrot.lane.b32.xlu0 %v1665, 64
        %v1827 = vpop.permute.xlu0 %1826
        %1828 = vrot.lane.b32.xlu0 %v1666, 64
        %v1829 = vpop.permute.xlu0 %1828
        %1830 = vrot.lane.b32.xlu0 %v1667, 64
        %v1831 = vpop.permute.xlu0 %1830
        %1832 = vrot.lane.b32.xlu0 %v1668, 64
        %v1833 = vpop.permute.xlu0 %1832
        %1834 = vrot.lane.b32.xlu0 %v1669, 64
        %v1835 = vpop.permute.xlu0 %1834
        %1836 = vrot.lane.b32.xlu0 %v1709, 64
        %v1837 = vpop.permute.xlu0 %1836
        %v1854 = vunpack.c.l.b16 %v1332
        %v1855 = vunpack.c.l.b16 %v1333
        %v1856 = vunpack.c.l.b16 %v1334
        %v1857 = vunpack.c.l.b16 %v1335
        %v1858 = vunpack.c.l.b16 %v1336
        %v1859 = vunpack.c.l.b16 %v1337
        %v1860 = vunpack.c.l.b16 %v1338
        %v1861 = vunpack.c.l.b16 %v1339
        %v1862 = vunpack.c.l.b16 %v1340
        %v1863 = vunpack.c.l.b16 %v1341
        %v1864 = vunpack.c.l.b16 %v1342
        %v1865 = vunpack.c.l.b16 %v1343
        %v1866 = vunpack.c.l.b16 %v1344
        %v1867 = vunpack.c.l.b16 %v1345
        %v1868 = vunpack.c.l.b16 %v1346
        %v1869 = vunpack.c.l.b16 %v1347
        %v1870 = vpack.c.b16 %v1855, %v1854
        %v1871 = vpack.c.b16 %v1857, %v1856
        %v1872 = vpack.c.b16 %v1859, %v1858
        %v1873 = vpack.c.b16 %v1861, %v1860
        %v1874 = vpack.c.b16 %v1863, %v1862
        %v1875 = vpack.c.b16 %v1865, %v1864
        %v1876 = vpack.c.b16 %v1867, %v1866
        %v1877 = vpack.c.b16 %v1869, %v1868
        %v1880 = vunpack.c.l.b16 %v1348
        %v1881 = vunpack.c.l.b16 %v1349
        %v1882 = vpack.c.b16 %v1881, %v1880
        %1883 = vrot.lane.b32.xlu0 %v1871, 64
        %v1884 = vpop.permute.xlu0 %1883
        %1885 = vrot.lane.b32.xlu0 %v1872, 64
        %v1886 = vpop.permute.xlu0 %1885
        %1887 = vrot.lane.b32.xlu0 %v1873, 64
        %v1888 = vpop.permute.xlu0 %1887
        %1889 = vrot.lane.b32.xlu0 %v1874, 64
        %v1890 = vpop.permute.xlu0 %1889
        %1891 = vrot.lane.b32.xlu0 %v1875, 64
        %v1892 = vpop.permute.xlu0 %1891
        %1893 = vrot.lane.b32.xlu0 %v1876, 64
        %v1894 = vpop.permute.xlu0 %1893
        %1895 = vrot.lane.b32.xlu0 %v1877, 64
        %v1896 = vpop.permute.xlu0 %1895
        %1897 = vrot.lane.b32.xlu0 %v1882, 64
        %v1898 = vpop.permute.xlu0 %1897
        %vm1899 = vcmask 523264
        %v1902 = vsel %vm1899, %v1606, %v1711
        %v1906 = vsel %vm1899, %v1607, %v1713
        %v1910 = vsel %vm1899, %v1608, %v1715
        %v1914 = vsel %vm1899, %v1609, %v1717
        %v1918 = vsel %vm1899, %v1610, %v1719
        %v1922 = vsel %vm1899, %v1611, %v1721
        %v1926 = vsel %vm1899, %v1612, %v1723
        %v1930 = vsel %vm1899, %v1613, %v1725
        %v1934 = vsel %vm1899, %v1614, %v1727
        %v1938 = vsel %vm1899, %v1615, %v1729
        %v1942 = vsel %vm1899, %v1616, %v1731
        %v1946 = vsel %vm1899, %v1617, %v1733
        %v1950 = vsel %vm1899, %v1618, %v1735
        %v1954 = vsel %vm1899, %v1619, %v1737
        %v1958 = vsel %vm1899, %v1620, %v1739
        %v1962 = vsel %vm1899, %v1621, %v1741
        %v1966 = vsel %vm1899, %v1622, %v1743
        %v1970 = vsel %vm1899, %v1623, %v1745
        %v1974 = vsel %vm1899, %v1624, %v1747
        %v1978 = vsel %vm1899, %v1625, %v1749
        %v1982 = vsel %vm1899, %v1626, %v1751
        %v1986 = vsel %vm1899, %v1627, %v1753
        %v1990 = vsel %vm1899, %v1628, %v1755
        %v1994 = vsel %vm1899, %v1629, %v1757
        %v1998 = vsel %vm1899, %v1630, %v1759
        %v2002 = vsel %vm1899, %v1631, %v1761
        %v2006 = vsel %vm1899, %v1632, %v1763
        %v2010 = vsel %vm1899, %v1633, %v1765
        %v2014 = vsel %vm1899, %v1634, %v1767
        %v2018 = vsel %vm1899, %v1635, %v1769
        %v2022 = vsel %vm1899, %v1636, %v1771
        %v2026 = vsel %vm1899, %v1637, %v1773
        %v2030 = vsel %vm1899, %v1638, %v1775
        %v2034 = vsel %vm1899, %v1639, %v1777
        %v2038 = vsel %vm1899, %v1640, %v1779
        %v2042 = vsel %vm1899, %v1641, %v1781
        %v2046 = vsel %vm1899, %v1642, %v1783
        %v2050 = vsel %vm1899, %v1643, %v1785
        %v2054 = vsel %vm1899, %v1644, %v1787
        %v2058 = vsel %vm1899, %v1645, %v1789
        %v2062 = vsel %vm1899, %v1646, %v1791
        %v2066 = vsel %vm1899, %v1647, %v1793
        %v2070 = vsel %vm1899, %v1648, %v1795
        %v2074 = vsel %vm1899, %v1649, %v1797
        %v2078 = vsel %vm1899, %v1650, %v1799
        %v2082 = vsel %vm1899, %v1651, %v1801
        %v2086 = vsel %vm1899, %v1652, %v1803
        %v2090 = vsel %vm1899, %v1653, %v1805
        %v2094 = vsel %vm1899, %v1654, %v1807
        %v2098 = vsel %vm1899, %v1655, %v1809
        %v2102 = vsel %vm1899, %v1656, %v1811
        %v2106 = vsel %vm1899, %v1657, %v1813
        %v2110 = vsel %vm1899, %v1658, %v1815
        %v2114 = vsel %vm1899, %v1659, %v1817
        %v2118 = vsel %vm1899, %v1660, %v1819
        %v2122 = vsel %vm1899, %v1661, %v1821
        %v2126 = vsel %vm1899, %v1662, %v1823
        %v2130 = vsel %vm1899, %v1663, %v1825
        %v2134 = vsel %vm1899, %v1664, %v1827
        %v2138 = vsel %vm1899, %v1665, %v1829
        %v2142 = vsel %vm1899, %v1666, %v1831
        %v2146 = vsel %vm1899, %v1667, %v1833
        %v2150 = vsel %vm1899, %v1668, %v1835
        %v2154 = vsel %vm1899, %v1669, %v1837
        %v2158 = vsel %vm1899, %v1870, %v1884
        %v2162 = vsel %vm1899, %v1871, %v1886
        %v2166 = vsel %vm1899, %v1872, %v1888
        %v2170 = vsel %vm1899, %v1873, %v1890
        %v2174 = vsel %vm1899, %v1874, %v1892
        %v2178 = vsel %vm1899, %v1875, %v1894
        %v2182 = vsel %vm1899, %v1876, %v1896
        %v2186 = vsel %vm1899, %v1877, %v1898
        %v2188 = vld [vmem:[%s1] sm:$0xf]
        %v2189 = vld [vmem:[%s1 + $0x4] sm:$0xf]
        %v2190 = vld [vmem:[%s1 + $0x8] sm:$0xf]
        %v2191 = vld [vmem:[%s1 + $0xc] sm:$0xf]
        %v2192 = vld [vmem:[%s1 + $0x10] sm:$0xf]
        %v2193 = vld [vmem:[%s1 + $0x14] sm:$0xf]
        %v2194 = vld [vmem:[%s1 + $0x18] sm:$0xf]
        %v2195 = vld [vmem:[%s1 + $0x1c] sm:$0xf]
        %v2196 = vld [vmem:[%s1 + $0x20] sm:$0xf]
        %v2197 = vld [vmem:[%s1 + $0x24] sm:$0xf]
        %v2198 = vld [vmem:[%s1 + $0x28] sm:$0xf]
        %v2199 = vld [vmem:[%s1 + $0x2c] sm:$0xf]
        %v2200 = vld [vmem:[%s1 + $0x30] sm:$0xf]
        %v2201 = vld [vmem:[%s1 + $0x34] sm:$0xf]
        %v2202 = vld [vmem:[%s1 + $0x38] sm:$0xf]
        %v2203 = vld [vmem:[%s1 + $0x3c] sm:$0xf]
        %v2204 = vld [vmem:[%s1 + $0x40] sm:$0xf]
        %v2205 = vld [vmem:[%s1 + $0x44] sm:$0xf]
        %v2206 = vld [vmem:[%s1 + $0x48] sm:$0xf]
        %v2207 = vld [vmem:[%s1 + $0x4c] sm:$0xf]
        %v2208 = vld [vmem:[%s1 + $0x50] sm:$0xf]
        %v2209 = vld [vmem:[%s1 + $0x54] sm:$0xf]
        %v2210 = vld [vmem:[%s1 + $0x58] sm:$0xf]
        %v2211 = vld [vmem:[%s1 + $0x5c] sm:$0xf]
        %v2212 = vld [vmem:[%s1 + $0x60] sm:$0xf]
        %v2213 = vld [vmem:[%s1 + $0x64] sm:$0xf]
        %v2214 = vld [vmem:[%s1 + $0x68] sm:$0xf]
        %v2215 = vld [vmem:[%s1 + $0x6c] sm:$0xf]
        %v2216 = vld [vmem:[%s1 + $0x70] sm:$0xf]
        %v2217 = vld [vmem:[%s1 + $0x74] sm:$0xf]
        %v2218 = vld [vmem:[%s1 + $0x78] sm:$0xf]
        %v2219 = vld [vmem:[%s1 + $0x7c] sm:$0xf]
        %v2220 = vld [vmem:[%s2] sm:$0x1]
        %v2222 = vlaneseq
        %v2223 = vshrl.u32 %v2222, 7
        %v2224 = vsub.s32 0, %v2223
        %v2225 = vrot.slane %v2220, %v2224
        %v2259 = vunpack.c.l.b16 %v2188
        %v2260 = vunpack.c.l.b16 %v2189
        %v2261 = vunpack.c.l.b16 %v2190
        %v2262 = vunpack.c.l.b16 %v2191
        %v2263 = vunpack.c.l.b16 %v2192
        %v2264 = vunpack.c.l.b16 %v2193
        %v2265 = vunpack.c.l.b16 %v2194
        %v2266 = vunpack.c.l.b16 %v2195
        %v2267 = vunpack.c.l.b16 %v2196
        %v2268 = vunpack.c.l.b16 %v2197
        %v2269 = vunpack.c.l.b16 %v2198
        %v2270 = vunpack.c.l.b16 %v2199
        %v2271 = vunpack.c.l.b16 %v2200
        %v2272 = vunpack.c.l.b16 %v2201
        %v2273 = vunpack.c.l.b16 %v2202
        %v2274 = vunpack.c.l.b16 %v2203
        %v2275 = vunpack.c.l.b16 %v2204
        %v2276 = vunpack.c.l.b16 %v2205
        %v2277 = vunpack.c.l.b16 %v2206
        %v2278 = vunpack.c.l.b16 %v2207
        %v2279 = vunpack.c.l.b16 %v2208
        %v2280 = vunpack.c.l.b16 %v2209
        %v2281 = vunpack.c.l.b16 %v2210
        %v2282 = vunpack.c.l.b16 %v2211
        %v2283 = vunpack.c.l.b16 %v2212
        %v2284 = vunpack.c.l.b16 %v2213
        %v2285 = vunpack.c.l.b16 %v2214
        %v2286 = vunpack.c.l.b16 %v2215
        %v2287 = vunpack.c.l.b16 %v2216
        %v2288 = vunpack.c.l.b16 %v2217
        %v2289 = vunpack.c.l.b16 %v2218
        %v2290 = vunpack.c.l.b16 %v2219
        %v2291 = vpack.c.b16 %v2260, %v2259
        %v2292 = vpack.c.b16 %v2262, %v2261
        %v2293 = vpack.c.b16 %v2264, %v2263
        %v2294 = vpack.c.b16 %v2266, %v2265
        %v2295 = vpack.c.b16 %v2268, %v2267
        %v2296 = vpack.c.b16 %v2270, %v2269
        %v2297 = vpack.c.b16 %v2272, %v2271
        %v2298 = vpack.c.b16 %v2274, %v2273
        %v2299 = vpack.c.b16 %v2276, %v2275
        %v2300 = vpack.c.b16 %v2278, %v2277
        %v2301 = vpack.c.b16 %v2280, %v2279
        %v2302 = vpack.c.b16 %v2282, %v2281
        %v2303 = vpack.c.b16 %v2284, %v2283
        %v2304 = vpack.c.b16 %v2286, %v2285
        %v2305 = vpack.c.b16 %v2288, %v2287
        %v2306 = vpack.c.b16 %v2290, %v2289
        %2323 = vmatprep.subr.bf16.mxu0 0
        %2324 = vmatpush1.bf16.msra.mxu0 %v2298
        %2325 = vmatprep.subr.bf16.mxu0 0
        %2326 = vmatpush1.bf16.msra.mxu0 %v2297
        %2327 = vmatprep.subr.bf16.mxu0 0
        %2328 = vmatpush1.bf16.msra.mxu0 %v2296
        %2329 = vmatprep.subr.bf16.mxu0 0
        %2330 = vmatpush1.bf16.msra.mxu0 %v2295
        %2331 = vmatprep.subr.bf16.mxu0 0
        %2332 = vmatpush1.bf16.msra.mxu0 %v2294
        %2333 = vmatprep.subr.bf16.mxu0 0
        %2334 = vmatpush1.bf16.msra.mxu0 %v2293
        %2335 = vmatprep.subr.bf16.mxu0 0
        %2336 = vmatpush1.bf16.msra.mxu0 %v2292
        %2337 = vmatprep.subr.bf16.mxu0 0
        %2338 = vmatpush1.bf16.msra.mxu0 %v2291
        %2339 = vmatprep.subr.bf16.mxu0 0
        %2340 = vmatpush2.bf16.msra.mxu0 %v2306
        %2341 = vmatprep.subr.bf16.mxu0 0
        %2342 = vmatpush2.bf16.msra.mxu0 %v2305
        %2343 = vmatprep.subr.bf16.mxu0 0
        %2344 = vmatpush2.bf16.msra.mxu0 %v2304
        %2345 = vmatprep.subr.bf16.mxu0 0
        %2346 = vmatpush2.bf16.msra.mxu0 %v2303
        %2347 = vmatprep.subr.bf16.mxu0 0
        %2348 = vmatpush2.bf16.msra.mxu0 %v2302
        %2349 = vmatprep.subr.bf16.mxu0 0
        %2350 = vmatpush2.bf16.msra.mxu0 %v2301
        %2351 = vmatprep.subr.bf16.mxu0 0
        %2352 = vmatpush2.bf16.msra.mxu0 %v2300
        %2353 = vmatprep.subr.bf16.mxu0 0
        %2354 = vmatpush2.bf16.msra.mxu0 %v2299
        %2355 = vmatprep.mubr.bf16.mxu0 %v1934
        %2356 = vmatmul.mubr.bf16.gmra.mxu0 %v1902
        %v2357 = vpop.f32.mrf.mxu0
        %v2358 = vadd.f32 %v2225, %v2357
        %v2359 = vpop.f32.mrf.mxu0
        %v2360 = vpop.f32.mrf.mxu0
        %v2361 = vadd.f32 %v2225, %v2360
        %v2362 = vpop.f32.mrf.mxu0
        %2363 = vmatprep.mubr.bf16.mxu0 %v1938
        %2364 = vmatmul.mubr.bf16.gmra.mxu0 %v1906
        %v2365 = vpop.f32.mrf.mxu0
        %v2366 = vadd.f32 %v2225, %v2365
        %v2367 = vpop.f32.mrf.mxu0
        %v2368 = vpop.f32.mrf.mxu0
        %v2369 = vadd.f32 %v2225, %v2368
        %v2370 = vpop.f32.mrf.mxu0
        %2371 = vmatprep.mubr.bf16.mxu0 %v1942
        %2372 = vmatmul.mubr.bf16.gmra.mxu0 %v1910
        %v2373 = vpop.f32.mrf.mxu0
        %v2374 = vadd.f32 %v2225, %v2373
        %v2375 = vpop.f32.mrf.mxu0
        %v2376 = vpop.f32.mrf.mxu0
        %v2377 = vadd.f32 %v2225, %v2376
        %v2378 = vpop.f32.mrf.mxu0
        %2379 = vmatprep.mubr.bf16.mxu0 %v1946
        %2380 = vmatmul.mubr.bf16.gmra.mxu0 %v1914
        %v2381 = vpop.f32.mrf.mxu0
        %v2382 = vadd.f32 %v2225, %v2381
        %v2383 = vpop.f32.mrf.mxu0
        %v2384 = vpop.f32.mrf.mxu0
        %v2385 = vadd.f32 %v2225, %v2384
        %v2386 = vpop.f32.mrf.mxu0
        %2387 = vmatprep.mubr.bf16.mxu0 %v1950
        %2388 = vmatmul.mubr.bf16.gmra.mxu0 %v1918
        %v2389 = vpop.f32.mrf.mxu0
        %v2390 = vadd.f32 %v2225, %v2389
        %v2391 = vpop.f32.mrf.mxu0
        %v2392 = vpop.f32.mrf.mxu0
        %v2393 = vadd.f32 %v2225, %v2392
        %v2394 = vpop.f32.mrf.mxu0
        %2395 = vmatprep.mubr.bf16.mxu0 %v1954
        %2396 = vmatmul.mubr.bf16.gmra.mxu0 %v1922
        %v2397 = vpop.f32.mrf.mxu0
        %v2398 = vadd.f32 %v2225, %v2397
        %v2399 = vpop.f32.mrf.mxu0
        %v2400 = vpop.f32.mrf.mxu0
        %v2401 = vadd.f32 %v2225, %v2400
        %v2402 = vpop.f32.mrf.mxu0
        %2403 = vmatprep.mubr.bf16.mxu0 %v1958
        %2404 = vmatmul.mubr.bf16.gmra.mxu0 %v1926
        %v2405 = vpop.f32.mrf.mxu0
        %v2406 = vadd.f32 %v2225, %v2405
        %v2407 = vpop.f32.mrf.mxu0
        %v2408 = vpop.f32.mrf.mxu0
        %v2409 = vadd.f32 %v2225, %v2408
        %v2410 = vpop.f32.mrf.mxu0
        %2411 = vmatprep.mubr.bf16.mxu0 %v1962
        %2412 = vmatmul.mubr.bf16.gmra.mxu0 %v1930
        %v2413 = vpop.f32.mrf.mxu0
        %v2414 = vadd.f32 %v2225, %v2413
        %v2415 = vpop.f32.mrf.mxu0
        %v2416 = vpop.f32.mrf.mxu0
        %v2417 = vadd.f32 %v2225, %v2416
        %v2418 = vpop.f32.mrf.mxu0
        %2419 = vmatprep.mubr.bf16.mxu0 %v1966
        %2420 = vmatmul.mubr.bf16.gmra.mxu0 %v1934
        %v2421 = vpop.f32.mrf.mxu0
        %v2422 = vadd.f32 %v2225, %v2421
        %v2423 = vpop.f32.mrf.mxu0
        %v2424 = vpop.f32.mrf.mxu0
        %v2425 = vadd.f32 %v2225, %v2424
        %v2426 = vpop.f32.mrf.mxu0
        %2427 = vmatprep.mubr.bf16.mxu0 %v1970
        %2428 = vmatmul.mubr.bf16.gmra.mxu0 %v1938
        %v2429 = vpop.f32.mrf.mxu0
        %v2430 = vadd.f32 %v2225, %v2429
        %v2431 = vpop.f32.mrf.mxu0
        %v2432 = vpop.f32.mrf.mxu0
        %v2433 = vadd.f32 %v2225, %v2432
        %v2434 = vpop.f32.mrf.mxu0
        %2435 = vmatprep.mubr.bf16.mxu0 %v1974
        %2436 = vmatmul.mubr.bf16.gmra.mxu0 %v1942
        %v2437 = vpop.f32.mrf.mxu0
        %v2438 = vadd.f32 %v2225, %v2437
        %v2439 = vpop.f32.mrf.mxu0
        %v2440 = vpop.f32.mrf.mxu0
        %v2441 = vadd.f32 %v2225, %v2440
        %v2442 = vpop.f32.mrf.mxu0
        %2443 = vmatprep.mubr.bf16.mxu0 %v1978
        %2444 = vmatmul.mubr.bf16.gmra.mxu0 %v1946
        %v2445 = vpop.f32.mrf.mxu0
        %v2446 = vadd.f32 %v2225, %v2445
        %v2447 = vpop.f32.mrf.mxu0
        %v2448 = vpop.f32.mrf.mxu0
        %v2449 = vadd.f32 %v2225, %v2448
        %v2450 = vpop.f32.mrf.mxu0
        %2451 = vmatprep.mubr.bf16.mxu0 %v1982
        %2452 = vmatmul.mubr.bf16.gmra.mxu0 %v1950
        %v2453 = vpop.f32.mrf.mxu0
        %v2454 = vadd.f32 %v2225, %v2453
        %v2455 = vpop.f32.mrf.mxu0
        %v2456 = vpop.f32.mrf.mxu0
        %v2457 = vadd.f32 %v2225, %v2456
        %v2458 = vpop.f32.mrf.mxu0
        %2459 = vmatprep.mubr.bf16.mxu0 %v1986
        %2460 = vmatmul.mubr.bf16.gmra.mxu0 %v1954
        %v2461 = vpop.f32.mrf.mxu0
        %v2462 = vadd.f32 %v2225, %v2461
        %v2463 = vpop.f32.mrf.mxu0
        %v2464 = vpop.f32.mrf.mxu0
        %v2465 = vadd.f32 %v2225, %v2464
        %v2466 = vpop.f32.mrf.mxu0
        %2467 = vmatprep.mubr.bf16.mxu0 %v1990
        %2468 = vmatmul.mubr.bf16.gmra.mxu0 %v1958
        %v2469 = vpop.f32.mrf.mxu0
        %v2470 = vadd.f32 %v2225, %v2469
        %v2471 = vpop.f32.mrf.mxu0
        %v2472 = vpop.f32.mrf.mxu0
        %v2473 = vadd.f32 %v2225, %v2472
        %v2474 = vpop.f32.mrf.mxu0
        %2475 = vmatprep.mubr.bf16.mxu0 %v1994
        %2476 = vmatmul.mubr.bf16.gmra.mxu0 %v1962
        %v2477 = vpop.f32.mrf.mxu0
        %v2478 = vadd.f32 %v2225, %v2477
        %v2479 = vpop.f32.mrf.mxu0
        %v2480 = vpop.f32.mrf.mxu0
        %v2481 = vadd.f32 %v2225, %v2480
        %v2482 = vpop.f32.mrf.mxu0
        %2483 = vmatprep.mubr.bf16.mxu0 %v1998
        %2484 = vmatmul.mubr.bf16.gmra.mxu0 %v1966
        %v2485 = vpop.f32.mrf.mxu0
        %v2486 = vadd.f32 %v2225, %v2485
        %v2487 = vpop.f32.mrf.mxu0
        %v2488 = vpop.f32.mrf.mxu0
        %v2489 = vadd.f32 %v2225, %v2488
        %v2490 = vpop.f32.mrf.mxu0
        %2491 = vmatprep.mubr.bf16.mxu0 %v2002
        %2492 = vmatmul.mubr.bf16.gmra.mxu0 %v1970
        %v2493 = vpop.f32.mrf.mxu0
        %v2494 = vadd.f32 %v2225, %v2493
        %v2495 = vpop.f32.mrf.mxu0
        %v2496 = vpop.f32.mrf.mxu0
        %v2497 = vadd.f32 %v2225, %v2496
        %v2498 = vpop.f32.mrf.mxu0
        %2499 = vmatprep.mubr.bf16.mxu0 %v2006
        %2500 = vmatmul.mubr.bf16.gmra.mxu0 %v1974
        %v2501 = vpop.f32.mrf.mxu0
        %v2502 = vadd.f32 %v2225, %v2501
        %v2503 = vpop.f32.mrf.mxu0
        %v2504 = vpop.f32.mrf.mxu0
        %v2505 = vadd.f32 %v2225, %v2504
        %v2506 = vpop.f32.mrf.mxu0
        %2507 = vmatprep.mubr.bf16.mxu0 %v2010
        %2508 = vmatmul.mubr.bf16.gmra.mxu0 %v1978
        %v2509 = vpop.f32.mrf.mxu0
        %v2510 = vadd.f32 %v2225, %v2509
        %v2511 = vpop.f32.mrf.mxu0
        %v2512 = vpop.f32.mrf.mxu0
        %v2513 = vadd.f32 %v2225, %v2512
        %v2514 = vpop.f32.mrf.mxu0
        %2515 = vmatprep.mubr.bf16.mxu0 %v2014
        %2516 = vmatmul.mubr.bf16.gmra.mxu0 %v1982
        %v2517 = vpop.f32.mrf.mxu0
        %v2518 = vadd.f32 %v2225, %v2517
        %v2519 = vpop.f32.mrf.mxu0
        %v2520 = vpop.f32.mrf.mxu0
        %v2521 = vadd.f32 %v2225, %v2520
        %v2522 = vpop.f32.mrf.mxu0
        %2523 = vmatprep.mubr.bf16.mxu0 %v2018
        %2524 = vmatmul.mubr.bf16.gmra.mxu0 %v1986
        %v2525 = vpop.f32.mrf.mxu0
        %v2526 = vadd.f32 %v2225, %v2525
        %v2527 = vpop.f32.mrf.mxu0
        %v2528 = vpop.f32.mrf.mxu0
        %v2529 = vadd.f32 %v2225, %v2528
        %v2530 = vpop.f32.mrf.mxu0
        %2531 = vmatprep.mubr.bf16.mxu0 %v2022
        %2532 = vmatmul.mubr.bf16.gmra.mxu0 %v1990
        %v2533 = vpop.f32.mrf.mxu0
        %v2534 = vadd.f32 %v2225, %v2533
        %v2535 = vpop.f32.mrf.mxu0
        %v2536 = vpop.f32.mrf.mxu0
        %v2537 = vadd.f32 %v2225, %v2536
        %v2538 = vpop.f32.mrf.mxu0
        %2539 = vmatprep.mubr.bf16.mxu0 %v2026
        %2540 = vmatmul.mubr.bf16.gmra.mxu0 %v1994
        %v2541 = vpop.f32.mrf.mxu0
        %v2542 = vadd.f32 %v2225, %v2541
        %v2543 = vpop.f32.mrf.mxu0
        %v2544 = vpop.f32.mrf.mxu0
        %v2545 = vadd.f32 %v2225, %v2544
        %v2546 = vpop.f32.mrf.mxu0
        %2547 = vmatprep.mubr.bf16.mxu0 %v2030
        %2548 = vmatmul.mubr.bf16.gmra.mxu0 %v1998
        %v2549 = vpop.f32.mrf.mxu0
        %v2550 = vadd.f32 %v2225, %v2549
        %v2551 = vpop.f32.mrf.mxu0
        %v2552 = vpop.f32.mrf.mxu0
        %v2553 = vadd.f32 %v2225, %v2552
        %v2554 = vpop.f32.mrf.mxu0
        %2555 = vmatprep.mubr.bf16.mxu0 %v2034
        %2556 = vmatmul.mubr.bf16.gmra.mxu0 %v2002
        %v2557 = vpop.f32.mrf.mxu0
        %v2558 = vadd.f32 %v2225, %v2557
        %v2559 = vpop.f32.mrf.mxu0
        %v2560 = vpop.f32.mrf.mxu0
        %v2561 = vadd.f32 %v2225, %v2560
        %v2562 = vpop.f32.mrf.mxu0
        %2563 = vmatprep.mubr.bf16.mxu0 %v2038
        %2564 = vmatmul.mubr.bf16.gmra.mxu0 %v2006
        %v2565 = vpop.f32.mrf.mxu0
        %v2566 = vadd.f32 %v2225, %v2565
        %v2567 = vpop.f32.mrf.mxu0
        %v2568 = vpop.f32.mrf.mxu0
        %v2569 = vadd.f32 %v2225, %v2568
        %v2570 = vpop.f32.mrf.mxu0
        %2571 = vmatprep.mubr.bf16.mxu0 %v2042
        %2572 = vmatmul.mubr.bf16.gmra.mxu0 %v2010
        %v2573 = vpop.f32.mrf.mxu0
        %v2574 = vadd.f32 %v2225, %v2573
        %v2575 = vpop.f32.mrf.mxu0
        %v2576 = vpop.f32.mrf.mxu0
        %v2577 = vadd.f32 %v2225, %v2576
        %v2578 = vpop.f32.mrf.mxu0
        %2579 = vmatprep.mubr.bf16.mxu0 %v2046
        %2580 = vmatmul.mubr.bf16.gmra.mxu0 %v2014
        %v2581 = vpop.f32.mrf.mxu0
        %v2582 = vadd.f32 %v2225, %v2581
        %v2583 = vpop.f32.mrf.mxu0
        %v2584 = vpop.f32.mrf.mxu0
        %v2585 = vadd.f32 %v2225, %v2584
        %v2586 = vpop.f32.mrf.mxu0
        %2587 = vmatprep.mubr.bf16.mxu0 %v2050
        %2588 = vmatmul.mubr.bf16.gmra.mxu0 %v2018
        %v2589 = vpop.f32.mrf.mxu0
        %v2590 = vadd.f32 %v2225, %v2589
        %v2591 = vpop.f32.mrf.mxu0
        %v2592 = vpop.f32.mrf.mxu0
        %v2593 = vadd.f32 %v2225, %v2592
        %v2594 = vpop.f32.mrf.mxu0
        %2595 = vmatprep.mubr.bf16.mxu0 %v2054
        %2596 = vmatmul.mubr.bf16.gmra.mxu0 %v2022
        %v2597 = vpop.f32.mrf.mxu0
        %v2598 = vadd.f32 %v2225, %v2597
        %v2599 = vpop.f32.mrf.mxu0
        %v2600 = vpop.f32.mrf.mxu0
        %v2601 = vadd.f32 %v2225, %v2600
        %v2602 = vpop.f32.mrf.mxu0
        %2603 = vmatprep.mubr.bf16.mxu0 %v2058
        %2604 = vmatmul.mubr.bf16.gmra.mxu0 %v2026
        %v2605 = vpop.f32.mrf.mxu0
        %v2606 = vadd.f32 %v2225, %v2605
        %v2607 = vpop.f32.mrf.mxu0
        %v2608 = vpop.f32.mrf.mxu0
        %v2609 = vadd.f32 %v2225, %v2608
        %v2610 = vpop.f32.mrf.mxu0
        %2611 = vmatprep.mubr.bf16.mxu0 %v2062
        %2612 = vmatmul.mubr.bf16.gmra.mxu0 %v2030
        %v2613 = vpop.f32.mrf.mxu0
        %v2614 = vadd.f32 %v2225, %v2613
        %v2615 = vpop.f32.mrf.mxu0
        %v2616 = vpop.f32.mrf.mxu0
        %v2617 = vadd.f32 %v2225, %v2616
        %v2618 = vpop.f32.mrf.mxu0
        %2619 = vmatprep.mubr.bf16.mxu0 %v2066
        %2620 = vmatmul.mubr.bf16.gmra.mxu0 %v2034
        %v2621 = vpop.f32.mrf.mxu0
        %v2622 = vadd.f32 %v2225, %v2621
        %v2623 = vpop.f32.mrf.mxu0
        %v2624 = vpop.f32.mrf.mxu0
        %v2625 = vadd.f32 %v2225, %v2624
        %v2626 = vpop.f32.mrf.mxu0
        %2627 = vmatprep.mubr.bf16.mxu0 %v2070
        %2628 = vmatmul.mubr.bf16.gmra.mxu0 %v2038
        %v2629 = vpop.f32.mrf.mxu0
        %v2630 = vadd.f32 %v2225, %v2629
        %v2631 = vpop.f32.mrf.mxu0
        %v2632 = vpop.f32.mrf.mxu0
        %v2633 = vadd.f32 %v2225, %v2632
        %v2634 = vpop.f32.mrf.mxu0
        %2635 = vmatprep.mubr.bf16.mxu0 %v2074
        %2636 = vmatmul.mubr.bf16.gmra.mxu0 %v2042
        %v2637 = vpop.f32.mrf.mxu0
        %v2638 = vadd.f32 %v2225, %v2637
        %v2639 = vpop.f32.mrf.mxu0
        %v2640 = vpop.f32.mrf.mxu0
        %v2641 = vadd.f32 %v2225, %v2640
        %v2642 = vpop.f32.mrf.mxu0
        %2643 = vmatprep.mubr.bf16.mxu0 %v2078
        %2644 = vmatmul.mubr.bf16.gmra.mxu0 %v2046
        %v2645 = vpop.f32.mrf.mxu0
        %v2646 = vadd.f32 %v2225, %v2645
        %v2647 = vpop.f32.mrf.mxu0
        %v2648 = vpop.f32.mrf.mxu0
        %v2649 = vadd.f32 %v2225, %v2648
        %v2650 = vpop.f32.mrf.mxu0
        %2651 = vmatprep.mubr.bf16.mxu0 %v2082
        %2652 = vmatmul.mubr.bf16.gmra.mxu0 %v2050
        %v2653 = vpop.f32.mrf.mxu0
        %v2654 = vadd.f32 %v2225, %v2653
        %v2655 = vpop.f32.mrf.mxu0
        %v2656 = vpop.f32.mrf.mxu0
        %v2657 = vadd.f32 %v2225, %v2656
        %v2658 = vpop.f32.mrf.mxu0
        %2659 = vmatprep.mubr.bf16.mxu0 %v2086
        %2660 = vmatmul.mubr.bf16.gmra.mxu0 %v2054
        %v2661 = vpop.f32.mrf.mxu0
        %v2662 = vadd.f32 %v2225, %v2661
        %v2663 = vpop.f32.mrf.mxu0
        %v2664 = vpop.f32.mrf.mxu0
        %v2665 = vadd.f32 %v2225, %v2664
        %v2666 = vpop.f32.mrf.mxu0
        %2667 = vmatprep.mubr.bf16.mxu0 %v2090
        %2668 = vmatmul.mubr.bf16.gmra.mxu0 %v2058
        %v2669 = vpop.f32.mrf.mxu0
        %v2670 = vadd.f32 %v2225, %v2669
        %v2671 = vpop.f32.mrf.mxu0
        %v2672 = vpop.f32.mrf.mxu0
        %v2673 = vadd.f32 %v2225, %v2672
        %v2674 = vpop.f32.mrf.mxu0
        %2675 = vmatprep.mubr.bf16.mxu0 %v2094
        %2676 = vmatmul.mubr.bf16.gmra.mxu0 %v2062
        %v2677 = vpop.f32.mrf.mxu0
        %v2678 = vadd.f32 %v2225, %v2677
        %v2679 = vpop.f32.mrf.mxu0
        %v2680 = vpop.f32.mrf.mxu0
        %v2681 = vadd.f32 %v2225, %v2680
        %v2682 = vpop.f32.mrf.mxu0
        %2683 = vmatprep.mubr.bf16.mxu0 %v2098
        %2684 = vmatmul.mubr.bf16.gmra.mxu0 %v2066
        %v2685 = vpop.f32.mrf.mxu0
        %v2686 = vadd.f32 %v2225, %v2685
        %v2687 = vpop.f32.mrf.mxu0
        %v2688 = vpop.f32.mrf.mxu0
        %v2689 = vadd.f32 %v2225, %v2688
        %v2690 = vpop.f32.mrf.mxu0
        %2691 = vmatprep.mubr.bf16.mxu0 %v2102
        %2692 = vmatmul.mubr.bf16.gmra.mxu0 %v2070
        %v2693 = vpop.f32.mrf.mxu0
        %v2694 = vadd.f32 %v2225, %v2693
        %v2695 = vpop.f32.mrf.mxu0
        %v2696 = vpop.f32.mrf.mxu0
        %v2697 = vadd.f32 %v2225, %v2696
        %v2698 = vpop.f32.mrf.mxu0
        %2699 = vmatprep.mubr.bf16.mxu0 %v2106
        %2700 = vmatmul.mubr.bf16.gmra.mxu0 %v2074
        %v2701 = vpop.f32.mrf.mxu0
        %v2702 = vadd.f32 %v2225, %v2701
        %v2703 = vpop.f32.mrf.mxu0
        %v2704 = vpop.f32.mrf.mxu0
        %v2705 = vadd.f32 %v2225, %v2704
        %v2706 = vpop.f32.mrf.mxu0
        %2707 = vmatprep.mubr.bf16.mxu0 %v2110
        %2708 = vmatmul.mubr.bf16.gmra.mxu0 %v2078
        %v2709 = vpop.f32.mrf.mxu0
        %v2710 = vadd.f32 %v2225, %v2709
        %v2711 = vpop.f32.mrf.mxu0
        %v2712 = vpop.f32.mrf.mxu0
        %v2713 = vadd.f32 %v2225, %v2712
        %v2714 = vpop.f32.mrf.mxu0
        %2715 = vmatprep.mubr.bf16.mxu0 %v2114
        %2716 = vmatmul.mubr.bf16.gmra.mxu0 %v2082
        %v2717 = vpop.f32.mrf.mxu0
        %v2718 = vadd.f32 %v2225, %v2717
        %v2719 = vpop.f32.mrf.mxu0
        %v2720 = vpop.f32.mrf.mxu0
        %v2721 = vadd.f32 %v2225, %v2720
        %v2722 = vpop.f32.mrf.mxu0
        %2723 = vmatprep.mubr.bf16.mxu0 %v2118
        %2724 = vmatmul.mubr.bf16.gmra.mxu0 %v2086
        %v2725 = vpop.f32.mrf.mxu0
        %v2726 = vadd.f32 %v2225, %v2725
        %v2727 = vpop.f32.mrf.mxu0
        %v2728 = vpop.f32.mrf.mxu0
        %v2729 = vadd.f32 %v2225, %v2728
        %v2730 = vpop.f32.mrf.mxu0
        %2731 = vmatprep.mubr.bf16.mxu0 %v2122
        %2732 = vmatmul.mubr.bf16.gmra.mxu0 %v2090
        %v2733 = vpop.f32.mrf.mxu0
        %v2734 = vadd.f32 %v2225, %v2733
        %v2735 = vpop.f32.mrf.mxu0
        %v2736 = vpop.f32.mrf.mxu0
        %v2737 = vadd.f32 %v2225, %v2736
        %v2738 = vpop.f32.mrf.mxu0
        %2739 = vmatprep.mubr.bf16.mxu0 %v2126
        %2740 = vmatmul.mubr.bf16.gmra.mxu0 %v2094
        %v2741 = vpop.f32.mrf.mxu0
        %v2742 = vadd.f32 %v2225, %v2741
        %v2743 = vpop.f32.mrf.mxu0
        %v2744 = vpop.f32.mrf.mxu0
        %v2745 = vadd.f32 %v2225, %v2744
        %v2746 = vpop.f32.mrf.mxu0
        %2747 = vmatprep.mubr.bf16.mxu0 %v2130
        %2748 = vmatmul.mubr.bf16.gmra.mxu0 %v2098
        %v2749 = vpop.f32.mrf.mxu0
        %v2750 = vadd.f32 %v2225, %v2749
        %v2751 = vpop.f32.mrf.mxu0
        %v2752 = vpop.f32.mrf.mxu0
        %v2753 = vadd.f32 %v2225, %v2752
        %v2754 = vpop.f32.mrf.mxu0
        %2755 = vmatprep.mubr.bf16.mxu0 %v2134
        %2756 = vmatmul.mubr.bf16.gmra.mxu0 %v2102
        %v2757 = vpop.f32.mrf.mxu0
        %v2758 = vadd.f32 %v2225, %v2757
        %v2759 = vpop.f32.mrf.mxu0
        %v2760 = vpop.f32.mrf.mxu0
        %v2761 = vadd.f32 %v2225, %v2760
        %v2762 = vpop.f32.mrf.mxu0
        %2763 = vmatprep.mubr.bf16.mxu0 %v2138
        %2764 = vmatmul.mubr.bf16.gmra.mxu0 %v2106
        %v2765 = vpop.f32.mrf.mxu0
        %v2766 = vadd.f32 %v2225, %v2765
        %v2767 = vpop.f32.mrf.mxu0
        %v2768 = vpop.f32.mrf.mxu0
        %v2769 = vadd.f32 %v2225, %v2768
        %v2770 = vpop.f32.mrf.mxu0
        %2771 = vmatprep.mubr.bf16.mxu0 %v2142
        %2772 = vmatmul.mubr.bf16.gmra.mxu0 %v2110
        %v2773 = vpop.f32.mrf.mxu0
        %v2774 = vadd.f32 %v2225, %v2773
        %v2775 = vpop.f32.mrf.mxu0
        %v2776 = vpop.f32.mrf.mxu0
        %v2777 = vadd.f32 %v2225, %v2776
        %v2778 = vpop.f32.mrf.mxu0
        %2779 = vmatprep.mubr.bf16.mxu0 %v2146
        %2780 = vmatmul.mubr.bf16.gmra.mxu0 %v2114
        %v2781 = vpop.f32.mrf.mxu0
        %v2782 = vadd.f32 %v2225, %v2781
        %v2783 = vpop.f32.mrf.mxu0
        %v2784 = vpop.f32.mrf.mxu0
        %v2785 = vadd.f32 %v2225, %v2784
        %v2786 = vpop.f32.mrf.mxu0
        %2787 = vmatprep.mubr.bf16.mxu0 %v2150
        %2788 = vmatmul.mubr.bf16.gmra.mxu0 %v2118
        %v2789 = vpop.f32.mrf.mxu0
        %v2790 = vadd.f32 %v2225, %v2789
        %v2791 = vpop.f32.mrf.mxu0
        %v2792 = vpop.f32.mrf.mxu0
        %v2793 = vadd.f32 %v2225, %v2792
        %v2794 = vpop.f32.mrf.mxu0
        %2795 = vmatprep.mubr.bf16.mxu0 %v2154
        %2796 = vmatmul.mubr.bf16.gmra.mxu0 %v2122
        %v2797 = vpop.f32.mrf.mxu0
        %v2798 = vadd.f32 %v2225, %v2797
        %v2799 = vpop.f32.mrf.mxu0
        %v2800 = vpop.f32.mrf.mxu0
        %v2801 = vadd.f32 %v2225, %v2800
        %v2802 = vpop.f32.mrf.mxu0
        %2803 = vmatprep.mubr.bf16.mxu0 %v2158
        %2804 = vmatmul.mubr.bf16.gmra.mxu0 %v2126
        %v2805 = vpop.f32.mrf.mxu0
        %v2806 = vadd.f32 %v2225, %v2805
        %v2807 = vpop.f32.mrf.mxu0
        %v2808 = vpop.f32.mrf.mxu0
        %v2809 = vadd.f32 %v2225, %v2808
        %v2810 = vpop.f32.mrf.mxu0
        %2811 = vmatprep.mubr.bf16.mxu0 %v2162
        %2812 = vmatmul.mubr.bf16.gmra.mxu0 %v2130
        %v2813 = vpop.f32.mrf.mxu0
        %v2814 = vadd.f32 %v2225, %v2813
        %v2815 = vpop.f32.mrf.mxu0
        %v2816 = vpop.f32.mrf.mxu0
        %v2817 = vadd.f32 %v2225, %v2816
        %v2818 = vpop.f32.mrf.mxu0
        %2819 = vmatprep.mubr.bf16.mxu0 %v2166
        %2820 = vmatmul.mubr.bf16.gmra.mxu0 %v2134
        %v2821 = vpop.f32.mrf.mxu0
        %v2822 = vadd.f32 %v2225, %v2821
        %v2823 = vpop.f32.mrf.mxu0
        %v2824 = vpop.f32.mrf.mxu0
        %v2825 = vadd.f32 %v2225, %v2824
        %v2826 = vpop.f32.mrf.mxu0
        %2827 = vmatprep.mubr.bf16.mxu0 %v2170
        %2828 = vmatmul.mubr.bf16.gmra.mxu0 %v2138
        %v2829 = vpop.f32.mrf.mxu0
        %v2830 = vadd.f32 %v2225, %v2829
        %v2831 = vpop.f32.mrf.mxu0
        %v2832 = vpop.f32.mrf.mxu0
        %v2833 = vadd.f32 %v2225, %v2832
        %v2834 = vpop.f32.mrf.mxu0
        %2835 = vmatprep.mubr.bf16.mxu0 %v2174
        %2836 = vmatmul.mubr.bf16.gmra.mxu0 %v2142
        %v2837 = vpop.f32.mrf.mxu0
        %v2838 = vadd.f32 %v2225, %v2837
        %v2839 = vpop.f32.mrf.mxu0
        %v2840 = vpop.f32.mrf.mxu0
        %v2841 = vadd.f32 %v2225, %v2840
        %v2842 = vpop.f32.mrf.mxu0
        %2843 = vmatprep.mubr.bf16.mxu0 %v2178
        %2844 = vmatmul.mubr.bf16.gmra.mxu0 %v2146
        %v2845 = vpop.f32.mrf.mxu0
        %v2846 = vadd.f32 %v2225, %v2845
        %v2847 = vpop.f32.mrf.mxu0
        %v2848 = vpop.f32.mrf.mxu0
        %v2849 = vadd.f32 %v2225, %v2848
        %v2850 = vpop.f32.mrf.mxu0
        %2851 = vmatprep.mubr.bf16.mxu0 %v2182
        %2852 = vmatmul.mubr.bf16.gmra.mxu0 %v2150
        %v2853 = vpop.f32.mrf.mxu0
        %v2854 = vadd.f32 %v2225, %v2853
        %v2855 = vpop.f32.mrf.mxu0
        %v2856 = vpop.f32.mrf.mxu0
        %v2857 = vadd.f32 %v2225, %v2856
        %v2858 = vpop.f32.mrf.mxu0
        %2859 = vmatprep.mubr.bf16.mxu0 %v2186
        %2860 = vmatmul.mubr.bf16.gmra.mxu0 %v2154
        %v2861 = vpop.f32.mrf.mxu0
        %v2862 = vadd.f32 %v2225, %v2861
        %v2863 = vpop.f32.mrf.mxu0
        %v2864 = vpop.f32.mrf.mxu0
        %v2865 = vadd.f32 %v2225, %v2864
        %v2866 = vpop.f32.mrf.mxu0
        %2867 = vdwg.mxu0
        %v2868 = vmax.f32 %v2358, 0.0
        %v2869 = vmax.f32 %v2361, 0.0
        %v2870 = vmax.f32 %v2366, 0.0
        %v2871 = vmax.f32 %v2369, 0.0
        %v2872 = vmax.f32 %v2374, 0.0
        %v2873 = vmax.f32 %v2377, 0.0
        %v2874 = vmax.f32 %v2382, 0.0
        %v2875 = vmax.f32 %v2385, 0.0
        %v2876 = vmax.f32 %v2390, 0.0
        %v2877 = vmax.f32 %v2393, 0.0
        %v2878 = vmax.f32 %v2398, 0.0
        %v2879 = vmax.f32 %v2401, 0.0
        %v2880 = vmax.f32 %v2406, 0.0
        %v2881 = vmax.f32 %v2409, 0.0
        %v2882 = vmax.f32 %v2414, 0.0
        %v2883 = vmax.f32 %v2417, 0.0
        %v2884 = vmax.f32 %v2422, 0.0
        %v2885 = vmax.f32 %v2425, 0.0
        %v2886 = vmax.f32 %v2430, 0.0
        %v2887 = vmax.f32 %v2433, 0.0
        %v2888 = vmax.f32 %v2438, 0.0
        %v2889 = vmax.f32 %v2441, 0.0
        %v2890 = vmax.f32 %v2446, 0.0
        %v2891 = vmax.f32 %v2449, 0.0
        %v2892 = vmax.f32 %v2454, 0.0
        %v2893 = vmax.f32 %v2457, 0.0
        %v2894 = vmax.f32 %v2462, 0.0
        %v2895 = vmax.f32 %v2465, 0.0
        %v2896 = vmax.f32 %v2470, 0.0
        %v2897 = vmax.f32 %v2473, 0.0
        %v2898 = vmax.f32 %v2478, 0.0
        %v2899 = vmax.f32 %v2481, 0.0
        %v2900 = vmax.f32 %v2486, 0.0
        %v2901 = vmax.f32 %v2489, 0.0
        %v2902 = vmax.f32 %v2494, 0.0
        %v2903 = vmax.f32 %v2497, 0.0
        %v2904 = vmax.f32 %v2502, 0.0
        %v2905 = vmax.f32 %v2505, 0.0
        %v2906 = vmax.f32 %v2510, 0.0
        %v2907 = vmax.f32 %v2513, 0.0
        %v2908 = vmax.f32 %v2518, 0.0
        %v2909 = vmax.f32 %v2521, 0.0
        %v2910 = vmax.f32 %v2526, 0.0
        %v2911 = vmax.f32 %v2529, 0.0
        %v2912 = vmax.f32 %v2534, 0.0
        %v2913 = vmax.f32 %v2537, 0.0
        %v2914 = vmax.f32 %v2542, 0.0
        %v2915 = vmax.f32 %v2545, 0.0
        %v2916 = vmax.f32 %v2550, 0.0
        %v2917 = vmax.f32 %v2553, 0.0
        %v2918 = vmax.f32 %v2558, 0.0
        %v2919 = vmax.f32 %v2561, 0.0
        %v2920 = vmax.f32 %v2566, 0.0
        %v2921 = vmax.f32 %v2569, 0.0
        %v2922 = vmax.f32 %v2574, 0.0
        %v2923 = vmax.f32 %v2577, 0.0
        %v2924 = vmax.f32 %v2582, 0.0
        %v2925 = vmax.f32 %v2585, 0.0
        %v2926 = vmax.f32 %v2590, 0.0
        %v2927 = vmax.f32 %v2593, 0.0
        %v2928 = vmax.f32 %v2598, 0.0
        %v2929 = vmax.f32 %v2601, 0.0
        %v2930 = vmax.f32 %v2606, 0.0
        %v2931 = vmax.f32 %v2609, 0.0
        %v2932 = vmax.f32 %v2614, 0.0
        %v2933 = vmax.f32 %v2617, 0.0
        %v2934 = vmax.f32 %v2622, 0.0
        %v2935 = vmax.f32 %v2625, 0.0
        %v2936 = vmax.f32 %v2630, 0.0
        %v2937 = vmax.f32 %v2633, 0.0
        %v2938 = vmax.f32 %v2638, 0.0
        %v2939 = vmax.f32 %v2641, 0.0
        %v2940 = vmax.f32 %v2646, 0.0
        %v2941 = vmax.f32 %v2649, 0.0
        %v2942 = vmax.f32 %v2654, 0.0
        %v2943 = vmax.f32 %v2657, 0.0
        %v2944 = vmax.f32 %v2662, 0.0
        %v2945 = vmax.f32 %v2665, 0.0
        %v2946 = vmax.f32 %v2670, 0.0
        %v2947 = vmax.f32 %v2673, 0.0
        %v2948 = vmax.f32 %v2678, 0.0
        %v2949 = vmax.f32 %v2681, 0.0
        %v2950 = vmax.f32 %v2686, 0.0
        %v2951 = vmax.f32 %v2689, 0.0
        %v2952 = vmax.f32 %v2694, 0.0
        %v2953 = vmax.f32 %v2697, 0.0
        %v2954 = vmax.f32 %v2702, 0.0
        %v2955 = vmax.f32 %v2705, 0.0
        %v2956 = vmax.f32 %v2710, 0.0
        %v2957 = vmax.f32 %v2713, 0.0
        %v2958 = vmax.f32 %v2718, 0.0
        %v2959 = vmax.f32 %v2721, 0.0
        %v2960 = vmax.f32 %v2726, 0.0
        %v2961 = vmax.f32 %v2729, 0.0
        %v2962 = vmax.f32 %v2734, 0.0
        %v2963 = vmax.f32 %v2737, 0.0
        %v2964 = vmax.f32 %v2742, 0.0
        %v2965 = vmax.f32 %v2745, 0.0
        %v2966 = vmax.f32 %v2750, 0.0
        %v2967 = vmax.f32 %v2753, 0.0
        %v2968 = vmax.f32 %v2758, 0.0
        %v2969 = vmax.f32 %v2761, 0.0
        %v2970 = vmax.f32 %v2766, 0.0
        %v2971 = vmax.f32 %v2769, 0.0
        %v2972 = vmax.f32 %v2774, 0.0
        %v2973 = vmax.f32 %v2777, 0.0
        %v2974 = vmax.f32 %v2782, 0.0
        %v2975 = vmax.f32 %v2785, 0.0
        %v2976 = vmax.f32 %v2790, 0.0
        %v2977 = vmax.f32 %v2793, 0.0
        %v2978 = vmax.f32 %v2798, 0.0
        %v2979 = vmax.f32 %v2801, 0.0
        %v2980 = vmax.f32 %v2806, 0.0
        %v2981 = vmax.f32 %v2809, 0.0
        %v2982 = vmax.f32 %v2814, 0.0
        %v2983 = vmax.f32 %v2817, 0.0
        %v2984 = vmax.f32 %v2822, 0.0
        %v2985 = vmax.f32 %v2825, 0.0
        %v2986 = vmax.f32 %v2830, 0.0
        %v2987 = vmax.f32 %v2833, 0.0
        %v2988 = vmax.f32 %v2838, 0.0
        %v2989 = vmax.f32 %v2841, 0.0
        %v2990 = vmax.f32 %v2846, 0.0
        %v2991 = vmax.f32 %v2849, 0.0
        %v2992 = vmax.f32 %v2854, 0.0
        %v2993 = vmax.f32 %v2857, 0.0
        %v2994 = vmax.f32 %v2862, 0.0
        %v2995 = vmax.f32 %v2865, 0.0
        %v2996 = vpack.c.bf16 %v2869, %v2868
        %v2997 = vpack.c.bf16 %v2871, %v2870
        %v2998 = vpack.c.bf16 %v2873, %v2872
        %v2999 = vpack.c.bf16 %v2875, %v2874
        %v3000 = vpack.c.bf16 %v2877, %v2876
        %v3001 = vpack.c.bf16 %v2879, %v2878
        %v3002 = vpack.c.bf16 %v2881, %v2880
        %v3003 = vpack.c.bf16 %v2883, %v2882
        %v3004 = vpack.c.bf16 %v2885, %v2884
        %v3005 = vpack.c.bf16 %v2887, %v2886
        %v3006 = vpack.c.bf16 %v2889, %v2888
        %v3007 = vpack.c.bf16 %v2891, %v2890
        %v3008 = vpack.c.bf16 %v2893, %v2892
        %v3009 = vpack.c.bf16 %v2895, %v2894
        %v3010 = vpack.c.bf16 %v2897, %v2896
        %v3011 = vpack.c.bf16 %v2899, %v2898
        %v3012 = vpack.c.bf16 %v2901, %v2900
        %v3013 = vpack.c.bf16 %v2903, %v2902
        %v3014 = vpack.c.bf16 %v2905, %v2904
        %v3015 = vpack.c.bf16 %v2907, %v2906
        %v3016 = vpack.c.bf16 %v2909, %v2908
        %v3017 = vpack.c.bf16 %v2911, %v2910
        %v3018 = vpack.c.bf16 %v2913, %v2912
        %v3019 = vpack.c.bf16 %v2915, %v2914
        %v3020 = vpack.c.bf16 %v2917, %v2916
        %v3021 = vpack.c.bf16 %v2919, %v2918
        %v3022 = vpack.c.bf16 %v2921, %v2920
        %v3023 = vpack.c.bf16 %v2923, %v2922
        %v3024 = vpack.c.bf16 %v2925, %v2924
        %v3025 = vpack.c.bf16 %v2927, %v2926
        %v3026 = vpack.c.bf16 %v2929, %v2928
        %v3027 = vpack.c.bf16 %v2931, %v2930
        %v3028 = vpack.c.bf16 %v2933, %v2932
        %v3029 = vpack.c.bf16 %v2935, %v2934
        %v3030 = vpack.c.bf16 %v2937, %v2936
        %v3031 = vpack.c.bf16 %v2939, %v2938
        %v3032 = vpack.c.bf16 %v2941, %v2940
        %v3033 = vpack.c.bf16 %v2943, %v2942
        %v3034 = vpack.c.bf16 %v2945, %v2944
        %v3035 = vpack.c.bf16 %v2947, %v2946
        %v3036 = vpack.c.bf16 %v2949, %v2948
        %v3037 = vpack.c.bf16 %v2951, %v2950
        %v3038 = vpack.c.bf16 %v2953, %v2952
        %v3039 = vpack.c.bf16 %v2955, %v2954
        %v3040 = vpack.c.bf16 %v2957, %v2956
        %v3041 = vpack.c.bf16 %v2959, %v2958
        %v3042 = vpack.c.bf16 %v2961, %v2960
        %v3043 = vpack.c.bf16 %v2963, %v2962
        %v3044 = vpack.c.bf16 %v2965, %v2964
        %v3045 = vpack.c.bf16 %v2967, %v2966
        %v3046 = vpack.c.bf16 %v2969, %v2968
        %v3047 = vpack.c.bf16 %v2971, %v2970
        %v3048 = vpack.c.bf16 %v2973, %v2972
        %v3049 = vpack.c.bf16 %v2975, %v2974
        %v3050 = vpack.c.bf16 %v2977, %v2976
        %v3051 = vpack.c.bf16 %v2979, %v2978
        %v3052 = vpack.c.bf16 %v2981, %v2980
        %v3053 = vpack.c.bf16 %v2983, %v2982
        %v3054 = vpack.c.bf16 %v2985, %v2984
        %v3055 = vpack.c.bf16 %v2987, %v2986
        %v3056 = vpack.c.bf16 %v2989, %v2988
        %v3057 = vpack.c.bf16 %v2991, %v2990
        %v3058 = vpack.c.bf16 %v2993, %v2992
        %v3059 = vpack.c.bf16 %v2995, %v2994
        %3069 = vrot.lane.b32.xlu0 %v2997, 32
        %v3070 = vpop.permute.xlu0 %3069
        %3071 = vrot.lane.b32.xlu0 %v2999, 32
        %v3072 = vpop.permute.xlu0 %3071
        %3073 = vrot.lane.b32.xlu0 %v3001, 32
        %v3074 = vpop.permute.xlu0 %3073
        %3075 = vrot.lane.b32.xlu0 %v3013, 32
        %v3076 = vpop.permute.xlu0 %3075
        %3077 = vrot.lane.b32.xlu0 %v3015, 32
        %v3078 = vpop.permute.xlu0 %3077
        %3079 = vrot.lane.b32.xlu0 %v3017, 32
        %v3080 = vpop.permute.xlu0 %3079
        %3081 = vrot.lane.b32.xlu0 %v3029, 32
        %v3082 = vpop.permute.xlu0 %3081
        %3083 = vrot.lane.b32.xlu0 %v3031, 32
        %v3084 = vpop.permute.xlu0 %3083
        %3085 = vrot.lane.b32.xlu0 %v3033, 32
        %v3086 = vpop.permute.xlu0 %3085
        %3096 = vrot.lane.b32.xlu0 %v2998, 64
        %v3097 = vpop.permute.xlu0 %3096
        %3098 = vrot.lane.b32.xlu0 %v3000, 64
        %v3099 = vpop.permute.xlu0 %3098
        %3100 = vrot.lane.b32.xlu0 %v3002, 64
        %v3101 = vpop.permute.xlu0 %3100
        %3102 = vrot.lane.b32.xlu0 %v3014, 64
        %v3103 = vpop.permute.xlu0 %3102
        %3104 = vrot.lane.b32.xlu0 %v3016, 64
        %v3105 = vpop.permute.xlu0 %3104
        %3106 = vrot.lane.b32.xlu0 %v3018, 64
        %v3107 = vpop.permute.xlu0 %3106
        %3108 = vrot.lane.b32.xlu0 %v3030, 64
        %v3109 = vpop.permute.xlu0 %3108
        %3110 = vrot.lane.b32.xlu0 %v3032, 64
        %v3111 = vpop.permute.xlu0 %3110
        %3112 = vrot.lane.b32.xlu0 %v3034, 64
        %v3113 = vpop.permute.xlu0 %3112
        %3117 = vrot.lane.b32.xlu0 %v2999, 96
        %v3118 = vpop.permute.xlu0 %3117
        %3119 = vrot.lane.b32.xlu0 %v3001, 96
        %v3120 = vpop.permute.xlu0 %3119
        %3121 = vrot.lane.b32.xlu0 %v3003, 96
        %v3122 = vpop.permute.xlu0 %3121
        %3123 = vrot.lane.b32.xlu0 %v3015, 96
        %v3124 = vpop.permute.xlu0 %3123
        %3125 = vrot.lane.b32.xlu0 %v3017, 96
        %v3126 = vpop.permute.xlu0 %3125
        %3127 = vrot.lane.b32.xlu0 %v3019, 96
        %v3128 = vpop.permute.xlu0 %3127
        %3129 = vrot.lane.b32.xlu0 %v3031, 96
        %v3130 = vpop.permute.xlu0 %3129
        %3131 = vrot.lane.b32.xlu0 %v3033, 96
        %v3132 = vpop.permute.xlu0 %3131
        %3133 = vrot.lane.b32.xlu0 %v3035, 96
        %v3134 = vpop.permute.xlu0 %3133
        %3144 = vrot.lane.b32.xlu0 %v3005, 32
        %v3145 = vpop.permute.xlu0 %3144
        %3146 = vrot.lane.b32.xlu0 %v3007, 32
        %v3147 = vpop.permute.xlu0 %3146
        %3148 = vrot.lane.b32.xlu0 %v3009, 32
        %v3149 = vpop.permute.xlu0 %3148
        %3150 = vrot.lane.b32.xlu0 %v3021, 32
        %v3151 = vpop.permute.xlu0 %3150
        %3152 = vrot.lane.b32.xlu0 %v3023, 32
        %v3153 = vpop.permute.xlu0 %3152
        %3154 = vrot.lane.b32.xlu0 %v3025, 32
        %v3155 = vpop.permute.xlu0 %3154
        %3156 = vrot.lane.b32.xlu0 %v3037, 32
        %v3157 = vpop.permute.xlu0 %3156
        %3158 = vrot.lane.b32.xlu0 %v3039, 32
        %v3159 = vpop.permute.xlu0 %3158
        %3160 = vrot.lane.b32.xlu0 %v3041, 32
        %v3161 = vpop.permute.xlu0 %3160
        %3171 = vrot.lane.b32.xlu0 %v3006, 64
        %v3172 = vpop.permute.xlu0 %3171
        %3173 = vrot.lane.b32.xlu0 %v3008, 64
        %v3174 = vpop.permute.xlu0 %3173
        %3175 = vrot.lane.b32.xlu0 %v3010, 64
        %v3176 = vpop.permute.xlu0 %3175
        %3177 = vrot.lane.b32.xlu0 %v3022, 64
        %v3178 = vpop.permute.xlu0 %3177
        %3179 = vrot.lane.b32.xlu0 %v3024, 64
        %v3180 = vpop.permute.xlu0 %3179
        %3181 = vrot.lane.b32.xlu0 %v3026, 64
        %v3182 = vpop.permute.xlu0 %3181
        %3183 = vrot.lane.b32.xlu0 %v3038, 64
        %v3184 = vpop.permute.xlu0 %3183
        %3185 = vrot.lane.b32.xlu0 %v3040, 64
        %v3186 = vpop.permute.xlu0 %3185
        %3187 = vrot.lane.b32.xlu0 %v3042, 64
        %v3188 = vpop.permute.xlu0 %3187
        %3192 = vrot.lane.b32.xlu0 %v3007, 96
        %v3193 = vpop.permute.xlu0 %3192
        %3194 = vrot.lane.b32.xlu0 %v3009, 96
        %v3195 = vpop.permute.xlu0 %3194
        %3196 = vrot.lane.b32.xlu0 %v3011, 96
        %v3197 = vpop.permute.xlu0 %3196
        %3198 = vrot.lane.b32.xlu0 %v3023, 96
        %v3199 = vpop.permute.xlu0 %3198
        %3200 = vrot.lane.b32.xlu0 %v3025, 96
        %v3201 = vpop.permute.xlu0 %3200
        %3202 = vrot.lane.b32.xlu0 %v3027, 96
        %v3203 = vpop.permute.xlu0 %3202
        %3204 = vrot.lane.b32.xlu0 %v3039, 96
        %v3205 = vpop.permute.xlu0 %3204
        %3206 = vrot.lane.b32.xlu0 %v3041, 96
        %v3207 = vpop.permute.xlu0 %3206
        %3208 = vrot.lane.b32.xlu0 %v3043, 96
        %v3209 = vpop.permute.xlu0 %3208
        %3213 = vrot.lane.b32.xlu0 %v3045, 32
        %v3214 = vpop.permute.xlu0 %3213
        %3215 = vrot.lane.b32.xlu0 %v3047, 32
        %v3216 = vpop.permute.xlu0 %3215
        %3217 = vrot.lane.b32.xlu0 %v3049, 32
        %v3218 = vpop.permute.xlu0 %3217
        %3222 = vrot.lane.b32.xlu0 %v3046, 64
        %v3223 = vpop.permute.xlu0 %3222
        %3224 = vrot.lane.b32.xlu0 %v3048, 64
        %v3225 = vpop.permute.xlu0 %3224
        %3226 = vrot.lane.b32.xlu0 %v3050, 64
        %v3227 = vpop.permute.xlu0 %3226
        %3229 = vrot.lane.b32.xlu0 %v3047, 96
        %v3230 = vpop.permute.xlu0 %3229
        %3231 = vrot.lane.b32.xlu0 %v3049, 96
        %v3232 = vpop.permute.xlu0 %3231
        %3233 = vrot.lane.b32.xlu0 %v3051, 96
        %v3234 = vpop.permute.xlu0 %3233
        %3238 = vrot.lane.b32.xlu0 %v3053, 32
        %v3239 = vpop.permute.xlu0 %3238
        %3240 = vrot.lane.b32.xlu0 %v3055, 32
        %v3241 = vpop.permute.xlu0 %3240
        %3242 = vrot.lane.b32.xlu0 %v3057, 32
        %v3243 = vpop.permute.xlu0 %3242
        %3247 = vrot.lane.b32.xlu0 %v3054, 64
        %v3248 = vpop.permute.xlu0 %3247
        %3249 = vrot.lane.b32.xlu0 %v3056, 64
        %v3250 = vpop.permute.xlu0 %3249
        %3251 = vrot.lane.b32.xlu0 %v3058, 64
        %v3252 = vpop.permute.xlu0 %3251
        %3254 = vrot.lane.b32.xlu0 %v3055, 96
        %v3255 = vpop.permute.xlu0 %3254
        %3256 = vrot.lane.b32.xlu0 %v3057, 96
        %v3257 = vpop.permute.xlu0 %3256
        %3258 = vrot.lane.b32.xlu0 %v3059, 96
        %v3259 = vpop.permute.xlu0 %3258
        %vm3260 = vcmask 261120
        %v3263 = vsel %vm3260, %v2996, %v3070
        %v3266 = vsel %vm3260, %v2998, %v3072
        %v3269 = vsel %vm3260, %v3000, %v3074
        %v3272 = vsel %vm3260, %v3012, %v3076
        %v3275 = vsel %vm3260, %v3014, %v3078
        %v3278 = vsel %vm3260, %v3016, %v3080
        %v3281 = vsel %vm3260, %v3028, %v3082
        %v3284 = vsel %vm3260, %v3030, %v3084
        %v3287 = vsel %vm3260, %v3032, %v3086
        %v3289 = vsel %vm1899, %v3263, %v3097
        %v3291 = vsel %vm1899, %v3266, %v3099
        %v3293 = vsel %vm1899, %v3269, %v3101
        %v3295 = vsel %vm1899, %v3272, %v3103
        %v3297 = vsel %vm1899, %v3275, %v3105
        %v3299 = vsel %vm1899, %v3278, %v3107
        %v3301 = vsel %vm1899, %v3281, %v3109
        %v3303 = vsel %vm1899, %v3284, %v3111
        %v3305 = vsel %vm1899, %v3287, %v3113
        %vm3306 = vcmask 785408
        %v3308 = vsel %vm3306, %v3289, %v3118
        %v3311 = vsel %vm3306, %v3291, %v3120
        %v3314 = vsel %vm3306, %v3293, %v3122
        %v3317 = vsel %vm3306, %v3295, %v3124
        %v3320 = vsel %vm3306, %v3297, %v3126
        %v3323 = vsel %vm3306, %v3299, %v3128
        %v3326 = vsel %vm3306, %v3301, %v3130
        %v3329 = vsel %vm3306, %v3303, %v3132
        %v3332 = vsel %vm3306, %v3305, %v3134
        %v3336 = vsel %vm3260, %v3004, %v3145
        %v3339 = vsel %vm3260, %v3006, %v3147
        %v3342 = vsel %vm3260, %v3008, %v3149
        %v3345 = vsel %vm3260, %v3020, %v3151
        %v3348 = vsel %vm3260, %v3022, %v3153
        %v3351 = vsel %vm3260, %v3024, %v3155
        %v3354 = vsel %vm3260, %v3036, %v3157
        %v3357 = vsel %vm3260, %v3038, %v3159
        %v3360 = vsel %vm3260, %v3040, %v3161
        %v3362 = vsel %vm1899, %v3336, %v3172
        %v3364 = vsel %vm1899, %v3339, %v3174
        %v3366 = vsel %vm1899, %v3342, %v3176
        %v3368 = vsel %vm1899, %v3345, %v3178
        %v3370 = vsel %vm1899, %v3348, %v3180
        %v3372 = vsel %vm1899, %v3351, %v3182
        %v3374 = vsel %vm1899, %v3354, %v3184
        %v3376 = vsel %vm1899, %v3357, %v3186
        %v3378 = vsel %vm1899, %v3360, %v3188
        %v3380 = vsel %vm3306, %v3362, %v3193
        %v3383 = vsel %vm3306, %v3364, %v3195
        %v3386 = vsel %vm3306, %v3366, %v3197
        %v3389 = vsel %vm3306, %v3368, %v3199
        %v3392 = vsel %vm3306, %v3370, %v3201
        %v3395 = vsel %vm3306, %v3372, %v3203
        %v3398 = vsel %vm3306, %v3374, %v3205
        %v3401 = vsel %vm3306, %v3376, %v3207
        %v3404 = vsel %vm3306, %v3378, %v3209
        %v3408 = vsel %vm3260, %v3044, %v3214
        %v3411 = vsel %vm3260, %v3046, %v3216
        %v3414 = vsel %vm3260, %v3048, %v3218
        %v3416 = vsel %vm1899, %v3408, %v3223
        %v3418 = vsel %vm1899, %v3411, %v3225
        %v3420 = vsel %vm1899, %v3414, %v3227
        %v3422 = vsel %vm3306, %v3416, %v3230
        %v3425 = vsel %vm3306, %v3418, %v3232
        %v3428 = vsel %vm3306, %v3420, %v3234
        %v3432 = vsel %vm3260, %v3052, %v3239
        %v3435 = vsel %vm3260, %v3054, %v3241
        %v3438 = vsel %vm3260, %v3056, %v3243
        %v3440 = vsel %vm1899, %v3432, %v3248
        %v3442 = vsel %vm1899, %v3435, %v3250
        %v3444 = vsel %vm1899, %v3438, %v3252
        %v3446 = vsel %vm3306, %v3440, %v3255
        %v3449 = vsel %vm3306, %v3442, %v3257
        %v3452 = vsel %vm3306, %v3444, %v3259
        %v3454 = vld [vmem:[%s3] sm:$0xf]
        %v3455 = vld [vmem:[%s3 + $0x4] sm:$0xf]
        %v3456 = vld [vmem:[%s3 + $0x8] sm:$0xf]
        %v3457 = vld [vmem:[%s3 + $0xc] sm:$0xf]
        %v3458 = vld [vmem:[%s3 + $0x10] sm:$0xf]
        %v3459 = vld [vmem:[%s3 + $0x14] sm:$0xf]
        %v3460 = vld [vmem:[%s3 + $0x18] sm:$0xf]
        %v3461 = vld [vmem:[%s3 + $0x1c] sm:$0xf]
        %v3462 = vld [vmem:[%s3 + $0x20] sm:$0xf]
        %v3463 = vld [vmem:[%s3 + $0x24] sm:$0xf]
        %v3464 = vld [vmem:[%s3 + $0x28] sm:$0xf]
        %v3465 = vld [vmem:[%s3 + $0x2c] sm:$0xf]
        %v3466 = vld [vmem:[%s3 + $0x30] sm:$0xf]
        %v3467 = vld [vmem:[%s3 + $0x34] sm:$0xf]
        %v3468 = vld [vmem:[%s3 + $0x38] sm:$0xf]
        %v3469 = vld [vmem:[%s3 + $0x3c] sm:$0xf]
        %v3470 = vld [vmem:[%s3 + $0x40] sm:$0xf]
        %v3471 = vld [vmem:[%s3 + $0x44] sm:$0xf]
        %v3472 = vld [vmem:[%s3 + $0x48] sm:$0xf]
        %v3473 = vld [vmem:[%s3 + $0x4c] sm:$0xf]
        %v3474 = vld [vmem:[%s3 + $0x50] sm:$0xf]
        %v3475 = vld [vmem:[%s3 + $0x54] sm:$0xf]
        %v3476 = vld [vmem:[%s3 + $0x58] sm:$0xf]
        %v3477 = vld [vmem:[%s3 + $0x5c] sm:$0xf]
        %v3478 = vld [vmem:[%s3 + $0x60] sm:$0xf]
        %v3479 = vld [vmem:[%s3 + $0x64] sm:$0xf]
        %v3480 = vld [vmem:[%s3 + $0x68] sm:$0xf]
        %v3481 = vld [vmem:[%s3 + $0x6c] sm:$0xf]
        %v3482 = vld [vmem:[%s3 + $0x70] sm:$0xf]
        %v3483 = vld [vmem:[%s3 + $0x74] sm:$0xf]
        %v3484 = vld [vmem:[%s3 + $0x78] sm:$0xf]
        %v3485 = vld [vmem:[%s3 + $0x7c] sm:$0xf]
        %v3486 = vld [vmem:[%s3 + $0x80] sm:$0xf]
        %v3487 = vld [vmem:[%s3 + $0x84] sm:$0xf]
        %v3488 = vld [vmem:[%s3 + $0x88] sm:$0xf]
        %v3489 = vld [vmem:[%s3 + $0x8c] sm:$0xf]
        %v3490 = vld [vmem:[%s3 + $0x90] sm:$0xf]
        %v3491 = vld [vmem:[%s3 + $0x94] sm:$0xf]
        %v3492 = vld [vmem:[%s3 + $0x98] sm:$0xf]
        %v3493 = vld [vmem:[%s3 + $0x9c] sm:$0xf]
        %v3494 = vld [vmem:[%s3 + $0xa0] sm:$0xf]
        %v3495 = vld [vmem:[%s3 + $0xa4] sm:$0xf]
        %v3496 = vld [vmem:[%s3 + $0xa8] sm:$0xf]
        %v3497 = vld [vmem:[%s3 + $0xac] sm:$0xf]
        %v3498 = vld [vmem:[%s3 + $0xb0] sm:$0xf]
        %v3499 = vld [vmem:[%s3 + $0xb4] sm:$0xf]
        %v3500 = vld [vmem:[%s3 + $0xb8] sm:$0xf]
        %v3501 = vld [vmem:[%s3 + $0xbc] sm:$0xf]
        %v3502 = vld [vmem:[%s3 + $0xc0] sm:$0xf]
        %v3503 = vld [vmem:[%s3 + $0xc4] sm:$0xf]
        %v3504 = vld [vmem:[%s3 + $0xc8] sm:$0xf]
        %v3505 = vld [vmem:[%s3 + $0xcc] sm:$0xf]
        %v3506 = vld [vmem:[%s3 + $0xd0] sm:$0xf]
        %v3507 = vld [vmem:[%s3 + $0xd4] sm:$0xf]
        %v3508 = vld [vmem:[%s3 + $0xd8] sm:$0xf]
        %v3509 = vld [vmem:[%s3 + $0xdc] sm:$0xf]
        %v3510 = vld [vmem:[%s3 + $0xe0] sm:$0xf]
        %v3511 = vld [vmem:[%s3 + $0xe4] sm:$0xf]
        %v3512 = vld [vmem:[%s3 + $0xe8] sm:$0xf]
        %v3513 = vld [vmem:[%s3 + $0xec] sm:$0xf]
        %v3514 = vld [vmem:[%s3 + $0xf0] sm:$0xf]
        %v3515 = vld [vmem:[%s3 + $0xf4] sm:$0xf]
        %v3516 = vld [vmem:[%s3 + $0xf8] sm:$0xf]
        %v3517 = vld [vmem:[%s3 + $0xfc] sm:$0xf]
        %v3518 = vld [vmem:[%s4] sm:$0x1]
        %v3520 = vlaneseq
        %v3521 = vshrl.u32 %v3520, 7
        %v3522 = vsub.s32 0, %v3521
        %v3523 = vrot.slane %v3518, %v3522
        %v3589 = vunpack.c.l.b16 %v3454
        %v3590 = vunpack.c.l.b16 %v3455
        %v3591 = vunpack.c.l.b16 %v3456
        %v3592 = vunpack.c.l.b16 %v3457
        %v3593 = vunpack.c.l.b16 %v3458
        %v3594 = vunpack.c.l.b16 %v3459
        %v3595 = vunpack.c.l.b16 %v3460
        %v3596 = vunpack.c.l.b16 %v3461
        %v3597 = vunpack.c.l.b16 %v3462
        %v3598 = vunpack.c.l.b16 %v3463
        %v3599 = vunpack.c.l.b16 %v3464
        %v3600 = vunpack.c.l.b16 %v3465
        %v3601 = vunpack.c.l.b16 %v3466
        %v3602 = vunpack.c.l.b16 %v3467
        %v3603 = vunpack.c.l.b16 %v3468
        %v3604 = vunpack.c.l.b16 %v3469
        %v3605 = vunpack.c.l.b16 %v3470
        %v3606 = vunpack.c.l.b16 %v3471
        %v3607 = vunpack.c.l.b16 %v3472
        %v3608 = vunpack.c.l.b16 %v3473
        %v3609 = vunpack.c.l.b16 %v3474
        %v3610 = vunpack.c.l.b16 %v3475
        %v3611 = vunpack.c.l.b16 %v3476
        %v3612 = vunpack.c.l.b16 %v3477
        %v3613 = vunpack.c.l.b16 %v3478
        %v3614 = vunpack.c.l.b16 %v3479
        %v3615 = vunpack.c.l.b16 %v3480
        %v3616 = vunpack.c.l.b16 %v3481
        %v3617 = vunpack.c.l.b16 %v3482
        %v3618 = vunpack.c.l.b16 %v3483
        %v3619 = vunpack.c.l.b16 %v3484
        %v3620 = vunpack.c.l.b16 %v3485
        %v3621 = vunpack.c.l.b16 %v3486
        %v3622 = vunpack.c.l.b16 %v3487
        %v3623 = vunpack.c.l.b16 %v3488
        %v3624 = vunpack.c.l.b16 %v3489
        %v3625 = vunpack.c.l.b16 %v3490
        %v3626 = vunpack.c.l.b16 %v3491
        %v3627 = vunpack.c.l.b16 %v3492
        %v3628 = vunpack.c.l.b16 %v3493
        %v3629 = vunpack.c.l.b16 %v3494
        %v3630 = vunpack.c.l.b16 %v3495
        %v3631 = vunpack.c.l.b16 %v3496
        %v3632 = vunpack.c.l.b16 %v3497
        %v3633 = vunpack.c.l.b16 %v3498
        %v3634 = vunpack.c.l.b16 %v3499
        %v3635 = vunpack.c.l.b16 %v3500
        %v3636 = vunpack.c.l.b16 %v3501
        %v3637 = vunpack.c.l.b16 %v3502
        %v3638 = vunpack.c.l.b16 %v3503
        %v3639 = vunpack.c.l.b16 %v3504
        %v3640 = vunpack.c.l.b16 %v3505
        %v3641 = vunpack.c.l.b16 %v3506
        %v3642 = vunpack.c.l.b16 %v3507
        %v3643 = vunpack.c.l.b16 %v3508
        %v3644 = vunpack.c.l.b16 %v3509
        %v3645 = vunpack.c.l.b16 %v3510
        %v3646 = vunpack.c.l.b16 %v3511
        %v3647 = vunpack.c.l.b16 %v3512
        %v3648 = vunpack.c.l.b16 %v3513
        %v3649 = vunpack.c.l.b16 %v3514
        %v3650 = vunpack.c.l.b16 %v3515
        %v3651 = vunpack.c.l.b16 %v3516
        %v3652 = vunpack.c.l.b16 %v3517
        %v3653 = vpack.c.b16 %v3590, %v3589
        %v3654 = vpack.c.b16 %v3592, %v3591
        %v3655 = vpack.c.b16 %v3594, %v3593
        %v3656 = vpack.c.b16 %v3596, %v3595
        %v3657 = vpack.c.b16 %v3598, %v3597
        %v3658 = vpack.c.b16 %v3600, %v3599
        %v3659 = vpack.c.b16 %v3602, %v3601
        %v3660 = vpack.c.b16 %v3604, %v3603
        %v3661 = vpack.c.b16 %v3606, %v3605
        %v3662 = vpack.c.b16 %v3608, %v3607
        %v3663 = vpack.c.b16 %v3610, %v3609
        %v3664 = vpack.c.b16 %v3612, %v3611
        %v3665 = vpack.c.b16 %v3614, %v3613
        %v3666 = vpack.c.b16 %v3616, %v3615
        %v3667 = vpack.c.b16 %v3618, %v3617
        %v3668 = vpack.c.b16 %v3620, %v3619
        %v3669 = vpack.c.b16 %v3622, %v3621
        %v3670 = vpack.c.b16 %v3624, %v3623
        %v3671 = vpack.c.b16 %v3626, %v3625
        %v3672 = vpack.c.b16 %v3628, %v3627
        %v3673 = vpack.c.b16 %v3630, %v3629
        %v3674 = vpack.c.b16 %v3632, %v3631
        %v3675 = vpack.c.b16 %v3634, %v3633
        %v3676 = vpack.c.b16 %v3636, %v3635
        %v3677 = vpack.c.b16 %v3638, %v3637
        %v3678 = vpack.c.b16 %v3640, %v3639
        %v3679 = vpack.c.b16 %v3642, %v3641
        %v3680 = vpack.c.b16 %v3644, %v3643
        %v3681 = vpack.c.b16 %v3646, %v3645
        %v3682 = vpack.c.b16 %v3648, %v3647
        %v3683 = vpack.c.b16 %v3650, %v3649
        %v3684 = vpack.c.b16 %v3652, %v3651
        %3717 = vmatprep.subr.bf16.mxu0 0
        %3718 = vmatpush1.bf16.msra.mxu0 %v3660
        %3719 = vmatprep.subr.bf16.mxu0 0
        %3720 = vmatpush1.bf16.msra.mxu0 %v3659
        %3721 = vmatprep.subr.bf16.mxu0 0
        %3722 = vmatpush1.bf16.msra.mxu0 %v3658
        %3723 = vmatprep.subr.bf16.mxu0 0
        %3724 = vmatpush1.bf16.msra.mxu0 %v3657
        %3725 = vmatprep.subr.bf16.mxu0 0
        %3726 = vmatpush1.bf16.msra.mxu0 %v3656
        %3727 = vmatprep.subr.bf16.mxu0 0
        %3728 = vmatpush1.bf16.msra.mxu0 %v3655
        %3729 = vmatprep.subr.bf16.mxu0 0
        %3730 = vmatpush1.bf16.msra.mxu0 %v3654
        %3731 = vmatprep.subr.bf16.mxu0 0
        %3732 = vmatpush1.bf16.msra.mxu0 %v3653
        %3733 = vmatprep.subr.bf16.mxu0 0
        %3734 = vmatpush2.bf16.msra.mxu0 %v3668
        %3735 = vmatprep.subr.bf16.mxu0 0
        %3736 = vmatpush2.bf16.msra.mxu0 %v3667
        %3737 = vmatprep.subr.bf16.mxu0 0
        %3738 = vmatpush2.bf16.msra.mxu0 %v3666
        %3739 = vmatprep.subr.bf16.mxu0 0
        %3740 = vmatpush2.bf16.msra.mxu0 %v3665
        %3741 = vmatprep.subr.bf16.mxu0 0
        %3742 = vmatpush2.bf16.msra.mxu0 %v3664
        %3743 = vmatprep.subr.bf16.mxu0 0
        %3744 = vmatpush2.bf16.msra.mxu0 %v3663
        %3745 = vmatprep.subr.bf16.mxu0 0
        %3746 = vmatpush2.bf16.msra.mxu0 %v3662
        %3747 = vmatprep.subr.bf16.mxu0 0
        %3748 = vmatpush2.bf16.msra.mxu0 %v3661
        %3749 = vmatprep.mubr.bf16.mxu0 %v3380
        %3750 = vmatmul.mubr.bf16.gmra.mxu0 %v3308
        %v3751 = vpop.f32.mrf.mxu0
        %v3752 = vadd.f32 %v3523, %v3751
        %v3753 = vpop.f32.mrf.mxu0
        %v3754 = vpop.f32.mrf.mxu0
        %v3755 = vadd.f32 %v3523, %v3754
        %v3756 = vpop.f32.mrf.mxu0
        %3757 = vmatprep.mubr.bf16.mxu0 %v3383
        %3758 = vmatmul.mubr.bf16.gmra.mxu0 %v3311
        %v3759 = vpop.f32.mrf.mxu0
        %v3760 = vadd.f32 %v3523, %v3759
        %v3761 = vpop.f32.mrf.mxu0
        %v3762 = vpop.f32.mrf.mxu0
        %v3763 = vadd.f32 %v3523, %v3762
        %v3764 = vpop.f32.mrf.mxu0
        %3765 = vmatprep.mubr.bf16.mxu0 %v3386
        %3766 = vmatmul.mubr.bf16.gmra.mxu0 %v3314
        %v3767 = vpop.f32.mrf.mxu0
        %v3768 = vadd.f32 %v3523, %v3767
        %v3769 = vpop.f32.mrf.mxu0
        %v3770 = vpop.f32.mrf.mxu0
        %v3771 = vadd.f32 %v3523, %v3770
        %v3772 = vpop.f32.mrf.mxu0
        %3773 = vmatprep.mubr.bf16.mxu0 %v3389
        %3774 = vmatmul.mubr.bf16.gmra.mxu0 %v3317
        %v3775 = vpop.f32.mrf.mxu0
        %v3776 = vadd.f32 %v3523, %v3775
        %v3777 = vpop.f32.mrf.mxu0
        %v3778 = vpop.f32.mrf.mxu0
        %v3779 = vadd.f32 %v3523, %v3778
        %v3780 = vpop.f32.mrf.mxu0
        %3781 = vmatprep.mubr.bf16.mxu0 %v3392
        %3782 = vmatmul.mubr.bf16.gmra.mxu0 %v3320
        %v3783 = vpop.f32.mrf.mxu0
        %v3784 = vadd.f32 %v3523, %v3783
        %v3785 = vpop.f32.mrf.mxu0
        %v3786 = vpop.f32.mrf.mxu0
        %v3787 = vadd.f32 %v3523, %v3786
        %v3788 = vpop.f32.mrf.mxu0
        %3789 = vmatprep.mubr.bf16.mxu0 %v3395
        %3790 = vmatmul.mubr.bf16.gmra.mxu0 %v3323
        %v3791 = vpop.f32.mrf.mxu0
        %v3792 = vadd.f32 %v3523, %v3791
        %v3793 = vpop.f32.mrf.mxu0
        %v3794 = vpop.f32.mrf.mxu0
        %v3795 = vadd.f32 %v3523, %v3794
        %v3796 = vpop.f32.mrf.mxu0
        %3797 = vmatprep.mubr.bf16.mxu0 %v3398
        %3798 = vmatmul.mubr.bf16.gmra.mxu0 %v3326
        %v3799 = vpop.f32.mrf.mxu0
        %v3800 = vadd.f32 %v3523, %v3799
        %v3801 = vpop.f32.mrf.mxu0
        %v3802 = vpop.f32.mrf.mxu0
        %v3803 = vadd.f32 %v3523, %v3802
        %v3804 = vpop.f32.mrf.mxu0
        %3805 = vmatprep.mubr.bf16.mxu0 %v3401
        %3806 = vmatmul.mubr.bf16.gmra.mxu0 %v3329
        %v3807 = vpop.f32.mrf.mxu0
        %v3808 = vadd.f32 %v3523, %v3807
        %v3809 = vpop.f32.mrf.mxu0
        %v3810 = vpop.f32.mrf.mxu0
        %v3811 = vadd.f32 %v3523, %v3810
        %v3812 = vpop.f32.mrf.mxu0
        %3813 = vmatprep.mubr.bf16.mxu0 %v3404
        %3814 = vmatmul.mubr.bf16.gmra.mxu0 %v3332
        %v3815 = vpop.f32.mrf.mxu0
        %v3816 = vadd.f32 %v3523, %v3815
        %v3817 = vpop.f32.mrf.mxu0
        %v3818 = vpop.f32.mrf.mxu0
        %v3819 = vadd.f32 %v3523, %v3818
        %v3820 = vpop.f32.mrf.mxu0
        %3821 = vdwg.mxu0
        %3822 = vmatprep.subr.bf16.mxu0 0
        %3823 = vmatpush1.bf16.msra.mxu0 %v3676
        %3824 = vmatprep.subr.bf16.mxu0 0
        %3825 = vmatpush1.bf16.msra.mxu0 %v3675
        %3826 = vmatprep.subr.bf16.mxu0 0
        %3827 = vmatpush1.bf16.msra.mxu0 %v3674
        %3828 = vmatprep.subr.bf16.mxu0 0
        %3829 = vmatpush1.bf16.msra.mxu0 %v3673
        %3830 = vmatprep.subr.bf16.mxu0 0
        %3831 = vmatpush1.bf16.msra.mxu0 %v3672
        %3832 = vmatprep.subr.bf16.mxu0 0
        %3833 = vmatpush1.bf16.msra.mxu0 %v3671
        %3834 = vmatprep.subr.bf16.mxu0 0
        %3835 = vmatpush1.bf16.msra.mxu0 %v3670
        %3836 = vmatprep.subr.bf16.mxu0 0
        %3837 = vmatpush1.bf16.msra.mxu0 %v3669
        %3838 = vmatprep.subr.bf16.mxu0 0
        %3839 = vmatpush2.bf16.msra.mxu0 %v3684
        %3840 = vmatprep.subr.bf16.mxu0 0
        %3841 = vmatpush2.bf16.msra.mxu0 %v3683
        %3842 = vmatprep.subr.bf16.mxu0 0
        %3843 = vmatpush2.bf16.msra.mxu0 %v3682
        %3844 = vmatprep.subr.bf16.mxu0 0
        %3845 = vmatpush2.bf16.msra.mxu0 %v3681
        %3846 = vmatprep.subr.bf16.mxu0 0
        %3847 = vmatpush2.bf16.msra.mxu0 %v3680
        %3848 = vmatprep.subr.bf16.mxu0 0
        %3849 = vmatpush2.bf16.msra.mxu0 %v3679
        %3850 = vmatprep.subr.bf16.mxu0 0
        %3851 = vmatpush2.bf16.msra.mxu0 %v3678
        %3852 = vmatprep.subr.bf16.mxu0 0
        %3853 = vmatpush2.bf16.msra.mxu0 %v3677
        %3854 = vmatprep.mubr.bf16.mxu0 %v3389
        %3855 = vmatmul.mubr.bf16.gmra.mxu0 %v3317
        %v3856 = vpop.f32.mrf.mxu0
        %v3857 = vadd.f32 %v3752, %v3856
        %v3858 = vpop.f32.mrf.mxu0
        %v3859 = vpop.f32.mrf.mxu0
        %v3860 = vadd.f32 %v3755, %v3859
        %v3861 = vpop.f32.mrf.mxu0
        %3862 = vmatprep.mubr.bf16.mxu0 %v3392
        %3863 = vmatmul.mubr.bf16.gmra.mxu0 %v3320
        %v3864 = vpop.f32.mrf.mxu0
        %v3865 = vadd.f32 %v3760, %v3864
        %v3866 = vpop.f32.mrf.mxu0
        %v3867 = vpop.f32.mrf.mxu0
        %v3868 = vadd.f32 %v3763, %v3867
        %v3869 = vpop.f32.mrf.mxu0
        %3870 = vmatprep.mubr.bf16.mxu0 %v3395
        %3871 = vmatmul.mubr.bf16.gmra.mxu0 %v3323
        %v3872 = vpop.f32.mrf.mxu0
        %v3873 = vadd.f32 %v3768, %v3872
        %v3874 = vpop.f32.mrf.mxu0
        %v3875 = vpop.f32.mrf.mxu0
        %v3876 = vadd.f32 %v3771, %v3875
        %v3877 = vpop.f32.mrf.mxu0
        %3878 = vmatprep.mubr.bf16.mxu0 %v3398
        %3879 = vmatmul.mubr.bf16.gmra.mxu0 %v3326
        %v3880 = vpop.f32.mrf.mxu0
        %v3881 = vadd.f32 %v3776, %v3880
        %v3882 = vpop.f32.mrf.mxu0
        %v3883 = vpop.f32.mrf.mxu0
        %v3884 = vadd.f32 %v3779, %v3883
        %v3885 = vpop.f32.mrf.mxu0
        %3886 = vmatprep.mubr.bf16.mxu0 %v3401
        %3887 = vmatmul.mubr.bf16.gmra.mxu0 %v3329
        %v3888 = vpop.f32.mrf.mxu0
        %v3889 = vadd.f32 %v3784, %v3888
        %v3890 = vpop.f32.mrf.mxu0
        %v3891 = vpop.f32.mrf.mxu0
        %v3892 = vadd.f32 %v3787, %v3891
        %v3893 = vpop.f32.mrf.mxu0
        %3894 = vmatprep.mubr.bf16.mxu0 %v3404
        %3895 = vmatmul.mubr.bf16.gmra.mxu0 %v3332
        %v3896 = vpop.f32.mrf.mxu0
        %v3897 = vadd.f32 %v3792, %v3896
        %v3898 = vpop.f32.mrf.mxu0
        %v3899 = vpop.f32.mrf.mxu0
        %v3900 = vadd.f32 %v3795, %v3899
        %v3901 = vpop.f32.mrf.mxu0
        %3902 = vmatprep.mubr.bf16.mxu0 %v3446
        %3903 = vmatmul.mubr.bf16.gmra.mxu0 %v3422
        %v3904 = vpop.f32.mrf.mxu0
        %v3905 = vadd.f32 %v3800, %v3904
        %v3906 = vpop.f32.mrf.mxu0
        %v3907 = vpop.f32.mrf.mxu0
        %v3908 = vadd.f32 %v3803, %v3907
        %v3909 = vpop.f32.mrf.mxu0
        %3910 = vmatprep.mubr.bf16.mxu0 %v3449
        %3911 = vmatmul.mubr.bf16.gmra.mxu0 %v3425
        %v3912 = vpop.f32.mrf.mxu0
        %v3913 = vadd.f32 %v3808, %v3912
        %v3914 = vpop.f32.mrf.mxu0
        %v3915 = vpop.f32.mrf.mxu0
        %v3916 = vadd.f32 %v3811, %v3915
        %v3917 = vpop.f32.mrf.mxu0
        %3918 = vmatprep.mubr.bf16.mxu0 %v3452
        %3919 = vmatmul.mubr.bf16.gmra.mxu0 %v3428
        %v3920 = vpop.f32.mrf.mxu0
        %v3921 = vadd.f32 %v3816, %v3920
        %v3922 = vpop.f32.mrf.mxu0
        %v3923 = vpop.f32.mrf.mxu0
        %v3924 = vadd.f32 %v3819, %v3923
        %v3925 = vpop.f32.mrf.mxu0
        %3926 = vdwg.mxu0
        %v3927 = vmax.f32 %v3857, 0.0
        %v3928 = vmax.f32 %v3860, 0.0
        %v3929 = vmax.f32 %v3865, 0.0
        %v3930 = vmax.f32 %v3868, 0.0
        %v3931 = vmax.f32 %v3873, 0.0
        %v3932 = vmax.f32 %v3876, 0.0
        %v3933 = vmax.f32 %v3881, 0.0
        %v3934 = vmax.f32 %v3884, 0.0
        %v3935 = vmax.f32 %v3889, 0.0
        %v3936 = vmax.f32 %v3892, 0.0
        %v3937 = vmax.f32 %v3897, 0.0
        %v3938 = vmax.f32 %v3900, 0.0
        %v3939 = vmax.f32 %v3905, 0.0
        %v3940 = vmax.f32 %v3908, 0.0
        %v3941 = vmax.f32 %v3913, 0.0
        %v3942 = vmax.f32 %v3916, 0.0
        %v3943 = vmax.f32 %v3921, 0.0
        %v3944 = vmax.f32 %v3924, 0.0
        %v3945 = vpack.c.bf16 %v3928, %v3927
        %v3946 = vpack.c.bf16 %v3930, %v3929
        %v3947 = vpack.c.bf16 %v3932, %v3931
        %v3948 = vpack.c.bf16 %v3934, %v3933
        %v3949 = vpack.c.bf16 %v3936, %v3935
        %v3950 = vpack.c.bf16 %v3938, %v3937
        %v3951 = vpack.c.bf16 %v3940, %v3939
        %v3952 = vpack.c.bf16 %v3942, %v3941
        %v3953 = vpack.c.bf16 %v3944, %v3943
        %3955 = vrot.lane.b32.xlu0 %v3946, 64
        %v3956 = vpop.permute.xlu0 %3955
        %3958 = vrot.lane.b32.xlu0 %v3948, 64
        %v3959 = vpop.permute.xlu0 %3958
        %3961 = vrot.lane.b32.xlu0 %v3950, 64
        %v3962 = vpop.permute.xlu0 %3961
        %3964 = vrot.lane.b32.xlu0 %v3952, 64
        %v3965 = vpop.permute.xlu0 %3964
        %v3968 = vsel %vm1899, %v3945, %v3956
        %v3972 = vsel %vm1899, %v3947, %v3959
        %v3976 = vsel %vm1899, %v3949, %v3962
        %v3980 = vsel %vm1899, %v3951, %v3965
        %v3982 = vld [vmem:[%s5] sm:$0xf]
        %v3983 = vld [vmem:[%s5 + $0x4] sm:$0xf]
        %v3984 = vld [vmem:[%s5 + $0x8] sm:$0xf]
        %v3985 = vld [vmem:[%s5 + $0xc] sm:$0xf]
        %v3986 = vld [vmem:[%s5 + $0x10] sm:$0xf]
        %v3987 = vld [vmem:[%s5 + $0x14] sm:$0xf]
        %v3988 = vld [vmem:[%s5 + $0x18] sm:$0xf]
        %v3989 = vld [vmem:[%s5 + $0x1c] sm:$0xf]
        %v3990 = vld [vmem:[%s5 + $0x20] sm:$0xf]
        %v3991 = vld [vmem:[%s5 + $0x24] sm:$0xf]
        %v3992 = vld [vmem:[%s5 + $0x28] sm:$0xf]
        %v3993 = vld [vmem:[%s5 + $0x2c] sm:$0xf]
        %v3994 = vld [vmem:[%s5 + $0x30] sm:$0xf]
        %v3995 = vld [vmem:[%s5 + $0x34] sm:$0xf]
        %v3996 = vld [vmem:[%s5 + $0x38] sm:$0xf]
        %v3997 = vld [vmem:[%s5 + $0x3c] sm:$0xf]
        %v3998 = vld [vmem:[%s5 + $0x40] sm:$0xf]
        %v3999 = vld [vmem:[%s5 + $0x44] sm:$0xf]
        %v4000 = vld [vmem:[%s5 + $0x48] sm:$0xf]
        %v4001 = vld [vmem:[%s5 + $0x4c] sm:$0xf]
        %v4002 = vld [vmem:[%s5 + $0x50] sm:$0xf]
        %v4003 = vld [vmem:[%s5 + $0x54] sm:$0xf]
        %v4004 = vld [vmem:[%s5 + $0x58] sm:$0xf]
        %v4005 = vld [vmem:[%s5 + $0x5c] sm:$0xf]
        %v4006 = vld [vmem:[%s5 + $0x60] sm:$0xf]
        %v4007 = vld [vmem:[%s5 + $0x64] sm:$0xf]
        %v4008 = vld [vmem:[%s5 + $0x68] sm:$0xf]
        %v4009 = vld [vmem:[%s5 + $0x6c] sm:$0xf]
        %v4010 = vld [vmem:[%s5 + $0x70] sm:$0xf]
        %v4011 = vld [vmem:[%s5 + $0x74] sm:$0xf]
        %v4012 = vld [vmem:[%s5 + $0x78] sm:$0xf]
        %v4013 = vld [vmem:[%s5 + $0x7c] sm:$0xf]
        %v4014 = vld [vmem:[%s5 + $0x80] sm:$0xf]
        %v4015 = vld [vmem:[%s5 + $0x84] sm:$0xf]
        %v4016 = vld [vmem:[%s5 + $0x88] sm:$0xf]
        %v4017 = vld [vmem:[%s5 + $0x8c] sm:$0xf]
        %v4018 = vld [vmem:[%s5 + $0x90] sm:$0xf]
        %v4019 = vld [vmem:[%s5 + $0x94] sm:$0xf]
        %v4020 = vld [vmem:[%s5 + $0x98] sm:$0xf]
        %v4021 = vld [vmem:[%s5 + $0x9c] sm:$0xf]
        %v4022 = vld [vmem:[%s5 + $0xa0] sm:$0xf]
        %v4023 = vld [vmem:[%s5 + $0xa4] sm:$0xf]
        %v4024 = vld [vmem:[%s5 + $0xa8] sm:$0xf]
        %v4025 = vld [vmem:[%s5 + $0xac] sm:$0xf]
        %v4026 = vld [vmem:[%s5 + $0xb0] sm:$0xf]
        %v4027 = vld [vmem:[%s5 + $0xb4] sm:$0xf]
        %v4028 = vld [vmem:[%s5 + $0xb8] sm:$0xf]
        %v4029 = vld [vmem:[%s5 + $0xbc] sm:$0xf]
        %v4030 = vld [vmem:[%s5 + $0xc0] sm:$0xf]
        %v4031 = vld [vmem:[%s5 + $0xc4] sm:$0xf]
        %v4032 = vld [vmem:[%s5 + $0xc8] sm:$0xf]
        %v4033 = vld [vmem:[%s5 + $0xcc] sm:$0xf]
        %v4034 = vld [vmem:[%s5 + $0xd0] sm:$0xf]
        %v4035 = vld [vmem:[%s5 + $0xd4] sm:$0xf]
        %v4036 = vld [vmem:[%s5 + $0xd8] sm:$0xf]
        %v4037 = vld [vmem:[%s5 + $0xdc] sm:$0xf]
        %v4038 = vld [vmem:[%s5 + $0xe0] sm:$0xf]
        %v4039 = vld [vmem:[%s5 + $0xe4] sm:$0xf]
        %v4040 = vld [vmem:[%s5 + $0xe8] sm:$0xf]
        %v4041 = vld [vmem:[%s5 + $0xec] sm:$0xf]
        %v4042 = vld [vmem:[%s5 + $0xf0] sm:$0xf]
        %v4043 = vld [vmem:[%s5 + $0xf4] sm:$0xf]
        %v4044 = vld [vmem:[%s5 + $0xf8] sm:$0xf]
        %v4045 = vld [vmem:[%s5 + $0xfc] sm:$0xf]
        %v4046 = vld [vmem:[%s5 + $0x100] sm:$0xf]
        %v4047 = vld [vmem:[%s5 + $0x104] sm:$0xf]
        %v4048 = vld [vmem:[%s5 + $0x108] sm:$0xf]
        %v4049 = vld [vmem:[%s5 + $0x10c] sm:$0xf]
        %v4050 = vld [vmem:[%s5 + $0x110] sm:$0xf]
        %v4051 = vld [vmem:[%s5 + $0x114] sm:$0xf]
        %v4052 = vld [vmem:[%s5 + $0x118] sm:$0xf]
        %v4053 = vld [vmem:[%s5 + $0x11c] sm:$0xf]
        %v4054 = vld [vmem:[%s6] sm:$0x1]
        %v4056 = vlaneseq
        %v4057 = vshrl.u32 %v4056, 7
        %v4058 = vsub.s32 0, %v4057
        %v4059 = vrot.slane %v4054, %v4058
        %v4133 = vunpack.c.l.b16 %v3982
        %v4134 = vunpack.c.l.b16 %v3983
        %v4135 = vunpack.c.l.b16 %v3984
        %v4136 = vunpack.c.l.b16 %v3985
        %v4137 = vunpack.c.l.b16 %v3986
        %v4138 = vunpack.c.l.b16 %v3987
        %v4139 = vunpack.c.l.b16 %v3988
        %v4140 = vunpack.c.l.b16 %v3989
        %v4141 = vunpack.c.l.b16 %v3990
        %v4142 = vunpack.c.l.b16 %v3991
        %v4143 = vunpack.c.l.b16 %v3992
        %v4144 = vunpack.c.l.b16 %v3993
        %v4145 = vunpack.c.l.b16 %v3994
        %v4146 = vunpack.c.l.b16 %v3995
        %v4147 = vunpack.c.l.b16 %v3996
        %v4148 = vunpack.c.l.b16 %v3997
        %v4149 = vunpack.c.l.b16 %v3998
        %v4150 = vunpack.c.l.b16 %v3999
        %v4151 = vunpack.c.l.b16 %v4000
        %v4152 = vunpack.c.l.b16 %v4001
        %v4153 = vunpack.c.l.b16 %v4002
        %v4154 = vunpack.c.l.b16 %v4003
        %v4155 = vunpack.c.l.b16 %v4004
        %v4156 = vunpack.c.l.b16 %v4005
        %v4157 = vunpack.c.l.b16 %v4006
        %v4158 = vunpack.c.l.b16 %v4007
        %v4159 = vunpack.c.l.b16 %v4008
        %v4160 = vunpack.c.l.b16 %v4009
        %v4161 = vunpack.c.l.b16 %v4010
        %v4162 = vunpack.c.l.b16 %v4011
        %v4163 = vunpack.c.l.b16 %v4012
        %v4164 = vunpack.c.l.b16 %v4013
        %v4165 = vunpack.c.l.b16 %v4014
        %v4166 = vunpack.c.l.b16 %v4015
        %v4167 = vunpack.c.l.b16 %v4016
        %v4168 = vunpack.c.l.b16 %v4017
        %v4169 = vunpack.c.l.b16 %v4018
        %v4170 = vunpack.c.l.b16 %v4019
        %v4171 = vunpack.c.l.b16 %v4020
        %v4172 = vunpack.c.l.b16 %v4021
        %v4173 = vunpack.c.l.b16 %v4022
        %v4174 = vunpack.c.l.b16 %v4023
        %v4175 = vunpack.c.l.b16 %v4024
        %v4176 = vunpack.c.l.b16 %v4025
        %v4177 = vunpack.c.l.b16 %v4026
        %v4178 = vunpack.c.l.b16 %v4027
        %v4179 = vunpack.c.l.b16 %v4028
        %v4180 = vunpack.c.l.b16 %v4029
        %v4181 = vunpack.c.l.b16 %v4030
        %v4182 = vunpack.c.l.b16 %v4031
        %v4183 = vunpack.c.l.b16 %v4032
        %v4184 = vunpack.c.l.b16 %v4033
        %v4185 = vunpack.c.l.b16 %v4034
        %v4186 = vunpack.c.l.b16 %v4035
        %v4187 = vunpack.c.l.b16 %v4036
        %v4188 = vunpack.c.l.b16 %v4037
        %v4189 = vunpack.c.l.b16 %v4038
        %v4190 = vunpack.c.l.b16 %v4039
        %v4191 = vunpack.c.l.b16 %v4040
        %v4192 = vunpack.c.l.b16 %v4041
        %v4193 = vunpack.c.l.b16 %v4042
        %v4194 = vunpack.c.l.b16 %v4043
        %v4195 = vunpack.c.l.b16 %v4044
        %v4196 = vunpack.c.l.b16 %v4045
        %v4197 = vunpack.c.l.b16 %v4046
        %v4198 = vunpack.c.l.b16 %v4047
        %v4199 = vunpack.c.l.b16 %v4048
        %v4200 = vunpack.c.l.b16 %v4049
        %v4201 = vunpack.c.l.b16 %v4050
        %v4202 = vunpack.c.l.b16 %v4051
        %v4203 = vunpack.c.l.b16 %v4052
        %v4204 = vunpack.c.l.b16 %v4053
        %v4205 = vpack.c.b16 %v4134, %v4133
        %v4206 = vpack.c.b16 %v4136, %v4135
        %v4207 = vpack.c.b16 %v4138, %v4137
        %v4208 = vpack.c.b16 %v4140, %v4139
        %v4209 = vpack.c.b16 %v4142, %v4141
        %v4210 = vpack.c.b16 %v4144, %v4143
        %v4211 = vpack.c.b16 %v4146, %v4145
        %v4212 = vpack.c.b16 %v4148, %v4147
        %v4213 = vpack.c.b16 %v4150, %v4149
        %v4214 = vpack.c.b16 %v4152, %v4151
        %v4215 = vpack.c.b16 %v4154, %v4153
        %v4216 = vpack.c.b16 %v4156, %v4155
        %v4217 = vpack.c.b16 %v4158, %v4157
        %v4218 = vpack.c.b16 %v4160, %v4159
        %v4219 = vpack.c.b16 %v4162, %v4161
        %v4220 = vpack.c.b16 %v4164, %v4163
        %v4221 = vpack.c.b16 %v4166, %v4165
        %v4222 = vpack.c.b16 %v4168, %v4167
        %v4223 = vpack.c.b16 %v4170, %v4169
        %v4224 = vpack.c.b16 %v4172, %v4171
        %v4225 = vpack.c.b16 %v4174, %v4173
        %v4226 = vpack.c.b16 %v4176, %v4175
        %v4227 = vpack.c.b16 %v4178, %v4177
        %v4228 = vpack.c.b16 %v4180, %v4179
        %v4229 = vpack.c.b16 %v4182, %v4181
        %v4230 = vpack.c.b16 %v4184, %v4183
        %v4231 = vpack.c.b16 %v4186, %v4185
        %v4232 = vpack.c.b16 %v4188, %v4187
        %v4233 = vpack.c.b16 %v4190, %v4189
        %v4234 = vpack.c.b16 %v4192, %v4191
        %v4235 = vpack.c.b16 %v4194, %v4193
        %v4236 = vpack.c.b16 %v4196, %v4195
        %v4237 = vpack.c.b16 %v4198, %v4197
        %v4238 = vpack.c.b16 %v4200, %v4199
        %v4239 = vpack.c.b16 %v4202, %v4201
        %v4240 = vpack.c.b16 %v4204, %v4203
        %v4278 = vsel %vm1899, %v3953, 0
        %4280 = vmatprep.subr.bf16.mxu0 0
        %4281 = vmatpush1.bf16.msra.mxu0 %v4212
        %4282 = vmatprep.subr.bf16.mxu0 0
        %4283 = vmatpush1.bf16.msra.mxu0 %v4211
        %4284 = vmatprep.subr.bf16.mxu0 0
        %4285 = vmatpush1.bf16.msra.mxu0 %v4210
        %4286 = vmatprep.subr.bf16.mxu0 0
        %4287 = vmatpush1.bf16.msra.mxu0 %v4209
        %4288 = vmatprep.subr.bf16.mxu0 0
        %4289 = vmatpush1.bf16.msra.mxu0 %v4208
        %4290 = vmatprep.subr.bf16.mxu0 0
        %4291 = vmatpush1.bf16.msra.mxu0 %v4207
        %4292 = vmatprep.subr.bf16.mxu0 0
        %4293 = vmatpush1.bf16.msra.mxu0 %v4206
        %4294 = vmatprep.subr.bf16.mxu0 0
        %4295 = vmatpush1.bf16.msra.mxu0 %v4205
        %4296 = vmatprep.subr.bf16.mxu0 0
        %4297 = vmatpush2.bf16.msra.mxu0 %v4220
        %4298 = vmatprep.subr.bf16.mxu0 0
        %4299 = vmatpush2.bf16.msra.mxu0 %v4219
        %4300 = vmatprep.subr.bf16.mxu0 0
        %4301 = vmatpush2.bf16.msra.mxu0 %v4218
        %4302 = vmatprep.subr.bf16.mxu0 0
        %4303 = vmatpush2.bf16.msra.mxu0 %v4217
        %4304 = vmatprep.subr.bf16.mxu0 0
        %4305 = vmatpush2.bf16.msra.mxu0 %v4216
        %4306 = vmatprep.subr.bf16.mxu0 0
        %4307 = vmatpush2.bf16.msra.mxu0 %v4215
        %4308 = vmatprep.subr.bf16.mxu0 0
        %4309 = vmatpush2.bf16.msra.mxu0 %v4214
        %4310 = vmatprep.subr.bf16.mxu0 0
        %4311 = vmatpush2.bf16.msra.mxu0 %v4213
        %4312 = vmatprep.mubr.bf16.mxu0 %v3972
        %4313 = vmatmul.mubr.bf16.gmra.mxu0 %v3968
        %v4314 = vpop.f32.mrf.mxu0
        %v4315 = vadd.f32 %v4059, %v4314
        %v4316 = vpop.f32.mrf.mxu0
        %v4317 = vpop.f32.mrf.mxu0
        %v4318 = vadd.f32 %v4059, %v4317
        %v4319 = vpop.f32.mrf.mxu0
        %4320 = vdwg.mxu0
        %4321 = vmatprep.subr.bf16.mxu0 0
        %4322 = vmatpush1.bf16.msra.mxu0 %v4228
        %4323 = vmatprep.subr.bf16.mxu0 0
        %4324 = vmatpush1.bf16.msra.mxu0 %v4227
        %4325 = vmatprep.subr.bf16.mxu0 0
        %4326 = vmatpush1.bf16.msra.mxu0 %v4226
        %4327 = vmatprep.subr.bf16.mxu0 0
        %4328 = vmatpush1.bf16.msra.mxu0 %v4225
        %4329 = vmatprep.subr.bf16.mxu0 0
        %4330 = vmatpush1.bf16.msra.mxu0 %v4224
        %4331 = vmatprep.subr.bf16.mxu0 0
        %4332 = vmatpush1.bf16.msra.mxu0 %v4223
        %4333 = vmatprep.subr.bf16.mxu0 0
        %4334 = vmatpush1.bf16.msra.mxu0 %v4222
        %4335 = vmatprep.subr.bf16.mxu0 0
        %4336 = vmatpush1.bf16.msra.mxu0 %v4221
        %4337 = vmatprep.subr.bf16.mxu0 0
        %4338 = vmatpush2.bf16.msra.mxu0 %v4236
        %4339 = vmatprep.subr.bf16.mxu0 0
        %4340 = vmatpush2.bf16.msra.mxu0 %v4235
        %4341 = vmatprep.subr.bf16.mxu0 0
        %4342 = vmatpush2.bf16.msra.mxu0 %v4234
        %4343 = vmatprep.subr.bf16.mxu0 0
        %4344 = vmatpush2.bf16.msra.mxu0 %v4233
        %4345 = vmatprep.subr.bf16.mxu0 0
        %4346 = vmatpush2.bf16.msra.mxu0 %v4232
        %4347 = vmatprep.subr.bf16.mxu0 0
        %4348 = vmatpush2.bf16.msra.mxu0 %v4231
        %4349 = vmatprep.subr.bf16.mxu0 0
        %4350 = vmatpush2.bf16.msra.mxu0 %v4230
        %4351 = vmatprep.subr.bf16.mxu0 0
        %4352 = vmatpush2.bf16.msra.mxu0 %v4229
        %4353 = vmatprep.mubr.bf16.mxu0 %v3980
        %4354 = vmatmul.mubr.bf16.gmra.mxu0 %v3976
        %v4355 = vpop.f32.mrf.mxu0
        %v4356 = vadd.f32 %v4315, %v4355
        %v4357 = vpop.f32.mrf.mxu0
        %v4358 = vpop.f32.mrf.mxu0
        %v4359 = vadd.f32 %v4318, %v4358
        %v4360 = vpop.f32.mrf.mxu0
        %4361 = vdwg.mxu0
        %4362 = vmatprep.subr.bf16.mxu0 0
        %4363 = vmatpush1.bf16.msra.mxu0 0
        %4364 = vmatprep.subr.bf16.mxu0 0
        %4365 = vmatpush1.bf16.msra.mxu0 0
        %4366 = vmatprep.subr.bf16.mxu0 0
        %4367 = vmatpush1.bf16.msra.mxu0 0
        %4368 = vmatprep.subr.bf16.mxu0 0
        %4369 = vmatpush1.bf16.msra.mxu0 0
        %4370 = vmatprep.subr.bf16.mxu0 0
        %4371 = vmatpush1.bf16.msra.mxu0 %v4240
        %4372 = vmatprep.subr.bf16.mxu0 0
        %4373 = vmatpush1.bf16.msra.mxu0 %v4239
        %4374 = vmatprep.subr.bf16.mxu0 0
        %4375 = vmatpush1.bf16.msra.mxu0 %v4238
        %4376 = vmatprep.subr.bf16.mxu0 0
        %4377 = vmatpush1.bf16.msra.mxu0 %v4237
        %4378 = vmatprep.subr.bf16.mxu0 0
        %4379 = vmatpush2.bf16.msra.mxu0 0
        %4380 = vmatprep.subr.bf16.mxu0 0
        %4381 = vmatpush2.bf16.msra.mxu0 0
        %4382 = vmatprep.subr.bf16.mxu0 0
        %4383 = vmatpush2.bf16.msra.mxu0 0
        %4384 = vmatprep.subr.bf16.mxu0 0
        %4385 = vmatpush2.bf16.msra.mxu0 0
        %4386 = vmatprep.subr.bf16.mxu0 0
        %4387 = vmatpush2.bf16.msra.mxu0 0
        %4388 = vmatprep.subr.bf16.mxu0 0
        %4389 = vmatpush2.bf16.msra.mxu0 0
        %4390 = vmatprep.subr.bf16.mxu0 0
        %4391 = vmatpush2.bf16.msra.mxu0 0
        %4392 = vmatprep.subr.bf16.mxu0 0
        %4393 = vmatpush2.bf16.msra.mxu0 0
        %4394 = vmatprep.mubr.bf16.mxu0 0
        %4395 = vmatmul.mubr.bf16.gmra.mxu0 %v4278
        %v4396 = vpop.f32.mrf.mxu0
        %v4397 = vadd.f32 %v4356, %v4396
        %v4398 = vpop.f32.mrf.mxu0
        %v4399 = vpop.f32.mrf.mxu0
        %v4400 = vadd.f32 %v4359, %v4399
        %v4401 = vpop.f32.mrf.mxu0
        %4402 = vdwg.mxu0
        %v4403 = vmax.f32 %v4397, 0.0
        %v4404 = vmax.f32 %v4400, 0.0
        %v4405 = vpack.c.bf16 %v4404, %v4403
        %v4406 = vld [vmem:[%s7] sm:$0xff]
        %v4407 = vld [vmem:[%s7 + $0x8] sm:$0xff]
        %v4408 = vld [vmem:[%s7 + $0x10] sm:$0xff]
        %v4409 = vld [vmem:[%s7 + $0x18] sm:$0xff]
        %v4410 = vld [vmem:[%s7 + $0x20] sm:$0xff]
        %v4411 = vld [vmem:[%s7 + $0x28] sm:$0xff]
        %v4412 = vld [vmem:[%s7 + $0x30] sm:$0xff]
        %v4413 = vld [vmem:[%s7 + $0x38] sm:$0xff]
        %v4414 = vld [vmem:[%s7 + $0x40] sm:$0xff]
        %v4415 = vld [vmem:[%s7 + $0x48] sm:$0xff]
        %v4416 = vld [vmem:[%s7 + $0x50] sm:$0xff]
        %v4417 = vld [vmem:[%s7 + $0x58] sm:$0xff]
        %v4418 = vld [vmem:[%s7 + $0x60] sm:$0xff]
        %v4419 = vld [vmem:[%s7 + $0x68] sm:$0xff]
        %v4420 = vld [vmem:[%s7 + $0x70] sm:$0xff]
        %v4421 = vld [vmem:[%s7 + $0x78] sm:$0xff]
        %v4422 = vld [vmem:[%s8] sm:$0xf]
        %v4424 = vlaneseq
        %v4425 = vshrl.u32 %v4424, 7
        %v4426 = vsub.s32 0, %v4425
        %v4427 = vrot.slane %v4422, %v4426
        %v4428 = vlaneseq
        %v4429 = vshrl.u32 %v4428, 7
        %v4430 = vsub.s32 1, %v4429
        %v4431 = vrot.slane %v4422, %v4430
        %v4432 = vlaneseq
        %v4433 = vshrl.u32 %v4432, 7
        %v4434 = vsub.s32 2, %v4433
        %v4435 = vrot.slane %v4422, %v4434
        %v4436 = vlaneseq
        %v4437 = vshrl.u32 %v4436, 7
        %v4438 = vsub.s32 3, %v4437
        %v4439 = vrot.slane %v4422, %v4438
        %v4460 = vunpack.c.l.b16 %v4406
        %v4461 = vunpack.c.h.b16 %v4406
        %v4462 = vunpack.c.l.b16 %v4407
        %v4463 = vunpack.c.h.b16 %v4407
        %v4464 = vunpack.c.l.b16 %v4408
        %v4465 = vunpack.c.h.b16 %v4408
        %v4466 = vunpack.c.l.b16 %v4409
        %v4467 = vunpack.c.h.b16 %v4409
        %v4468 = vunpack.c.l.b16 %v4410
        %v4469 = vunpack.c.h.b16 %v4410
        %v4470 = vunpack.c.l.b16 %v4411
        %v4471 = vunpack.c.h.b16 %v4411
        %v4472 = vunpack.c.l.b16 %v4412
        %v4473 = vunpack.c.h.b16 %v4412
        %v4474 = vunpack.c.l.b16 %v4413
        %v4475 = vunpack.c.h.b16 %v4413
        %v4476 = vunpack.c.l.b16 %v4414
        %v4477 = vunpack.c.h.b16 %v4414
        %v4478 = vunpack.c.l.b16 %v4415
        %v4479 = vunpack.c.h.b16 %v4415
        %v4480 = vunpack.c.l.b16 %v4416
        %v4481 = vunpack.c.h.b16 %v4416
        %v4482 = vunpack.c.l.b16 %v4417
        %v4483 = vunpack.c.h.b16 %v4417
        %v4484 = vunpack.c.l.b16 %v4418
        %v4485 = vunpack.c.h.b16 %v4418
        %v4486 = vunpack.c.l.b16 %v4419
        %v4487 = vunpack.c.h.b16 %v4419
        %v4488 = vunpack.c.l.b16 %v4420
        %v4489 = vunpack.c.h.b16 %v4420
        %v4490 = vunpack.c.l.b16 %v4421
        %v4491 = vunpack.c.h.b16 %v4421
        %v4492 = vpack.c.b16 %v4464, %v4460
        %v4493 = vpack.c.b16 %v4465, %v4461
        %v4494 = vpack.c.b16 %v4466, %v4462
        %v4495 = vpack.c.b16 %v4467, %v4463
        %v4496 = vpack.c.b16 %v4472, %v4468
        %v4497 = vpack.c.b16 %v4473, %v4469
        %v4498 = vpack.c.b16 %v4474, %v4470
        %v4499 = vpack.c.b16 %v4475, %v4471
        %v4500 = vpack.c.b16 %v4480, %v4476
        %v4501 = vpack.c.b16 %v4481, %v4477
        %v4502 = vpack.c.b16 %v4482, %v4478
        %v4503 = vpack.c.b16 %v4483, %v4479
        %v4504 = vpack.c.b16 %v4488, %v4484
        %v4505 = vpack.c.b16 %v4489, %v4485
        %v4506 = vpack.c.b16 %v4490, %v4486
        %v4507 = vpack.c.b16 %v4491, %v4487
        %v4525 = vsel %vm1899, %v4405, 0
        %4527 = vmatprep.subr.bf16.mxu0 0
        %4528 = vmatpush1.bf16.msra.mxu0 0
        %4529 = vmatprep.subr.bf16.mxu0 0
        %4530 = vmatpush1.bf16.msra.mxu0 0
        %4531 = vmatprep.subr.bf16.mxu0 0
        %4532 = vmatpush1.bf16.msra.mxu0 0
        %4533 = vmatprep.subr.bf16.mxu0 0
        %4534 = vmatpush1.bf16.msra.mxu0 0
        %4535 = vmatprep.subr.bf16.mxu0 %v4505
        %4536 = vmatpush1.bf16.msra.mxu0 %v4504
        %4537 = vmatprep.subr.bf16.mxu0 %v4501
        %4538 = vmatpush1.bf16.msra.mxu0 %v4500
        %4539 = vmatprep.subr.bf16.mxu0 %v4497
        %4540 = vmatpush1.bf16.msra.mxu0 %v4496
        %4541 = vmatprep.subr.bf16.mxu0 %v4493
        %4542 = vmatpush1.bf16.msra.mxu0 %v4492
        %4543 = vmatprep.subr.bf16.mxu0 0
        %4544 = vmatpush2.bf16.msra.mxu0 0
        %4545 = vmatprep.subr.bf16.mxu0 0
        %4546 = vmatpush2.bf16.msra.mxu0 0
        %4547 = vmatprep.subr.bf16.mxu0 0
        %4548 = vmatpush2.bf16.msra.mxu0 0
        %4549 = vmatprep.subr.bf16.mxu0 0
        %4550 = vmatpush2.bf16.msra.mxu0 0
        %4551 = vmatprep.subr.bf16.mxu0 0
        %4552 = vmatpush2.bf16.msra.mxu0 0
        %4553 = vmatprep.subr.bf16.mxu0 0
        %4554 = vmatpush2.bf16.msra.mxu0 0
        %4555 = vmatprep.subr.bf16.mxu0 0
        %4556 = vmatpush2.bf16.msra.mxu0 0
        %4557 = vmatprep.subr.bf16.mxu0 0
        %4558 = vmatpush2.bf16.msra.mxu0 0
        %4559 = vmatprep.mubr.bf16.mxu0 0
        %4560 = vmatmul.mubr.bf16.gmra.mxu0 %v4525
        %v4561 = vpop.f32.mrf.mxu0
        %v4562 = vadd.f32 %v4427, %v4561
        %v4563 = vpop.f32.mrf.mxu0
        %v4564 = vadd.f32 %v4431, %v4563
        %v4565 = vpop.f32.mrf.mxu0
        %v4566 = vadd.f32 %v4427, %v4565
        %v4567 = vpop.f32.mrf.mxu0
        %v4568 = vadd.f32 %v4431, %v4567
        %4569 = vdwg.mxu0
        %4570 = vmatprep.subr.bf16.mxu0 0
        %4571 = vmatpush1.bf16.msra.mxu0 0
        %4572 = vmatprep.subr.bf16.mxu0 0
        %4573 = vmatpush1.bf16.msra.mxu0 0
        %4574 = vmatprep.subr.bf16.mxu0 0
        %4575 = vmatpush1.bf16.msra.mxu0 0
        %4576 = vmatprep.subr.bf16.mxu0 0
        %4577 = vmatpush1.bf16.msra.mxu0 0
        %4578 = vmatprep.subr.bf16.mxu0 %v4507
        %4579 = vmatpush1.bf16.msra.mxu0 %v4506
        %4580 = vmatprep.subr.bf16.mxu0 %v4503
        %4581 = vmatpush1.bf16.msra.mxu0 %v4502
        %4582 = vmatprep.subr.bf16.mxu0 %v4499
        %4583 = vmatpush1.bf16.msra.mxu0 %v4498
        %4584 = vmatprep.subr.bf16.mxu0 %v4495
        %4585 = vmatpush1.bf16.msra.mxu0 %v4494
        %4586 = vmatprep.subr.bf16.mxu0 0
        %4587 = vmatpush2.bf16.msra.mxu0 0
        %4588 = vmatprep.subr.bf16.mxu0 0
        %4589 = vmatpush2.bf16.msra.mxu0 0
        %4590 = vmatprep.subr.bf16.mxu0 0
        %4591 = vmatpush2.bf16.msra.mxu0 0
        %4592 = vmatprep.subr.bf16.mxu0 0
        %4593 = vmatpush2.bf16.msra.mxu0 0
        %4594 = vmatprep.subr.bf16.mxu0 0
        %4595 = vmatpush2.bf16.msra.mxu0 0
        %4596 = vmatprep.subr.bf16.mxu0 0
        %4597 = vmatpush2.bf16.msra.mxu0 0
        %4598 = vmatprep.subr.bf16.mxu0 0
        %4599 = vmatpush2.bf16.msra.mxu0 0
        %4600 = vmatprep.subr.bf16.mxu0 0
        %4601 = vmatpush2.bf16.msra.mxu0 0
        %4602 = vmatprep.mubr.bf16.mxu0 0
        %4603 = vmatmul.mubr.bf16.gmra.mxu0 %v4525
        %v4604 = vpop.f32.mrf.mxu0
        %v4605 = vadd.f32 %v4435, %v4604
        %v4606 = vpop.f32.mrf.mxu0
        %v4607 = vadd.f32 %v4439, %v4606
        %v4608 = vpop.f32.mrf.mxu0
        %v4609 = vadd.f32 %v4435, %v4608
        %v4610 = vpop.f32.mrf.mxu0
        %v4611 = vadd.f32 %v4439, %v4610
        %4612 = vdwg.mxu0
        %v4613 = vmax.f32 %v4562, 0.0
        %v4614 = vmax.f32 %v4564, 0.0
        %v4615 = vmax.f32 %v4605, 0.0
        %v4616 = vmax.f32 %v4607, 0.0
        %v4617 = vmax.f32 %v4566, 0.0
        %v4618 = vmax.f32 %v4568, 0.0
        %v4619 = vmax.f32 %v4609, 0.0
        %v4620 = vmax.f32 %v4611, 0.0
        %v4621 = vpack.c.bf16 %v4617, %v4613
        %v4622 = vpack.c.bf16 %v4618, %v4614
        %v4623 = vpack.c.bf16 %v4619, %v4615
        %v4624 = vpack.c.bf16 %v4620, %v4616
        %v4625 = vld [vmem:[%s9] sm:$0xff]
        %v4626 = vld [vmem:[%s9 + $0x8] sm:$0xff]
        %v4627 = vld [vmem:[%s9 + $0x10] sm:$0xff]
        %v4628 = vld [vmem:[%s9 + $0x18] sm:$0xff]
        %v4629 = vld [vmem:[%s9 + $0x20] sm:$0xff]
        %v4630 = vld [vmem:[%s9 + $0x28] sm:$0xff]
        %v4631 = vld [vmem:[%s9 + $0x30] sm:$0xff]
        %v4632 = vld [vmem:[%s9 + $0x38] sm:$0xff]
        %v4633 = vld [vmem:[%s9 + $0x40] sm:$0xff]
        %v4634 = vld [vmem:[%s9 + $0x48] sm:$0xff]
        %v4635 = vld [vmem:[%s9 + $0x50] sm:$0xff]
        %v4636 = vld [vmem:[%s9 + $0x58] sm:$0xff]
        %v4637 = vld [vmem:[%s9 + $0x60] sm:$0xff]
        %v4638 = vld [vmem:[%s9 + $0x68] sm:$0xff]
        %v4639 = vld [vmem:[%s9 + $0x70] sm:$0xff]
        %v4640 = vld [vmem:[%s9 + $0x78] sm:$0xff]
        %v4641 = vld [vmem:[%s9 + $0x80] sm:$0xff]
        %v4642 = vld [vmem:[%s9 + $0x88] sm:$0xff]
        %v4643 = vld [vmem:[%s9 + $0x90] sm:$0xff]
        %v4644 = vld [vmem:[%s9 + $0x98] sm:$0xff]
        %v4645 = vld [vmem:[%s9 + $0xa0] sm:$0xff]
        %v4646 = vld [vmem:[%s9 + $0xa8] sm:$0xff]
        %v4647 = vld [vmem:[%s9 + $0xb0] sm:$0xff]
        %v4648 = vld [vmem:[%s9 + $0xb8] sm:$0xff]
        %v4649 = vld [vmem:[%s9 + $0xc0] sm:$0xff]
        %v4650 = vld [vmem:[%s9 + $0xc8] sm:$0xff]
        %v4651 = vld [vmem:[%s9 + $0xd0] sm:$0xff]
        %v4652 = vld [vmem:[%s9 + $0xd8] sm:$0xff]
        %v4653 = vld [vmem:[%s9 + $0xe0] sm:$0xff]
        %v4654 = vld [vmem:[%s9 + $0xe8] sm:$0xff]
        %v4655 = vld [vmem:[%s9 + $0xf0] sm:$0xff]
        %v4656 = vld [vmem:[%s9 + $0xf8] sm:$0xff]
        %v4657 = vld [vmem:[%s9 + $0x100] sm:$0xff]
        %v4658 = vld [vmem:[%s9 + $0x108] sm:$0xff]
        %v4659 = vld [vmem:[%s9 + $0x110] sm:$0xff]
        %v4660 = vld [vmem:[%s9 + $0x118] sm:$0xff]
        %v4661 = vld [vmem:[%s9 + $0x120] sm:$0xff]
        %v4662 = vld [vmem:[%s9 + $0x128] sm:$0xff]
        %v4663 = vld [vmem:[%s9 + $0x130] sm:$0xff]
        %v4664 = vld [vmem:[%s9 + $0x138] sm:$0xff]
        %v4665 = vld [vmem:[%s9 + $0x140] sm:$0xff]
        %v4666 = vld [vmem:[%s9 + $0x148] sm:$0xff]
        %v4667 = vld [vmem:[%s9 + $0x150] sm:$0xff]
        %v4668 = vld [vmem:[%s9 + $0x158] sm:$0xff]
        %v4669 = vld [vmem:[%s9 + $0x160] sm:$0xff]
        %v4670 = vld [vmem:[%s9 + $0x168] sm:$0xff]
        %v4671 = vld [vmem:[%s9 + $0x170] sm:$0xff]
        %v4672 = vld [vmem:[%s9 + $0x178] sm:$0xff]
        %v4673 = vld [vmem:[%s9 + $0x180] sm:$0xff]
        %v4674 = vld [vmem:[%s9 + $0x188] sm:$0xff]
        %v4675 = vld [vmem:[%s9 + $0x190] sm:$0xff]
        %v4676 = vld [vmem:[%s9 + $0x198] sm:$0xff]
        %v4677 = vld [vmem:[%s9 + $0x1a0] sm:$0xff]
        %v4678 = vld [vmem:[%s9 + $0x1a8] sm:$0xff]
        %v4679 = vld [vmem:[%s9 + $0x1b0] sm:$0xff]
        %v4680 = vld [vmem:[%s9 + $0x1b8] sm:$0xff]
        %v4681 = vld [vmem:[%s9 + $0x1c0] sm:$0xff]
        %v4682 = vld [vmem:[%s9 + $0x1c8] sm:$0xff]
        %v4683 = vld [vmem:[%s9 + $0x1d0] sm:$0xff]
        %v4684 = vld [vmem:[%s9 + $0x1d8] sm:$0xff]
        %v4685 = vld [vmem:[%s9 + $0x1e0] sm:$0xff]
        %v4686 = vld [vmem:[%s9 + $0x1e8] sm:$0xff]
        %v4687 = vld [vmem:[%s9 + $0x1f0] sm:$0xff]
        %v4688 = vld [vmem:[%s9 + $0x1f8] sm:$0xff]
        %v4689 = vld [vmem:[%s9 + $0x200] sm:$0xff]
        %v4690 = vld [vmem:[%s9 + $0x208] sm:$0xff]
        %v4691 = vld [vmem:[%s9 + $0x210] sm:$0xff]
        %v4692 = vld [vmem:[%s9 + $0x218] sm:$0xff]
        %v4693 = vld [vmem:[%s9 + $0x220] sm:$0xff]
        %v4694 = vld [vmem:[%s9 + $0x228] sm:$0xff]
        %v4695 = vld [vmem:[%s9 + $0x230] sm:$0xff]
        %v4696 = vld [vmem:[%s9 + $0x238] sm:$0xff]
        %v4697 = vld [vmem:[%s9 + $0x240] sm:$0xff]
        %v4698 = vld [vmem:[%s9 + $0x248] sm:$0xff]
        %v4699 = vld [vmem:[%s9 + $0x250] sm:$0xff]
        %v4700 = vld [vmem:[%s9 + $0x258] sm:$0xff]
        %v4701 = vld [vmem:[%s9 + $0x260] sm:$0xff]
        %v4702 = vld [vmem:[%s9 + $0x268] sm:$0xff]
        %v4703 = vld [vmem:[%s9 + $0x270] sm:$0xff]
        %v4704 = vld [vmem:[%s9 + $0x278] sm:$0xff]
        %v4705 = vld [vmem:[%s9 + $0x280] sm:$0xff]
        %v4706 = vld [vmem:[%s9 + $0x288] sm:$0xff]
        %v4707 = vld [vmem:[%s9 + $0x290] sm:$0xff]
        %v4708 = vld [vmem:[%s9 + $0x298] sm:$0xff]
        %v4709 = vld [vmem:[%s9 + $0x2a0] sm:$0xff]
        %v4710 = vld [vmem:[%s9 + $0x2a8] sm:$0xff]
        %v4711 = vld [vmem:[%s9 + $0x2b0] sm:$0xff]
        %v4712 = vld [vmem:[%s9 + $0x2b8] sm:$0xff]
        %v4713 = vld [vmem:[%s9 + $0x2c0] sm:$0xff]
        %v4714 = vld [vmem:[%s9 + $0x2c8] sm:$0xff]
        %v4715 = vld [vmem:[%s9 + $0x2d0] sm:$0xff]
        %v4716 = vld [vmem:[%s9 + $0x2d8] sm:$0xff]
        %v4717 = vld [vmem:[%s9 + $0x2e0] sm:$0xff]
        %v4718 = vld [vmem:[%s9 + $0x2e8] sm:$0xff]
        %v4719 = vld [vmem:[%s9 + $0x2f0] sm:$0xff]
        %v4720 = vld [vmem:[%s9 + $0x2f8] sm:$0xff]
        %v4721 = vld [vmem:[%s9 + $0x300] sm:$0xff]
        %v4722 = vld [vmem:[%s9 + $0x308] sm:$0xff]
        %v4723 = vld [vmem:[%s9 + $0x310] sm:$0xff]
        %v4724 = vld [vmem:[%s9 + $0x318] sm:$0xff]
        %v4725 = vld [vmem:[%s9 + $0x320] sm:$0xff]
        %v4726 = vld [vmem:[%s9 + $0x328] sm:$0xff]
        %v4727 = vld [vmem:[%s9 + $0x330] sm:$0xff]
        %v4728 = vld [vmem:[%s9 + $0x338] sm:$0xff]
        %v4729 = vld [vmem:[%s9 + $0x340] sm:$0xff]
        %v4730 = vld [vmem:[%s9 + $0x348] sm:$0xff]
        %v4731 = vld [vmem:[%s9 + $0x350] sm:$0xff]
        %v4732 = vld [vmem:[%s9 + $0x358] sm:$0xff]
        %v4733 = vld [vmem:[%s9 + $0x360] sm:$0xff]
        %v4734 = vld [vmem:[%s9 + $0x368] sm:$0xff]
        %v4735 = vld [vmem:[%s9 + $0x370] sm:$0xff]
        %v4736 = vld [vmem:[%s9 + $0x378] sm:$0xff]
        %v4737 = vld [vmem:[%s9 + $0x380] sm:$0xff]
        %v4738 = vld [vmem:[%s9 + $0x388] sm:$0xff]
        %v4739 = vld [vmem:[%s9 + $0x390] sm:$0xff]
        %v4740 = vld [vmem:[%s9 + $0x398] sm:$0xff]
        %v4741 = vld [vmem:[%s9 + $0x3a0] sm:$0xff]
        %v4742 = vld [vmem:[%s9 + $0x3a8] sm:$0xff]
        %v4743 = vld [vmem:[%s9 + $0x3b0] sm:$0xff]
        %v4744 = vld [vmem:[%s9 + $0x3b8] sm:$0xff]
        %v4745 = vld [vmem:[%s9 + $0x3c0] sm:$0xff]
        %v4746 = vld [vmem:[%s9 + $0x3c8] sm:$0xff]
        %v4747 = vld [vmem:[%s9 + $0x3d0] sm:$0xff]
        %v4748 = vld [vmem:[%s9 + $0x3d8] sm:$0xff]
        %v4749 = vld [vmem:[%s9 + $0x3e0] sm:$0xff]
        %v4750 = vld [vmem:[%s9 + $0x3e8] sm:$0xff]
        %v4751 = vld [vmem:[%s9 + $0x3f0] sm:$0xff]
        %v4752 = vld [vmem:[%s9 + $0x3f8] sm:$0xff]
        %v4753 = vld [vmem:[%s10] sm:$0xf]
        %v4755 = vlaneseq
        %v4756 = vshrl.u32 %v4755, 7
        %v4757 = vsub.s32 0, %v4756
        %v4758 = vrot.slane %v4753, %v4757
        %v4759 = vlaneseq
        %v4760 = vshrl.u32 %v4759, 7
        %v4761 = vsub.s32 1, %v4760
        %v4762 = vrot.slane %v4753, %v4761
        %v4763 = vlaneseq
        %v4764 = vshrl.u32 %v4763, 7
        %v4765 = vsub.s32 2, %v4764
        %v4766 = vrot.slane %v4753, %v4765
        %v4767 = vlaneseq
        %v4768 = vshrl.u32 %v4767, 7
        %v4769 = vsub.s32 3, %v4768
        %v4770 = vrot.slane %v4753, %v4769
        %v4903 = vunpack.c.l.b16 %v4625
        %v4904 = vunpack.c.h.b16 %v4625
        %v4905 = vunpack.c.l.b16 %v4626
        %v4906 = vunpack.c.h.b16 %v4626
        %v4907 = vunpack.c.l.b16 %v4627
        %v4908 = vunpack.c.h.b16 %v4627
        %v4909 = vunpack.c.l.b16 %v4628
        %v4910 = vunpack.c.h.b16 %v4628
        %v4911 = vunpack.c.l.b16 %v4629
        %v4912 = vunpack.c.h.b16 %v4629
        %v4913 = vunpack.c.l.b16 %v4630
        %v4914 = vunpack.c.h.b16 %v4630
        %v4915 = vunpack.c.l.b16 %v4631
        %v4916 = vunpack.c.h.b16 %v4631
        %v4917 = vunpack.c.l.b16 %v4632
        %v4918 = vunpack.c.h.b16 %v4632
        %v4919 = vunpack.c.l.b16 %v4633
        %v4920 = vunpack.c.h.b16 %v4633
        %v4921 = vunpack.c.l.b16 %v4634
        %v4922 = vunpack.c.h.b16 %v4634
        %v4923 = vunpack.c.l.b16 %v4635
        %v4924 = vunpack.c.h.b16 %v4635
        %v4925 = vunpack.c.l.b16 %v4636
        %v4926 = vunpack.c.h.b16 %v4636
        %v4927 = vunpack.c.l.b16 %v4637
        %v4928 = vunpack.c.h.b16 %v4637
        %v4929 = vunpack.c.l.b16 %v4638
        %v4930 = vunpack.c.h.b16 %v4638
        %v4931 = vunpack.c.l.b16 %v4639
        %v4932 = vunpack.c.h.b16 %v4639
        %v4933 = vunpack.c.l.b16 %v4640
        %v4934 = vunpack.c.h.b16 %v4640
        %v4935 = vunpack.c.l.b16 %v4641
        %v4936 = vunpack.c.h.b16 %v4641
        %v4937 = vunpack.c.l.b16 %v4642
        %v4938 = vunpack.c.h.b16 %v4642
        %v4939 = vunpack.c.l.b16 %v4643
        %v4940 = vunpack.c.h.b16 %v4643
        %v4941 = vunpack.c.l.b16 %v4644
        %v4942 = vunpack.c.h.b16 %v4644
        %v4943 = vunpack.c.l.b16 %v4645
        %v4944 = vunpack.c.h.b16 %v4645
        %v4945 = vunpack.c.l.b16 %v4646
        %v4946 = vunpack.c.h.b16 %v4646
        %v4947 = vunpack.c.l.b16 %v4647
        %v4948 = vunpack.c.h.b16 %v4647
        %v4949 = vunpack.c.l.b16 %v4648
        %v4950 = vunpack.c.h.b16 %v4648
        %v4951 = vunpack.c.l.b16 %v4649
        %v4952 = vunpack.c.h.b16 %v4649
        %v4953 = vunpack.c.l.b16 %v4650
        %v4954 = vunpack.c.h.b16 %v4650
        %v4955 = vunpack.c.l.b16 %v4651
        %v4956 = vunpack.c.h.b16 %v4651
        %v4957 = vunpack.c.l.b16 %v4652
        %v4958 = vunpack.c.h.b16 %v4652
        %v4959 = vunpack.c.l.b16 %v4653
        %v4960 = vunpack.c.h.b16 %v4653
        %v4961 = vunpack.c.l.b16 %v4654
        %v4962 = vunpack.c.h.b16 %v4654
        %v4963 = vunpack.c.l.b16 %v4655
        %v4964 = vunpack.c.h.b16 %v4655
        %v4965 = vunpack.c.l.b16 %v4656
        %v4966 = vunpack.c.h.b16 %v4656
        %v4967 = vunpack.c.l.b16 %v4657
        %v4968 = vunpack.c.h.b16 %v4657
        %v4969 = vunpack.c.l.b16 %v4658
        %v4970 = vunpack.c.h.b16 %v4658
        %v4971 = vunpack.c.l.b16 %v4659
        %v4972 = vunpack.c.h.b16 %v4659
        %v4973 = vunpack.c.l.b16 %v4660
        %v4974 = vunpack.c.h.b16 %v4660
        %v4975 = vunpack.c.l.b16 %v4661
        %v4976 = vunpack.c.h.b16 %v4661
        %v4977 = vunpack.c.l.b16 %v4662
        %v4978 = vunpack.c.h.b16 %v4662
        %v4979 = vunpack.c.l.b16 %v4663
        %v4980 = vunpack.c.h.b16 %v4663
        %v4981 = vunpack.c.l.b16 %v4664
        %v4982 = vunpack.c.h.b16 %v4664
        %v4983 = vunpack.c.l.b16 %v4665
        %v4984 = vunpack.c.h.b16 %v4665
        %v4985 = vunpack.c.l.b16 %v4666
        %v4986 = vunpack.c.h.b16 %v4666
        %v4987 = vunpack.c.l.b16 %v4667
        %v4988 = vunpack.c.h.b16 %v4667
        %v4989 = vunpack.c.l.b16 %v4668
        %v4990 = vunpack.c.h.b16 %v4668
        %v4991 = vunpack.c.l.b16 %v4669
        %v4992 = vunpack.c.h.b16 %v4669
        %v4993 = vunpack.c.l.b16 %v4670
        %v4994 = vunpack.c.h.b16 %v4670
        %v4995 = vunpack.c.l.b16 %v4671
        %v4996 = vunpack.c.h.b16 %v4671
        %v4997 = vunpack.c.l.b16 %v4672
        %v4998 = vunpack.c.h.b16 %v4672
        %v4999 = vunpack.c.l.b16 %v4673
        %v5000 = vunpack.c.h.b16 %v4673
        %v5001 = vunpack.c.l.b16 %v4674
        %v5002 = vunpack.c.h.b16 %v4674
        %v5003 = vunpack.c.l.b16 %v4675
        %v5004 = vunpack.c.h.b16 %v4675
        %v5005 = vunpack.c.l.b16 %v4676
        %v5006 = vunpack.c.h.b16 %v4676
        %v5007 = vunpack.c.l.b16 %v4677
        %v5008 = vunpack.c.h.b16 %v4677
        %v5009 = vunpack.c.l.b16 %v4678
        %v5010 = vunpack.c.h.b16 %v4678
        %v5011 = vunpack.c.l.b16 %v4679
        %v5012 = vunpack.c.h.b16 %v4679
        %v5013 = vunpack.c.l.b16 %v4680
        %v5014 = vunpack.c.h.b16 %v4680
        %v5015 = vunpack.c.l.b16 %v4681
        %v5016 = vunpack.c.h.b16 %v4681
        %v5017 = vunpack.c.l.b16 %v4682
        %v5018 = vunpack.c.h.b16 %v4682
        %v5019 = vunpack.c.l.b16 %v4683
        %v5020 = vunpack.c.h.b16 %v4683
        %v5021 = vunpack.c.l.b16 %v4684
        %v5022 = vunpack.c.h.b16 %v4684
        %v5023 = vunpack.c.l.b16 %v4685
        %v5024 = vunpack.c.h.b16 %v4685
        %v5025 = vunpack.c.l.b16 %v4686
        %v5026 = vunpack.c.h.b16 %v4686
        %v5027 = vunpack.c.l.b16 %v4687
        %v5028 = vunpack.c.h.b16 %v4687
        %v5029 = vunpack.c.l.b16 %v4688
        %v5030 = vunpack.c.h.b16 %v4688
        %v5031 = vunpack.c.l.b16 %v4689
        %v5032 = vunpack.c.h.b16 %v4689
        %v5033 = vunpack.c.l.b16 %v4690
        %v5034 = vunpack.c.h.b16 %v4690
        %v5035 = vunpack.c.l.b16 %v4691
        %v5036 = vunpack.c.h.b16 %v4691
        %v5037 = vunpack.c.l.b16 %v4692
        %v5038 = vunpack.c.h.b16 %v4692
        %v5039 = vunpack.c.l.b16 %v4693
        %v5040 = vunpack.c.h.b16 %v4693
        %v5041 = vunpack.c.l.b16 %v4694
        %v5042 = vunpack.c.h.b16 %v4694
        %v5043 = vunpack.c.l.b16 %v4695
        %v5044 = vunpack.c.h.b16 %v4695
        %v5045 = vunpack.c.l.b16 %v4696
        %v5046 = vunpack.c.h.b16 %v4696
        %v5047 = vunpack.c.l.b16 %v4697
        %v5048 = vunpack.c.h.b16 %v4697
        %v5049 = vunpack.c.l.b16 %v4698
        %v5050 = vunpack.c.h.b16 %v4698
        %v5051 = vunpack.c.l.b16 %v4699
        %v5052 = vunpack.c.h.b16 %v4699
        %v5053 = vunpack.c.l.b16 %v4700
        %v5054 = vunpack.c.h.b16 %v4700
        %v5055 = vunpack.c.l.b16 %v4701
        %v5056 = vunpack.c.h.b16 %v4701
        %v5057 = vunpack.c.l.b16 %v4702
        %v5058 = vunpack.c.h.b16 %v4702
        %v5059 = vunpack.c.l.b16 %v4703
        %v5060 = vunpack.c.h.b16 %v4703
        %v5061 = vunpack.c.l.b16 %v4704
        %v5062 = vunpack.c.h.b16 %v4704
        %v5063 = vunpack.c.l.b16 %v4705
        %v5064 = vunpack.c.h.b16 %v4705
        %v5065 = vunpack.c.l.b16 %v4706
        %v5066 = vunpack.c.h.b16 %v4706
        %v5067 = vunpack.c.l.b16 %v4707
        %v5068 = vunpack.c.h.b16 %v4707
        %v5069 = vunpack.c.l.b16 %v4708
        %v5070 = vunpack.c.h.b16 %v4708
        %v5071 = vunpack.c.l.b16 %v4709
        %v5072 = vunpack.c.h.b16 %v4709
        %v5073 = vunpack.c.l.b16 %v4710
        %v5074 = vunpack.c.h.b16 %v4710
        %v5075 = vunpack.c.l.b16 %v4711
        %v5076 = vunpack.c.h.b16 %v4711
        %v5077 = vunpack.c.l.b16 %v4712
        %v5078 = vunpack.c.h.b16 %v4712
        %v5079 = vunpack.c.l.b16 %v4713
        %v5080 = vunpack.c.h.b16 %v4713
        %v5081 = vunpack.c.l.b16 %v4714
        %v5082 = vunpack.c.h.b16 %v4714
        %v5083 = vunpack.c.l.b16 %v4715
        %v5084 = vunpack.c.h.b16 %v4715
        %v5085 = vunpack.c.l.b16 %v4716
        %v5086 = vunpack.c.h.b16 %v4716
        %v5087 = vunpack.c.l.b16 %v4717
        %v5088 = vunpack.c.h.b16 %v4717
        %v5089 = vunpack.c.l.b16 %v4718
        %v5090 = vunpack.c.h.b16 %v4718
        %v5091 = vunpack.c.l.b16 %v4719
        %v5092 = vunpack.c.h.b16 %v4719
        %v5093 = vunpack.c.l.b16 %v4720
        %v5094 = vunpack.c.h.b16 %v4720
        %v5095 = vunpack.c.l.b16 %v4721
        %v5096 = vunpack.c.h.b16 %v4721
        %v5097 = vunpack.c.l.b16 %v4722
        %v5098 = vunpack.c.h.b16 %v4722
        %v5099 = vunpack.c.l.b16 %v4723
        %v5100 = vunpack.c.h.b16 %v4723
        %v5101 = vunpack.c.l.b16 %v4724
        %v5102 = vunpack.c.h.b16 %v4724
        %v5103 = vunpack.c.l.b16 %v4725
        %v5104 = vunpack.c.h.b16 %v4725
        %v5105 = vunpack.c.l.b16 %v4726
        %v5106 = vunpack.c.h.b16 %v4726
        %v5107 = vunpack.c.l.b16 %v4727
        %v5108 = vunpack.c.h.b16 %v4727
        %v5109 = vunpack.c.l.b16 %v4728
        %v5110 = vunpack.c.h.b16 %v4728
        %v5111 = vunpack.c.l.b16 %v4729
        %v5112 = vunpack.c.h.b16 %v4729
        %v5113 = vunpack.c.l.b16 %v4730
        %v5114 = vunpack.c.h.b16 %v4730
        %v5115 = vunpack.c.l.b16 %v4731
        %v5116 = vunpack.c.h.b16 %v4731
        %v5117 = vunpack.c.l.b16 %v4732
        %v5118 = vunpack.c.h.b16 %v4732
        %v5119 = vunpack.c.l.b16 %v4733
        %v5120 = vunpack.c.h.b16 %v4733
        %v5121 = vunpack.c.l.b16 %v4734
        %v5122 = vunpack.c.h.b16 %v4734
        %v5123 = vunpack.c.l.b16 %v4735
        %v5124 = vunpack.c.h.b16 %v4735
        %v5125 = vunpack.c.l.b16 %v4736
        %v5126 = vunpack.c.h.b16 %v4736
        %v5127 = vunpack.c.l.b16 %v4737
        %v5128 = vunpack.c.h.b16 %v4737
        %v5129 = vunpack.c.l.b16 %v4738
        %v5130 = vunpack.c.h.b16 %v4738
        %v5131 = vunpack.c.l.b16 %v4739
        %v5132 = vunpack.c.h.b16 %v4739
        %v5133 = vunpack.c.l.b16 %v4740
        %v5134 = vunpack.c.h.b16 %v4740
        %v5135 = vunpack.c.l.b16 %v4741
        %v5136 = vunpack.c.h.b16 %v4741
        %v5137 = vunpack.c.l.b16 %v4742
        %v5138 = vunpack.c.h.b16 %v4742
        %v5139 = vunpack.c.l.b16 %v4743
        %v5140 = vunpack.c.h.b16 %v4743
        %v5141 = vunpack.c.l.b16 %v4744
        %v5142 = vunpack.c.h.b16 %v4744
        %v5143 = vunpack.c.l.b16 %v4745
        %v5144 = vunpack.c.h.b16 %v4745
        %v5145 = vunpack.c.l.b16 %v4746
        %v5146 = vunpack.c.h.b16 %v4746
        %v5147 = vunpack.c.l.b16 %v4747
        %v5148 = vunpack.c.h.b16 %v4747
        %v5149 = vunpack.c.l.b16 %v4748
        %v5150 = vunpack.c.h.b16 %v4748
        %v5151 = vunpack.c.l.b16 %v4749
        %v5152 = vunpack.c.h.b16 %v4749
        %v5153 = vunpack.c.l.b16 %v4750
        %v5154 = vunpack.c.h.b16 %v4750
        %v5155 = vunpack.c.l.b16 %v4751
        %v5156 = vunpack.c.h.b16 %v4751
        %v5157 = vunpack.c.l.b16 %v4752
        %v5158 = vunpack.c.h.b16 %v4752
        %v5159 = vpack.c.b16 %v4907, %v4903
        %v5160 = vpack.c.b16 %v4908, %v4904
        %v5161 = vpack.c.b16 %v4909, %v4905
        %v5162 = vpack.c.b16 %v4910, %v4906
        %v5163 = vpack.c.b16 %v4915, %v4911
        %v5164 = vpack.c.b16 %v4916, %v4912
        %v5165 = vpack.c.b16 %v4917, %v4913
        %v5166 = vpack.c.b16 %v4918, %v4914
        %v5167 = vpack.c.b16 %v4923, %v4919
        %v5168 = vpack.c.b16 %v4924, %v4920
        %v5169 = vpack.c.b16 %v4925, %v4921
        %v5170 = vpack.c.b16 %v4926, %v4922
        %v5171 = vpack.c.b16 %v4931, %v4927
        %v5172 = vpack.c.b16 %v4932, %v4928
        %v5173 = vpack.c.b16 %v4933, %v4929
        %v5174 = vpack.c.b16 %v4934, %v4930
        %v5175 = vpack.c.b16 %v4939, %v4935
        %v5176 = vpack.c.b16 %v4940, %v4936
        %v5177 = vpack.c.b16 %v4941, %v4937
        %v5178 = vpack.c.b16 %v4942, %v4938
        %v5179 = vpack.c.b16 %v4947, %v4943
        %v5180 = vpack.c.b16 %v4948, %v4944
        %v5181 = vpack.c.b16 %v4949, %v4945
        %v5182 = vpack.c.b16 %v4950, %v4946
        %v5183 = vpack.c.b16 %v4955, %v4951
        %v5184 = vpack.c.b16 %v4956, %v4952
        %v5185 = vpack.c.b16 %v4957, %v4953
        %v5186 = vpack.c.b16 %v4958, %v4954
        %v5187 = vpack.c.b16 %v4963, %v4959
        %v5188 = vpack.c.b16 %v4964, %v4960
        %v5189 = vpack.c.b16 %v4965, %v4961
        %v5190 = vpack.c.b16 %v4966, %v4962
        %v5191 = vpack.c.b16 %v4971, %v4967
        %v5192 = vpack.c.b16 %v4972, %v4968
        %v5193 = vpack.c.b16 %v4973, %v4969
        %v5194 = vpack.c.b16 %v4974, %v4970
        %v5195 = vpack.c.b16 %v4979, %v4975
        %v5196 = vpack.c.b16 %v4980, %v4976
        %v5197 = vpack.c.b16 %v4981, %v4977
        %v5198 = vpack.c.b16 %v4982, %v4978
        %v5199 = vpack.c.b16 %v4987, %v4983
        %v5200 = vpack.c.b16 %v4988, %v4984
        %v5201 = vpack.c.b16 %v4989, %v4985
        %v5202 = vpack.c.b16 %v4990, %v4986
        %v5203 = vpack.c.b16 %v4995, %v4991
        %v5204 = vpack.c.b16 %v4996, %v4992
        %v5205 = vpack.c.b16 %v4997, %v4993
        %v5206 = vpack.c.b16 %v4998, %v4994
        %v5207 = vpack.c.b16 %v5003, %v4999
        %v5208 = vpack.c.b16 %v5004, %v5000
        %v5209 = vpack.c.b16 %v5005, %v5001
        %v5210 = vpack.c.b16 %v5006, %v5002
        %v5211 = vpack.c.b16 %v5011, %v5007
        %v5212 = vpack.c.b16 %v5012, %v5008
        %v5213 = vpack.c.b16 %v5013, %v5009
        %v5214 = vpack.c.b16 %v5014, %v5010
        %v5215 = vpack.c.b16 %v5019, %v5015
        %v5216 = vpack.c.b16 %v5020, %v5016
        %v5217 = vpack.c.b16 %v5021, %v5017
        %v5218 = vpack.c.b16 %v5022, %v5018
        %v5219 = vpack.c.b16 %v5027, %v5023
        %v5220 = vpack.c.b16 %v5028, %v5024
        %v5221 = vpack.c.b16 %v5029, %v5025
        %v5222 = vpack.c.b16 %v5030, %v5026
        %v5223 = vpack.c.b16 %v5035, %v5031
        %v5224 = vpack.c.b16 %v5036, %v5032
        %v5225 = vpack.c.b16 %v5037, %v5033
        %v5226 = vpack.c.b16 %v5038, %v5034
        %v5227 = vpack.c.b16 %v5043, %v5039
        %v5228 = vpack.c.b16 %v5044, %v5040
        %v5229 = vpack.c.b16 %v5045, %v5041
        %v5230 = vpack.c.b16 %v5046, %v5042
        %v5231 = vpack.c.b16 %v5051, %v5047
        %v5232 = vpack.c.b16 %v5052, %v5048
        %v5233 = vpack.c.b16 %v5053, %v5049
        %v5234 = vpack.c.b16 %v5054, %v5050
        %v5235 = vpack.c.b16 %v5059, %v5055
        %v5236 = vpack.c.b16 %v5060, %v5056
        %v5237 = vpack.c.b16 %v5061, %v5057
        %v5238 = vpack.c.b16 %v5062, %v5058
        %v5239 = vpack.c.b16 %v5067, %v5063
        %v5240 = vpack.c.b16 %v5068, %v5064
        %v5241 = vpack.c.b16 %v5069, %v5065
        %v5242 = vpack.c.b16 %v5070, %v5066
        %v5243 = vpack.c.b16 %v5075, %v5071
        %v5244 = vpack.c.b16 %v5076, %v5072
        %v5245 = vpack.c.b16 %v5077, %v5073
        %v5246 = vpack.c.b16 %v5078, %v5074
        %v5247 = vpack.c.b16 %v5083, %v5079
        %v5248 = vpack.c.b16 %v5084, %v5080
        %v5249 = vpack.c.b16 %v5085, %v5081
        %v5250 = vpack.c.b16 %v5086, %v5082
        %v5251 = vpack.c.b16 %v5091, %v5087
        %v5252 = vpack.c.b16 %v5092, %v5088
        %v5253 = vpack.c.b16 %v5093, %v5089
        %v5254 = vpack.c.b16 %v5094, %v5090
        %v5255 = vpack.c.b16 %v5099, %v5095
        %v5256 = vpack.c.b16 %v5100, %v5096
        %v5257 = vpack.c.b16 %v5101, %v5097
        %v5258 = vpack.c.b16 %v5102, %v5098
        %v5259 = vpack.c.b16 %v5107, %v5103
        %v5260 = vpack.c.b16 %v5108, %v5104
        %v5261 = vpack.c.b16 %v5109, %v5105
        %v5262 = vpack.c.b16 %v5110, %v5106
        %v5263 = vpack.c.b16 %v5115, %v5111
        %v5264 = vpack.c.b16 %v5116, %v5112
        %v5265 = vpack.c.b16 %v5117, %v5113
        %v5266 = vpack.c.b16 %v5118, %v5114
        %v5267 = vpack.c.b16 %v5123, %v5119
        %v5268 = vpack.c.b16 %v5124, %v5120
        %v5269 = vpack.c.b16 %v5125, %v5121
        %v5270 = vpack.c.b16 %v5126, %v5122
        %v5271 = vpack.c.b16 %v5131, %v5127
        %v5272 = vpack.c.b16 %v5132, %v5128
        %v5273 = vpack.c.b16 %v5133, %v5129
        %v5274 = vpack.c.b16 %v5134, %v5130
        %v5275 = vpack.c.b16 %v5139, %v5135
        %v5276 = vpack.c.b16 %v5140, %v5136
        %v5277 = vpack.c.b16 %v5141, %v5137
        %v5278 = vpack.c.b16 %v5142, %v5138
        %v5279 = vpack.c.b16 %v5147, %v5143
        %v5280 = vpack.c.b16 %v5148, %v5144
        %v5281 = vpack.c.b16 %v5149, %v5145
        %v5282 = vpack.c.b16 %v5150, %v5146
        %v5283 = vpack.c.b16 %v5155, %v5151
        %v5284 = vpack.c.b16 %v5156, %v5152
        %v5285 = vpack.c.b16 %v5157, %v5153
        %v5286 = vpack.c.b16 %v5158, %v5154
        %5415 = vmatprep.subr.bf16.mxu0 %v5188
        %5416 = vmatpush1.bf16.msra.mxu0 %v5187
        %5417 = vmatprep.subr.bf16.mxu0 %v5184
        %5418 = vmatpush1.bf16.msra.mxu0 %v5183
        %5419 = vmatprep.subr.bf16.mxu0 %v5180
        %5420 = vmatpush1.bf16.msra.mxu0 %v5179
        %5421 = vmatprep.subr.bf16.mxu0 %v5176
        %5422 = vmatpush1.bf16.msra.mxu0 %v5175
        %5423 = vmatprep.subr.bf16.mxu0 %v5172
        %5424 = vmatpush1.bf16.msra.mxu0 %v5171
        %5425 = vmatprep.subr.bf16.mxu0 %v5168
        %5426 = vmatpush1.bf16.msra.mxu0 %v5167
        %5427 = vmatprep.subr.bf16.mxu0 %v5164
        %5428 = vmatpush1.bf16.msra.mxu0 %v5163
        %5429 = vmatprep.subr.bf16.mxu0 %v5160
        %5430 = vmatpush1.bf16.msra.mxu0 %v5159
        %5431 = vmatprep.subr.bf16.mxu0 %v5220
        %5432 = vmatpush2.bf16.msra.mxu0 %v5219
        %5433 = vmatprep.subr.bf16.mxu0 %v5216
        %5434 = vmatpush2.bf16.msra.mxu0 %v5215
        %5435 = vmatprep.subr.bf16.mxu0 %v5212
        %5436 = vmatpush2.bf16.msra.mxu0 %v5211
        %5437 = vmatprep.subr.bf16.mxu0 %v5208
        %5438 = vmatpush2.bf16.msra.mxu0 %v5207
        %5439 = vmatprep.subr.bf16.mxu0 %v5204
        %5440 = vmatpush2.bf16.msra.mxu0 %v5203
        %5441 = vmatprep.subr.bf16.mxu0 %v5200
        %5442 = vmatpush2.bf16.msra.mxu0 %v5199
        %5443 = vmatprep.subr.bf16.mxu0 %v5196
        %5444 = vmatpush2.bf16.msra.mxu0 %v5195
        %5445 = vmatprep.subr.bf16.mxu0 %v5192
        %5446 = vmatpush2.bf16.msra.mxu0 %v5191
        %5447 = vmatprep.mubr.bf16.mxu0 %v4622
        %5448 = vmatmul.mubr.bf16.gmra.mxu0 %v4621
        %v5449 = vpop.f32.mrf.mxu0
        %v5450 = vadd.f32 %v4758, %v5449
        %v5451 = vpop.f32.mrf.mxu0
        %v5452 = vadd.f32 %v4762, %v5451
        %v5453 = vpop.f32.mrf.mxu0
        %v5454 = vadd.f32 %v4758, %v5453
        %v5455 = vpop.f32.mrf.mxu0
        %v5456 = vadd.f32 %v4762, %v5455
        %5457 = vdwg.mxu0
        %5458 = vmatprep.subr.bf16.mxu0 %v5252
        %5459 = vmatpush1.bf16.msra.mxu0 %v5251
        %5460 = vmatprep.subr.bf16.mxu0 %v5248
        %5461 = vmatpush1.bf16.msra.mxu0 %v5247
        %5462 = vmatprep.subr.bf16.mxu0 %v5244
        %5463 = vmatpush1.bf16.msra.mxu0 %v5243
        %5464 = vmatprep.subr.bf16.mxu0 %v5240
        %5465 = vmatpush1.bf16.msra.mxu0 %v5239
        %5466 = vmatprep.subr.bf16.mxu0 %v5236
        %5467 = vmatpush1.bf16.msra.mxu0 %v5235
        %5468 = vmatprep.subr.bf16.mxu0 %v5232
        %5469 = vmatpush1.bf16.msra.mxu0 %v5231
        %5470 = vmatprep.subr.bf16.mxu0 %v5228
        %5471 = vmatpush1.bf16.msra.mxu0 %v5227
        %5472 = vmatprep.subr.bf16.mxu0 %v5224
        %5473 = vmatpush1.bf16.msra.mxu0 %v5223
        %5474 = vmatprep.subr.bf16.mxu0 %v5284
        %5475 = vmatpush2.bf16.msra.mxu0 %v5283
        %5476 = vmatprep.subr.bf16.mxu0 %v5280
        %5477 = vmatpush2.bf16.msra.mxu0 %v5279
        %5478 = vmatprep.subr.bf16.mxu0 %v5276
        %5479 = vmatpush2.bf16.msra.mxu0 %v5275
        %5480 = vmatprep.subr.bf16.mxu0 %v5272
        %5481 = vmatpush2.bf16.msra.mxu0 %v5271
        %5482 = vmatprep.subr.bf16.mxu0 %v5268
        %5483 = vmatpush2.bf16.msra.mxu0 %v5267
        %5484 = vmatprep.subr.bf16.mxu0 %v5264
        %5485 = vmatpush2.bf16.msra.mxu0 %v5263
        %5486 = vmatprep.subr.bf16.mxu0 %v5260
        %5487 = vmatpush2.bf16.msra.mxu0 %v5259
        %5488 = vmatprep.subr.bf16.mxu0 %v5256
        %5489 = vmatpush2.bf16.msra.mxu0 %v5255
        %5490 = vmatprep.mubr.bf16.mxu0 %v4624
        %5491 = vmatmul.mubr.bf16.gmra.mxu0 %v4623
        %v5492 = vpop.f32.mrf.mxu0
        %v5493 = vadd.f32 %v5450, %v5492
        %v5494 = vpop.f32.mrf.mxu0
        %v5495 = vadd.f32 %v5452, %v5494
        %v5496 = vpop.f32.mrf.mxu0
        %v5497 = vadd.f32 %v5454, %v5496
        %v5498 = vpop.f32.mrf.mxu0
        %v5499 = vadd.f32 %v5456, %v5498
        %5500 = vdwg.mxu0
        %5501 = vmatprep.subr.bf16.mxu0 %v5190
        %5502 = vmatpush1.bf16.msra.mxu0 %v5189
        %5503 = vmatprep.subr.bf16.mxu0 %v5186
        %5504 = vmatpush1.bf16.msra.mxu0 %v5185
        %5505 = vmatprep.subr.bf16.mxu0 %v5182
        %5506 = vmatpush1.bf16.msra.mxu0 %v5181
        %5507 = vmatprep.subr.bf16.mxu0 %v5178
        %5508 = vmatpush1.bf16.msra.mxu0 %v5177
        %5509 = vmatprep.subr.bf16.mxu0 %v5174
        %5510 = vmatpush1.bf16.msra.mxu0 %v5173
        %5511 = vmatprep.subr.bf16.mxu0 %v5170
        %5512 = vmatpush1.bf16.msra.mxu0 %v5169
        %5513 = vmatprep.subr.bf16.mxu0 %v5166
        %5514 = vmatpush1.bf16.msra.mxu0 %v5165
        %5515 = vmatprep.subr.bf16.mxu0 %v5162
        %5516 = vmatpush1.bf16.msra.mxu0 %v5161
        %5517 = vmatprep.subr.bf16.mxu0 %v5222
        %5518 = vmatpush2.bf16.msra.mxu0 %v5221
        %5519 = vmatprep.subr.bf16.mxu0 %v5218
        %5520 = vmatpush2.bf16.msra.mxu0 %v5217
        %5521 = vmatprep.subr.bf16.mxu0 %v5214
        %5522 = vmatpush2.bf16.msra.mxu0 %v5213
        %5523 = vmatprep.subr.bf16.mxu0 %v5210
        %5524 = vmatpush2.bf16.msra.mxu0 %v5209
        %5525 = vmatprep.subr.bf16.mxu0 %v5206
        %5526 = vmatpush2.bf16.msra.mxu0 %v5205
        %5527 = vmatprep.subr.bf16.mxu0 %v5202
        %5528 = vmatpush2.bf16.msra.mxu0 %v5201
        %5529 = vmatprep.subr.bf16.mxu0 %v5198
        %5530 = vmatpush2.bf16.msra.mxu0 %v5197
        %5531 = vmatprep.subr.bf16.mxu0 %v5194
        %5532 = vmatpush2.bf16.msra.mxu0 %v5193
        %5533 = vmatprep.mubr.bf16.mxu0 %v4622
        %5534 = vmatmul.mubr.bf16.gmra.mxu0 %v4621
        %v5535 = vpop.f32.mrf.mxu0
        %v5536 = vadd.f32 %v4766, %v5535
        %v5537 = vpop.f32.mrf.mxu0
        %v5538 = vadd.f32 %v4770, %v5537
        %v5539 = vpop.f32.mrf.mxu0
        %v5540 = vadd.f32 %v4766, %v5539
        %v5541 = vpop.f32.mrf.mxu0
        %v5542 = vadd.f32 %v4770, %v5541
        %5543 = vdwg.mxu0
        %5544 = vmatprep.subr.bf16.mxu0 %v5254
        %5545 = vmatpush1.bf16.msra.mxu0 %v5253
        %5546 = vmatprep.subr.bf16.mxu0 %v5250
        %5547 = vmatpush1.bf16.msra.mxu0 %v5249
        %5548 = vmatprep.subr.bf16.mxu0 %v5246
        %5549 = vmatpush1.bf16.msra.mxu0 %v5245
        %5550 = vmatprep.subr.bf16.mxu0 %v5242
        %5551 = vmatpush1.bf16.msra.mxu0 %v5241
        %5552 = vmatprep.subr.bf16.mxu0 %v5238
        %5553 = vmatpush1.bf16.msra.mxu0 %v5237
        %5554 = vmatprep.subr.bf16.mxu0 %v5234
        %5555 = vmatpush1.bf16.msra.mxu0 %v5233
        %5556 = vmatprep.subr.bf16.mxu0 %v5230
        %5557 = vmatpush1.bf16.msra.mxu0 %v5229
        %5558 = vmatprep.subr.bf16.mxu0 %v5226
        %5559 = vmatpush1.bf16.msra.mxu0 %v5225
        %5560 = vmatprep.subr.bf16.mxu0 %v5286
        %5561 = vmatpush2.bf16.msra.mxu0 %v5285
        %5562 = vmatprep.subr.bf16.mxu0 %v5282
        %5563 = vmatpush2.bf16.msra.mxu0 %v5281
        %5564 = vmatprep.subr.bf16.mxu0 %v5278
        %5565 = vmatpush2.bf16.msra.mxu0 %v5277
        %5566 = vmatprep.subr.bf16.mxu0 %v5274
        %5567 = vmatpush2.bf16.msra.mxu0 %v5273
        %5568 = vmatprep.subr.bf16.mxu0 %v5270
        %5569 = vmatpush2.bf16.msra.mxu0 %v5269
        %5570 = vmatprep.subr.bf16.mxu0 %v5266
        %5571 = vmatpush2.bf16.msra.mxu0 %v5265
        %5572 = vmatprep.subr.bf16.mxu0 %v5262
        %5573 = vmatpush2.bf16.msra.mxu0 %v5261
        %5574 = vmatprep.subr.bf16.mxu0 %v5258
        %5575 = vmatpush2.bf16.msra.mxu0 %v5257
        %5576 = vmatprep.mubr.bf16.mxu0 %v4624
        %5577 = vmatmul.mubr.bf16.gmra.mxu0 %v4623
        %v5578 = vpop.f32.mrf.mxu0
        %v5579 = vadd.f32 %v5536, %v5578
        %v5580 = vpop.f32.mrf.mxu0
        %v5581 = vadd.f32 %v5538, %v5580
        %v5582 = vpop.f32.mrf.mxu0
        %v5583 = vadd.f32 %v5540, %v5582
        %v5584 = vpop.f32.mrf.mxu0
        %v5585 = vadd.f32 %v5542, %v5584
        %5586 = vdwg.mxu0
        %v5587 = vmax.f32 %v5493, 0.0
        %v5588 = vmax.f32 %v5495, 0.0
        %v5589 = vmax.f32 %v5579, 0.0
        %v5590 = vmax.f32 %v5581, 0.0
        %v5591 = vmax.f32 %v5497, 0.0
        %v5592 = vmax.f32 %v5499, 0.0
        %v5593 = vmax.f32 %v5583, 0.0
        %v5594 = vmax.f32 %v5585, 0.0
        %v5595 = vpack.c.bf16 %v5593, %v5589
        %v5596 = vpack.c.bf16 %v5594, %v5590
        %v5597 = vld [vmem:[%s11] sm:$0x3]
        %v5599 = vlaneseq
        %v5600 = vshrl.u32 %v5599, 7
        %v5601 = vsub.s32 0, %v5600
        %v5602 = vrot.slane %v5597, %v5601
        %v5603 = vlaneseq
        %v5604 = vshrl.u32 %v5603, 7
        %v5605 = vsub.s32 1, %v5604
        %v5606 = vrot.slane %v5597, %v5605
        %v5609 = vmul.f32 %v5587, %v5602
        %v5610 = vmul.f32 %v5588, %v5606
        %v5611 = vmul.f32 %v5591, %v5602
        %v5612 = vmul.f32 %v5592, %v5606
        %v5613 = vadd.f32 %v5609, %v5610
        %5614 = vadd.xlane.f32.xlu0 %v5613
        %v5615 = vpop.xlane.xlu0 %5614
        %v5616 = vadd.f32 %v5611, %v5612
        %5617 = vadd.xlane.f32.xlu0 %v5616
        %v5618 = vpop.xlane.xlu0 %5617
        %v5619 = vld [vmem:[#allocation2] sm:$0x1]
        %v5621 = vlaneseq
        %v5622 = vshrl.u32 %v5621, 7
        %v5623 = vsub.s32 0, %v5622
        %v5624 = vrot.slane %v5619, %v5623
        %v5626 = vadd.f32 %v5615, %v5624
        %v5627 = vadd.f32 %v5618, %v5624
        %v5628 = vld [vmem:[%s13] sm:$0xf]
        %v5629 = vld [vmem:[%s13 + $0x4] sm:$0xf]
        %v5630 = vld [vmem:[%s13 + $0x8] sm:$0xf]
        %v5631 = vld [vmem:[%s13 + $0xc] sm:$0xf]
        %v5632 = vld [vmem:[%s13 + $0x10] sm:$0xf]
        %v5633 = vld [vmem:[%s13 + $0x14] sm:$0xf]
        %v5634 = vld [vmem:[%s13 + $0x18] sm:$0xf]
        %v5635 = vld [vmem:[%s13 + $0x1c] sm:$0xf]
        %v5636 = vld [vmem:[%s13 + $0x20] sm:$0xf]
        %v5637 = vld [vmem:[%s13 + $0x24] sm:$0xf]
        %v5638 = vld [vmem:[%s13 + $0x28] sm:$0xf]
        %v5639 = vld [vmem:[%s13 + $0x2c] sm:$0xf]
        %v5640 = vld [vmem:[%s13 + $0x30] sm:$0xf]
        %v5641 = vld [vmem:[%s13 + $0x34] sm:$0xf]
        %v5642 = vld [vmem:[%s13 + $0x38] sm:$0xf]
        %v5643 = vld [vmem:[%s13 + $0x3c] sm:$0xf]
        %v5644 = vld [vmem:[%s13 + $0x40] sm:$0xf]
        %v5645 = vld [vmem:[%s13 + $0x44] sm:$0xf]
        %v5646 = vld [vmem:[%s13 + $0x48] sm:$0xf]
        %v5647 = vld [vmem:[%s13 + $0x4c] sm:$0xf]
        %v5648 = vld [vmem:[%s13 + $0x50] sm:$0xf]
        %v5649 = vld [vmem:[%s13 + $0x54] sm:$0xf]
        %v5650 = vld [vmem:[%s13 + $0x58] sm:$0xf]
        %v5651 = vld [vmem:[%s13 + $0x5c] sm:$0xf]
        %v5652 = vld [vmem:[%s13 + $0x60] sm:$0xf]
        %v5653 = vld [vmem:[%s13 + $0x64] sm:$0xf]
        %v5654 = vld [vmem:[%s13 + $0x68] sm:$0xf]
        %v5655 = vld [vmem:[%s13 + $0x6c] sm:$0xf]
        %v5656 = vld [vmem:[%s13 + $0x70] sm:$0xf]
        %v5657 = vld [vmem:[%s13 + $0x74] sm:$0xf]
        %v5658 = vld [vmem:[%s13 + $0x78] sm:$0xf]
        %v5659 = vld [vmem:[%s13 + $0x7c] sm:$0xf]
        %v5660 = vld [vmem:[%s14] sm:$0x1]
        %v5662 = vlaneseq
        %v5663 = vshrl.u32 %v5662, 7
        %v5664 = vsub.s32 0, %v5663
        %v5665 = vrot.slane %v5660, %v5664
        %v5699 = vunpack.c.l.b16 %v5628
        %v5700 = vunpack.c.l.b16 %v5629
        %v5701 = vunpack.c.l.b16 %v5630
        %v5702 = vunpack.c.l.b16 %v5631
        %v5703 = vunpack.c.l.b16 %v5632
        %v5704 = vunpack.c.l.b16 %v5633
        %v5705 = vunpack.c.l.b16 %v5634
        %v5706 = vunpack.c.l.b16 %v5635
        %v5707 = vunpack.c.l.b16 %v5636
        %v5708 = vunpack.c.l.b16 %v5637
        %v5709 = vunpack.c.l.b16 %v5638
        %v5710 = vunpack.c.l.b16 %v5639
        %v5711 = vunpack.c.l.b16 %v5640
        %v5712 = vunpack.c.l.b16 %v5641
        %v5713 = vunpack.c.l.b16 %v5642
        %v5714 = vunpack.c.l.b16 %v5643
        %v5715 = vunpack.c.l.b16 %v5644
        %v5716 = vunpack.c.l.b16 %v5645
        %v5717 = vunpack.c.l.b16 %v5646
        %v5718 = vunpack.c.l.b16 %v5647
        %v5719 = vunpack.c.l.b16 %v5648
        %v5720 = vunpack.c.l.b16 %v5649
        %v5721 = vunpack.c.l.b16 %v5650
        %v5722 = vunpack.c.l.b16 %v5651
        %v5723 = vunpack.c.l.b16 %v5652
        %v5724 = vunpack.c.l.b16 %v5653
        %v5725 = vunpack.c.l.b16 %v5654
        %v5726 = vunpack.c.l.b16 %v5655
        %v5727 = vunpack.c.l.b16 %v5656
        %v5728 = vunpack.c.l.b16 %v5657
        %v5729 = vunpack.c.l.b16 %v5658
        %v5730 = vunpack.c.l.b16 %v5659
        %v5731 = vpack.c.b16 %v5700, %v5699
        %v5732 = vpack.c.b16 %v5702, %v5701
        %v5733 = vpack.c.b16 %v5704, %v5703
        %v5734 = vpack.c.b16 %v5706, %v5705
        %v5735 = vpack.c.b16 %v5708, %v5707
        %v5736 = vpack.c.b16 %v5710, %v5709
        %v5737 = vpack.c.b16 %v5712, %v5711
        %v5738 = vpack.c.b16 %v5714, %v5713
        %v5739 = vpack.c.b16 %v5716, %v5715
        %v5740 = vpack.c.b16 %v5718, %v5717
        %v5741 = vpack.c.b16 %v5720, %v5719
        %v5742 = vpack.c.b16 %v5722, %v5721
        %v5743 = vpack.c.b16 %v5724, %v5723
        %v5744 = vpack.c.b16 %v5726, %v5725
        %v5745 = vpack.c.b16 %v5728, %v5727
        %v5746 = vpack.c.b16 %v5730, %v5729
        %5763 = vmatprep.subr.bf16.mxu0 0
        %5764 = vmatpush1.bf16.msra.mxu0 %v5738
        %5765 = vmatprep.subr.bf16.mxu0 0
        %5766 = vmatpush1.bf16.msra.mxu0 %v5737
        %5767 = vmatprep.subr.bf16.mxu0 0
        %5768 = vmatpush1.bf16.msra.mxu0 %v5736
        %5769 = vmatprep.subr.bf16.mxu0 0
        %5770 = vmatpush1.bf16.msra.mxu0 %v5735
        %5771 = vmatprep.subr.bf16.mxu0 0
        %5772 = vmatpush1.bf16.msra.mxu0 %v5734
        %5773 = vmatprep.subr.bf16.mxu0 0
        %5774 = vmatpush1.bf16.msra.mxu0 %v5733
        %5775 = vmatprep.subr.bf16.mxu0 0
        %5776 = vmatpush1.bf16.msra.mxu0 %v5732
        %5777 = vmatprep.subr.bf16.mxu0 0
        %5778 = vmatpush1.bf16.msra.mxu0 %v5731
        %5779 = vmatprep.subr.bf16.mxu0 0
        %5780 = vmatpush2.bf16.msra.mxu0 %v5746
        %5781 = vmatprep.subr.bf16.mxu0 0
        %5782 = vmatpush2.bf16.msra.mxu0 %v5745
        %5783 = vmatprep.subr.bf16.mxu0 0
        %5784 = vmatpush2.bf16.msra.mxu0 %v5744
        %5785 = vmatprep.subr.bf16.mxu0 0
        %5786 = vmatpush2.bf16.msra.mxu0 %v5743
        %5787 = vmatprep.subr.bf16.mxu0 0
        %5788 = vmatpush2.bf16.msra.mxu0 %v5742
        %5789 = vmatprep.subr.bf16.mxu0 0
        %5790 = vmatpush2.bf16.msra.mxu0 %v5741
        %5791 = vmatprep.subr.bf16.mxu0 0
        %5792 = vmatpush2.bf16.msra.mxu0 %v5740
        %5793 = vmatprep.subr.bf16.mxu0 0
        %5794 = vmatpush2.bf16.msra.mxu0 %v5739
        %5795 = vmatprep.mubr.bf16.mxu0 %v5596
        %5796 = vmatmul.mubr.bf16.gmra.mxu0 %v5595
        %v5797 = vpop.f32.mrf.mxu0
        %v5798 = vadd.f32 %v5665, %v5797
        %v5799 = vpop.f32.mrf.mxu0
        %v5800 = vpop.f32.mrf.mxu0
        %v5801 = vadd.f32 %v5665, %v5800
        %v5802 = vpop.f32.mrf.mxu0
        %5803 = vdwg.mxu0
        %5804 = vadd.xlane.f32.xlu0 %v5798
        %v5805 = vpop.xlane.xlu0 %5804
        %5806 = vadd.xlane.f32.xlu0 %v5801
        %v5807 = vpop.xlane.xlu0 %5806
        %v5808 = vmul.f32 %v5805, 0.16666667
        %v5809 = vmul.f32 %v5807, 0.16666667
        %v5810 = vsub.f32 %v5798, %v5808
        %v5811 = vsub.f32 %v5801, %v5809
        %5813 = vset.pattern.permute.xlu0 0
        %5814 = vperm.xlu0 %5813, %v5626
        %v5815 = vpop.permute.xlu0 %5814
        %5818 = vset.pattern.permute.xlu0 0
        %5819 = vperm.xlu0 %5818, %v5627
        %v5820 = vpop.permute.xlu0 %5819
        %v5822 = vadd.f32 %v5815, %v5810
        %v5823 = vadd.f32 %v5820, %v5811
        %5824 = vst [vmem:[%s1185] sm:$0xff] %v5822
        %5825 = vst [vmem:[%s1185 + $0x8] sm:$0xff] %v5823
        %s5826 = smul.u32 2, %s28
        %p5827 = scmp.lt.s32.totalorder %s5826, 3
        %s5828 = scalar_select %p5827, %s5826, 3
        %s5829 = smul.addr %s5828, 8
        %s5830 = scalar_lea.vmem %s15, %s5829
        // Predicated region
        $region122: #{duel_dqn_forward.1} parent=116 // pred_check
          %p5831 = pneg %p366
        $region123: #{duel_dqn_forward.1} parent=116 // pred_check_branch
          %5833 = sbr.rel (%p5831) target = $region125
        $region124: #{duel_dqn_forward.1} parent=116 // pred_region
          %s5834 = smul.u32 2, %s28
        $region125: #{duel_dqn_forward.1} parent=116 // pred_fallthru
          _
      $region117: #{duel_dqn_forward.1} parent=5 // pred_fallthru
        _
      %p5835 = scmp.le.s32.totalorder 2, %s23
      // Predicated region
      $region126: #{duel_dqn_forward.1} parent=5 // pred_check
        %p5836 = pneg %p5835
      $region127: #{duel_dqn_forward.1} parent=5 // pred_check_branch
        %5838 = sbr.rel (%p5836) target = $region129
      $region128: #{duel_dqn_forward.1} parent=5 // pred_region
        %s5839 = ssub.s32 %s23, 2
        // Predicated region
        $region130: #{duel_dqn_forward.1} parent=128 // pred_check
          %p5840 = pneg %p372
        $region131: #{duel_dqn_forward.1} parent=128 // pred_check_branch
          %5842 = sbr.rel (%p5840) target = $region133
        $region132: #{duel_dqn_forward.1} parent=128 // pred_region
          %s5843 = smul.u32 2, %s29
          %p5844 = scmp.lt.s32.totalorder %s5843, 3
          %s5845 = scalar_select %p5844, %s5843, 3
          %s5846 = smul.addr %s5845, 8
          %s5847 = scalar_lea.vmem %s15, %s5846
        $region133: #{duel_dqn_forward.1} parent=128 // pred_fallthru
          _
      $region129: #{duel_dqn_forward.1} parent=5 // pred_fallthru
        _
    $region6: #{duel_dqn_forward.1} parent=1 // loop_footer
      %s27 = sadd.s32 1, %s23
    $region7: #{duel_dqn_forward.1} parent=1 // loop_footer_branch
      %22 = sbr.rel target = $region3
    $region8: #{duel_dqn_forward.1} parent=1 // loop_exit
      _

</llo_original>
